<compile_context>
chip_gen: v7x
topology: tpu7x:2x2x1
jax: 0.10.0
libtpu: 0.0.40
codegen_flags: <defaults>
</compile_context>

<pallas_src>
import functools

import jax
import jax.numpy as jnp
from jax import lax
from jax.experimental import pallas as pl
from jax.experimental.pallas import tpu as pltpu

_HP = jax.lax.Precision.HIGHEST  # exact f32 matmuls (kernel + reference)


# ---------------------------------------------------------------------------
# Kernel: 6 matmuls in transposed orientation, all weights VMEM-resident.
# ---------------------------------------------------------------------------
def _composite_mlp_kernel(
    x_ref,                 # (TILE_B, input_dim)  natural layout
    w1t_ref, b1t_ref,      # (OH, input_dim), (OH, 1)      OH = obj_dim * H
    w2t_ref, b2t_ref,      # (OH, OH) block-diag^T, (OH, 1)
    w3t_ref, b3t_ref,      # (ID, OH) block-diag^T, (ID, 1)
    cw1t_ref, cb1t_ref,    # (32, OH) = (w3_bd @ c1w)^T fused, (32, 1)
    c2t_ref, c2bt_ref,     # (32, 32), (32, 1)
    c3t_ref, c3bt_ref,     # (FD, 32), (FD, 1)
    out_ref,               # (ID + FD, TILE_B)   rows: [inter^T ; logits^T]
    *, inter_dim,
):
    x = x_ref[...]                                           # (TB, in)

    # h1^T = W1^T @ x^T : contract input_dim of both operands (NT matmul).
    h = lax.dot_general(w1t_ref[...], x, (((1,), (1,)), ((), ())),
                        precision=_HP,
                        preferred_element_type=jnp.float32) + b1t_ref[...]
    h = jnp.maximum(h, 0.0)                                  # (OH, TB)
    h = jnp.dot(w2t_ref[...], h, precision=_HP,
                preferred_element_type=jnp.float32) + b2t_ref[...]
    h = jnp.maximum(h, 0.0)                                  # (OH, TB)

    # Block-diagonal layer-3^T: rows of `inter` ARE the concatenated
    # per-branch predictions, so torch.cat is free.
    inter = jnp.dot(w3t_ref[...], h, precision=_HP,
                    preferred_element_type=jnp.float32) + b3t_ref[...]

    # Classifier (layer-1 fused with branch layer-3; no ReLU between them).
    c = jnp.dot(cw1t_ref[...], h, precision=_HP,
                preferred_element_type=jnp.float32) + cb1t_ref[...]
    c = jnp.maximum(c, 0.0)
    c = jnp.dot(c2t_ref[...], c, precision=_HP,
                preferred_element_type=jnp.float32) + c2bt_ref[...]
    c = jnp.maximum(c, 0.0)
    logits = jnp.dot(c3t_ref[...], c, precision=_HP,
                     preferred_element_type=jnp.float32) + c3bt_ref[...]
    logits = jnp.maximum(logits, 0.0)    # classifier Sequential ends in ReLU

    out_ref[0:inter_dim, :] = inter.astype(out_ref.dtype)
    out_ref[inter_dim:, :] = logits.astype(out_ref.dtype)


# ---------------------------------------------------------------------------
# Host-side parameter packing (fuse / block-diag / transpose).  Tiny arrays.
# ---------------------------------------------------------------------------
def _block_diag(blocks):
    """blocks: (G, R, C) -> (G*R, G*C) with exact zeros off-diagonal."""
    G, R, C = blocks.shape
    out = jnp.zeros((G * R, G * C), blocks.dtype)
    for g in range(G):
        out = out.at[g * R:(g + 1) * R, g * C:(g + 1) * C].set(blocks[g])
    return out


def _round_up(n, m):
    return ((n + m - 1) // m) * m


def _pack_params(params, obj_dim, obj_output_dim, num_units):
    H = num_units
    OH = obj_dim * H
    ID = obj_dim * obj_output_dim

    w1 = params["w1"]                                  # (obj_dim, in, H)
    input_dim = w1.shape[1]
    w1t = jnp.transpose(w1, (1, 0, 2)).reshape(input_dim, OH).T   # (OH, in)
    b1t = params["b1"].reshape(OH, 1)

    w2bd = _block_diag(params["w2"])                   # (OH, OH)
    w2t = w2bd.T
    b2t = params["b2"].reshape(OH, 1)

    w3bd = _block_diag(params["w3"])                   # (OH, ID)
    w3t = w3bd.T                                       # (ID, OH)
    b3t = params["b3"].reshape(ID, 1)

    # classifier layer-1 fused with branch layer-3 (linear -> linear):
    #   c_pre = inter @ c1w + c1b = h2 @ (w3bd @ c1w) + (b3 @ c1w + c1b)
    cw1 = jnp.dot(w3bd, params["c1w"], precision=_HP)            # (OH, 32)
    cb1 = (jnp.dot(params["b3"].reshape(1, ID), params["c1w"],
                   precision=_HP) + params["c1b"])               # (1, 32)
    cw1t = cw1.T                                                 # (32, OH)
    cb1t = cb1.reshape(-1, 1)

    c2t = params["c2w"].T
    c2bt = params["c2b"].reshape(-1, 1)
    c3t = params["c3w"].T                                        # (FD, 32)
    c3bt = params["c3b"].reshape(-1, 1)                          # (FD, 1)

    return (w1t, b1t, w2t, b2t, w3t, b3t, cw1t, cb1t, c2t, c2bt, c3t, c3bt)


# ---------------------------------------------------------------------------
# Wrapper
# ---------------------------------------------------------------------------
def composite_mlp_forward(x, params, obj_dim, obj_output_dim, final_output_dim,
                          num_units=32):
    B, input_dim = x.shape
    OH = obj_dim * num_units
    ID = obj_dim * obj_output_dim
    FD = final_output_dim
    FEAT = ID + FD

    packed = _pack_params(params, obj_dim, obj_output_dim, num_units)

    # --- batch tiling -----------------------------------------------------
    # B <= 1024: one full-extent tile -> no batch padding, no wrapper pad op.
    # Larger B : lane tiles (multiple of 128), capped at 4096 and sized for
    #            >= 2 grid steps so v7x's 2 TensorCores both get work.
    if B <= 1024:
        tile_b = B
    else:
        tile_b = min(4096, _round_up((B + 1) // 2, 128))
    b_pad = _round_up(B, tile_b)
    x_p = x if b_pad == B else jnp.pad(x, ((0, b_pad - B), (0, 0)))
    grid = (b_pad // tile_b,)

    def const_spec(arr):
        # Full-array block pinned in VMEM across all grid steps.
        return pl.BlockSpec(arr.shape, lambda i, nd=arr.ndim: (0,) * nd)

    in_specs = [pl.BlockSpec((tile_b, input_dim), lambda i: (i, 0))]
    in_specs += [const_spec(a) for a in packed]

    out_specs = pl.BlockSpec((FEAT, tile_b), lambda i: (0, i))
    out_shape = jax.ShapeDtypeStruct((FEAT, b_pad), jnp.float32)

    flops = 2 * b_pad * (input_dim * OH + OH * OH + OH * ID
                         + OH * 32 + 32 * 32 + 32 * FD)
    bytes_accessed = 4 * (b_pad * input_dim
                          + sum(int(a.size) for a in packed)
                          + b_pad * FEAT)
    cost = pl.CostEstimate(flops=flops, transcendentals=0,
                           bytes_accessed=bytes_accessed)

    out_t = pl.pallas_call(
        functools.partial(_composite_mlp_kernel, inter_dim=ID),
        out_shape=out_shape,
        grid=grid,
        in_specs=in_specs,
        out_specs=out_specs,
        compiler_params=pltpu.CompilerParams(
            dimension_semantics=("parallel",),
            vmem_limit_bytes=32 * 1024 * 1024),
        cost_estimate=cost,
    )(x_p, *packed)

    # Tiny wrapper ops: split rows + transpose back to (B, features).
    inter = out_t[:ID, :B].T
    logits = out_t[ID:FEAT, :B].T
    return inter, logits


# ---------------------------------------------------------------------------
# Deterministic parameter init (PyTorch-style uniform +-1/sqrt(fan_in)),
# stored in the original (per-branch) layout.
# ---------------------------------------------------------------------------
def init_params(key, input_dim, obj_dim, obj_output_dim, final_output_dim,
                num_units=32):
    inter_dim = obj_dim * obj_output_dim
    keys = jax.random.split(key, 6)

    def lin(k, fan_in, fan_out, lead=None):
        bound = 1.0 / jnp.sqrt(jnp.float32(fan_in))
        kw, kb = jax.random.split(k)
        wshape = (fan_in, fan_out) if lead is None else (lead, fan_in, fan_out)
        bshape = (1, fan_out) if lead is None else (lead, 1, fan_out)
        w = jax.random.uniform(kw, wshape, jnp.float32, -bound, bound)
        b = jax.random.uniform(kb, bshape, jnp.float32, -bound, bound)
        return w, b

    w1, b1 = lin(keys[0], input_dim, num_units, lead=obj_dim)
    w2, b2 = lin(keys[1], num_units, num_units, lead=obj_dim)
    w3, b3 = lin(keys[2], num_units, obj_output_dim, lead=obj_dim)
    c1w, c1b = lin(keys[3], inter_dim, 32)
    c2w, c2b = lin(keys[4], 32, 32)
    c3w, c3b = lin(keys[5], 32, final_output_dim)

    return {
        "w1": w1, "b1": b1, "w2": w2, "b2": b2, "w3": w3, "b3": b3,
        "c1w": c1w, "c1b": c1b, "c2w": c2w, "c2b": c2b, "c3w": c3w, "c3b": c3b,
    }


# ---------------------------------------------------------------------------
# Pure-JAX reference (unfused, mirrors the PyTorch forward), exact-f32 dots.
# ---------------------------------------------------------------------------
def reference_forward(x, p, obj_dim):
    dot = functools.partial(jnp.dot, precision=_HP)
    outs = []
    for i in range(obj_dim):
        h = jnp.maximum(dot(x, p["w1"][i]) + p["b1"][i], 0.0)
        h = jnp.maximum(dot(h, p["w2"][i]) + p["b2"][i], 0.0)
        outs.append(dot(h, p["w3"][i]) + p["b3"][i])
    inter = jnp.concatenate(outs, axis=1)
    h = jnp.maximum(dot(inter, p["c1w"]) + p["c1b"], 0.0)
    h = jnp.maximum(dot(h, p["c2w"]) + p["c2b"], 0.0)
    logits = jnp.maximum(dot(h, p["c3w"]) + p["c3b"], 0.0)
    return inter, logits


# ---------------------------------------------------------------------------
if __name__ == "__main__":
    # Small shapes consistent with the module's forward.
    B = 8
    INPUT_DIM = 16
    OBJ_DIM = 3
    OBJ_OUTPUT_DIM = 2
    FINAL_OUTPUT_DIM = 1
    NUM_UNITS = 32

    key = jax.random.PRNGKey(0)
    kx, kp = jax.random.split(key)
    x = jax.random.normal(kx, (B, INPUT_DIM), jnp.float32)
    params = init_params(kp, INPUT_DIM, OBJ_DIM, OBJ_OUTPUT_DIM,
                         FINAL_OUTPUT_DIM, NUM_UNITS)

    inter, logits = composite_mlp_forward(
        x, params, OBJ_DIM, OBJ_OUTPUT_DIM, FINAL_OUTPUT_DIM, NUM_UNITS)
    jax.block_until_ready((inter, logits))

    # Correctness check against the pure-JAX (f32) reference.
    inter_ref, logits_ref = reference_forward(x, params, OBJ_DIM)
    assert inter.shape == (B, OBJ_DIM * OBJ_OUTPUT_DIM)
    assert logits.shape == (B, FINAL_OUTPUT_DIM)
    assert jnp.allclose(inter, inter_ref, atol=1e-5, rtol=1e-4), \
        float(jnp.max(jnp.abs(inter - inter_ref)))
    assert jnp.allclose(logits, logits_ref, atol=1e-5, rtol=1e-4), \
        float(jnp.max(jnp.abs(logits - logits_ref)))

    print("KERNEL_OK")
</pallas_src>

<mosaic_0001>
module attributes {stable_mosaic.version = 11 : i64} {
  func.func @_composite_mlp_kernel(%arg0: i32, %arg1: memref<8x16xf32, #tpu.memory_space<vmem>>, %arg2: memref<96x16xf32, #tpu.memory_space<vmem>>, %arg3: memref<96x1xf32, #tpu.memory_space<vmem>>, %arg4: memref<96x96xf32, #tpu.memory_space<vmem>>, %arg5: memref<96x1xf32, #tpu.memory_space<vmem>>, %arg6: memref<6x96xf32, #tpu.memory_space<vmem>>, %arg7: memref<6x1xf32, #tpu.memory_space<vmem>>, %arg8: memref<32x96xf32, #tpu.memory_space<vmem>>, %arg9: memref<32x1xf32, #tpu.memory_space<vmem>>, %arg10: memref<32x32xf32, #tpu.memory_space<vmem>>, %arg11: memref<32x1xf32, #tpu.memory_space<vmem>>, %arg12: memref<1x32xf32, #tpu.memory_space<vmem>>, %arg13: memref<1x1xf32, #tpu.memory_space<vmem>>, %arg14: memref<7x8xf32, #tpu.memory_space<vmem>>) attributes {dimension_semantics = [#tpu.dimension_semantics<parallel>], iteration_bounds = array<i64: 1>, scalar_prefetch = 0 : i64, scratch_operands = 0 : i64, tpu.core_type = #tpu.core_type<tc>, window_params = [{transform_indices = @transform_0, window_bounds = array<i64: 8, 16>}, {pipeline_mode = #tpu.pipeline_mode<synchronous>, transform_indices = @transform_1, window_bounds = array<i64: 96, 16>}, {pipeline_mode = #tpu.pipeline_mode<synchronous>, transform_indices = @transform_2, window_bounds = array<i64: 96, 1>}, {pipeline_mode = #tpu.pipeline_mode<synchronous>, transform_indices = @transform_3, window_bounds = array<i64: 96, 96>}, {pipeline_mode = #tpu.pipeline_mode<synchronous>, transform_indices = @transform_4, window_bounds = array<i64: 96, 1>}, {pipeline_mode = #tpu.pipeline_mode<synchronous>, transform_indices = @transform_5, window_bounds = array<i64: 6, 96>}, {pipeline_mode = #tpu.pipeline_mode<synchronous>, transform_indices = @transform_6, window_bounds = array<i64: 6, 1>}, {pipeline_mode = #tpu.pipeline_mode<synchronous>, transform_indices = @transform_7, window_bounds = array<i64: 32, 96>}, {pipeline_mode = #tpu.pipeline_mode<synchronous>, transform_indices = @transform_8, window_bounds = array<i64: 32, 1>}, {pipeline_mode = #tpu.pipeline_mode<synchronous>, transform_indices = @transform_9, window_bounds = array<i64: 32, 32>}, {pipeline_mode = #tpu.pipeline_mode<synchronous>, transform_indices = @transform_10, window_bounds = array<i64: 32, 1>}, {pipeline_mode = #tpu.pipeline_mode<synchronous>, transform_indices = @transform_11, window_bounds = array<i64: 1, 32>}, {pipeline_mode = #tpu.pipeline_mode<synchronous>, transform_indices = @transform_12, window_bounds = array<i64: 1, 1>}, {transform_indices = @transform_13, window_bounds = array<i64: 7, 8>}]} {
    %c0 = arith.constant 0 : index
    %c0_0 = arith.constant 0 : index
    %0 = vector.load %arg1[%c0, %c0_0] : memref<8x16xf32, #tpu.memory_space<vmem>>, vector<8x16xf32>
    %c0_1 = arith.constant 0 : index
    %c0_2 = arith.constant 0 : index
    %1 = vector.load %arg2[%c0_1, %c0_2] : memref<96x16xf32, #tpu.memory_space<vmem>>, vector<96x16xf32>
    %cst = arith.constant dense<0.000000e+00> : vector<96x8xf32>
    %2 = tpu.matmul %1, %0, %cst {dimension_numbers = #tpu.dot_dimension_numbers<[1], [1], [0], [0], [0, 0, 1, 0], [], []>, precision = #tpu.contract_precision<fp32>} : vector<96x16xf32>, vector<8x16xf32>, vector<96x8xf32> -> vector<96x8xf32>
    %c0_3 = arith.constant 0 : index
    %c0_4 = arith.constant 0 : index
    %3 = vector.load %arg3[%c0_3, %c0_4] : memref<96x1xf32, #tpu.memory_space<vmem>>, vector<96x1xf32>
    %4 = vector.broadcast %3 : vector<96x1xf32> to vector<96x8xf32>
    %5 = arith.addf %2, %4 : vector<96x8xf32>
    %cst_5 = arith.constant 0.000000e+00 : f32
    %6 = vector.broadcast %cst_5 : f32 to vector<96x8xf32>
    %7 = arith.maximumf %5, %6 : vector<96x8xf32>
    %c0_6 = arith.constant 0 : index
    %c0_7 = arith.constant 0 : index
    %8 = vector.load %arg4[%c0_6, %c0_7] : memref<96x96xf32, #tpu.memory_space<vmem>>, vector<96x96xf32>
    %cst_8 = arith.constant dense<0.000000e+00> : vector<96x8xf32>
    %9 = tpu.matmul %8, %7, %cst_8 {dimension_numbers = #tpu.dot_dimension_numbers<[1], [0], [0], [1], [0, 0, 1, 1], [], []>, precision = #tpu.contract_precision<fp32>} : vector<96x96xf32>, vector<96x8xf32>, vector<96x8xf32> -> vector<96x8xf32>
    %c0_9 = arith.constant 0 : index
    %c0_10 = arith.constant 0 : index
    %10 = vector.load %arg5[%c0_9, %c0_10] : memref<96x1xf32, #tpu.memory_space<vmem>>, vector<96x1xf32>
    %11 = vector.broadcast %10 : vector<96x1xf32> to vector<96x8xf32>
    %12 = arith.addf %9, %11 : vector<96x8xf32>
    %cst_11 = arith.constant 0.000000e+00 : f32
    %13 = vector.broadcast %cst_11 : f32 to vector<96x8xf32>
    %14 = arith.maximumf %12, %13 : vector<96x8xf32>
    %c0_12 = arith.constant 0 : index
    %c0_13 = arith.constant 0 : index
    %15 = vector.load %arg6[%c0_12, %c0_13] : memref<6x96xf32, #tpu.memory_space<vmem>>, vector<6x96xf32>
    %cst_14 = arith.constant dense<0.000000e+00> : vector<6x8xf32>
    %16 = tpu.matmul %15, %14, %cst_14 {dimension_numbers = #tpu.dot_dimension_numbers<[1], [0], [0], [1], [0, 0, 1, 1], [], []>, precision = #tpu.contract_precision<fp32>} : vector<6x96xf32>, vector<96x8xf32>, vector<6x8xf32> -> vector<6x8xf32>
    %c0_15 = arith.constant 0 : index
    %c0_16 = arith.constant 0 : index
    %17 = vector.load %arg7[%c0_15, %c0_16] : memref<6x1xf32, #tpu.memory_space<vmem>>, vector<6x1xf32>
    %18 = vector.broadcast %17 : vector<6x1xf32> to vector<6x8xf32>
    %19 = arith.addf %16, %18 : vector<6x8xf32>
    %c0_17 = arith.constant 0 : index
    %c0_18 = arith.constant 0 : index
    %20 = vector.load %arg8[%c0_17, %c0_18] : memref<32x96xf32, #tpu.memory_space<vmem>>, vector<32x96xf32>
    %cst_19 = arith.constant dense<0.000000e+00> : vector<32x8xf32>
    %21 = tpu.matmul %20, %14, %cst_19 {dimension_numbers = #tpu.dot_dimension_numbers<[1], [0], [0], [1], [0, 0, 1, 1], [], []>, precision = #tpu.contract_precision<fp32>} : vector<32x96xf32>, vector<96x8xf32>, vector<32x8xf32> -> vector<32x8xf32>
    %c0_20 = arith.constant 0 : index
    %c0_21 = arith.constant 0 : index
    %22 = vector.load %arg9[%c0_20, %c0_21] : memref<32x1xf32, #tpu.memory_space<vmem>>, vector<32x1xf32>
    %23 = vector.broadcast %22 : vector<32x1xf32> to vector<32x8xf32>
    %24 = arith.addf %21, %23 : vector<32x8xf32>
    %cst_22 = arith.constant 0.000000e+00 : f32
    %25 = vector.broadcast %cst_22 : f32 to vector<32x8xf32>
    %26 = arith.maximumf %24, %25 : vector<32x8xf32>
    %c0_23 = arith.constant 0 : index
    %c0_24 = arith.constant 0 : index
    %27 = vector.load %arg10[%c0_23, %c0_24] : memref<32x32xf32, #tpu.memory_space<vmem>>, vector<32x32xf32>
    %cst_25 = arith.constant dense<0.000000e+00> : vector<32x8xf32>
    %28 = tpu.matmul %27, %26, %cst_25 {dimension_numbers = #tpu.dot_dimension_numbers<[1], [0], [0], [1], [0, 0, 1, 1], [], []>, precision = #tpu.contract_precision<fp32>} : vector<32x32xf32>, vector<32x8xf32>, vector<32x8xf32> -> vector<32x8xf32>
    %c0_26 = arith.constant 0 : index
    %c0_27 = arith.constant 0 : index
    %29 = vector.load %arg11[%c0_26, %c0_27] : memref<32x1xf32, #tpu.memory_space<vmem>>, vector<32x1xf32>
    %30 = vector.broadcast %29 : vector<32x1xf32> to vector<32x8xf32>
    %31 = arith.addf %28, %30 : vector<32x8xf32>
    %cst_28 = arith.constant 0.000000e+00 : f32
    %32 = vector.broadcast %cst_28 : f32 to vector<32x8xf32>
    %33 = arith.maximumf %31, %32 : vector<32x8xf32>
    %c0_29 = arith.constant 0 : index
    %c0_30 = arith.constant 0 : index
    %34 = vector.load %arg12[%c0_29, %c0_30] : memref<1x32xf32, #tpu.memory_space<vmem>>, vector<1x32xf32>
    %cst_31 = arith.constant dense<0.000000e+00> : vector<1x8xf32>
    %35 = tpu.matmul %34, %33, %cst_31 {dimension_numbers = #tpu.dot_dimension_numbers<[1], [0], [0], [1], [0, 0, 1, 1], [], []>, precision = #tpu.contract_precision<fp32>} : vector<1x32xf32>, vector<32x8xf32>, vector<1x8xf32> -> vector<1x8xf32>
    %c0_32 = arith.constant 0 : index
    %c0_33 = arith.constant 0 : index
    %36 = vector.load %arg13[%c0_32, %c0_33] : memref<1x1xf32, #tpu.memory_space<vmem>>, vector<1x1xf32>
    %37 = vector.broadcast %36 : vector<1x1xf32> to vector<1x8xf32>
    %38 = arith.addf %35, %37 : vector<1x8xf32>
    %cst_34 = arith.constant 0.000000e+00 : f32
    %39 = vector.broadcast %cst_34 : f32 to vector<1x8xf32>
    %40 = arith.maximumf %38, %39 : vector<1x8xf32>
    %c0_35 = arith.constant 0 : index
    %c0_36 = arith.constant 0 : index
    %41 = vector.load %arg14[%c0_35, %c0_36] : memref<7x8xf32, #tpu.memory_space<vmem>>, vector<6x8xf32>
    tpu.vector_store %arg14[%c0_35, %c0_36], %19 {strides = array<i32>} : memref<7x8xf32, #tpu.memory_space<vmem>>, vector<6x8xf32>,
    %c6 = arith.constant 6 : index
    %c0_37 = arith.constant 0 : index
    %42 = vector.load %arg14[%c6, %c0_37] : memref<7x8xf32, #tpu.memory_space<vmem>>, vector<1x8xf32>
    tpu.vector_store %arg14[%c6, %c0_37], %40 {strides = array<i32>} : memref<7x8xf32, #tpu.memory_space<vmem>>, vector<1x8xf32>,
    return
  }
  func.func @transform_0(%arg0: i32) -> (i32, i32) {
    %c0_i32 = arith.constant 0 : i32
    %c0_i32_0 = arith.constant 0 : i32
    return %arg0, %c0_i32 : i32, i32
  }
  func.func @transform_1(%arg0: i32) -> (i32, i32) {
    %c0_i32 = arith.constant 0 : i32
    %c0_i32_0 = arith.constant 0 : i32
    %c0_i32_1 = arith.constant 0 : i32
    return %c0_i32, %c0_i32_0 : i32, i32
  }
  func.func @transform_2(%arg0: i32) -> (i32, i32) {
    %c0_i32 = arith.constant 0 : i32
    %c0_i32_0 = arith.constant 0 : i32
    %c0_i32_1 = arith.constant 0 : i32
    return %c0_i32, %c0_i32_0 : i32, i32
  }
  func.func @transform_3(%arg0: i32) -> (i32, i32) {
    %c0_i32 = arith.constant 0 : i32
    %c0_i32_0 = arith.constant 0 : i32
    %c0_i32_1 = arith.constant 0 : i32
    return %c0_i32, %c0_i32_0 : i32, i32
  }
  func.func @transform_4(%arg0: i32) -> (i32, i32) {
    %c0_i32 = arith.constant 0 : i32
    %c0_i32_0 = arith.constant 0 : i32
    %c0_i32_1 = arith.constant 0 : i32
    return %c0_i32, %c0_i32_0 : i32, i32
  }
  func.func @transform_5(%arg0: i32) -> (i32, i32) {
    %c0_i32 = arith.constant 0 : i32
    %c0_i32_0 = arith.constant 0 : i32
    %c0_i32_1 = arith.constant 0 : i32
    return %c0_i32, %c0_i32_0 : i32, i32
  }
  func.func @transform_6(%arg0: i32) -> (i32, i32) {
    %c0_i32 = arith.constant 0 : i32
    %c0_i32_0 = arith.constant 0 : i32
    %c0_i32_1 = arith.constant 0 : i32
    return %c0_i32, %c0_i32_0 : i32, i32
  }
  func.func @transform_7(%arg0: i32) -> (i32, i32) {
    %c0_i32 = arith.constant 0 : i32
    %c0_i32_0 = arith.constant 0 : i32
    %c0_i32_1 = arith.constant 0 : i32
    return %c0_i32, %c0_i32_0 : i32, i32
  }
  func.func @transform_8(%arg0: i32) -> (i32, i32) {
    %c0_i32 = arith.constant 0 : i32
    %c0_i32_0 = arith.constant 0 : i32
    %c0_i32_1 = arith.constant 0 : i32
    return %c0_i32, %c0_i32_0 : i32, i32
  }
  func.func @transform_9(%arg0: i32) -> (i32, i32) {
    %c0_i32 = arith.constant 0 : i32
    %c0_i32_0 = arith.constant 0 : i32
    %c0_i32_1 = arith.constant 0 : i32
    return %c0_i32, %c0_i32_0 : i32, i32
  }
  func.func @transform_10(%arg0: i32) -> (i32, i32) {
    %c0_i32 = arith.constant 0 : i32
    %c0_i32_0 = arith.constant 0 : i32
    %c0_i32_1 = arith.constant 0 : i32
    return %c0_i32, %c0_i32_0 : i32, i32
  }
  func.func @transform_11(%arg0: i32) -> (i32, i32) {
    %c0_i32 = arith.constant 0 : i32
    %c0_i32_0 = arith.constant 0 : i32
    %c0_i32_1 = arith.constant 0 : i32
    return %c0_i32, %c0_i32_0 : i32, i32
  }
  func.func @transform_12(%arg0: i32) -> (i32, i32) {
    %c0_i32 = arith.constant 0 : i32
    %c0_i32_0 = arith.constant 0 : i32
    %c0_i32_1 = arith.constant 0 : i32
    return %c0_i32, %c0_i32_0 : i32, i32
  }
  func.func @transform_13(%arg0: i32) -> (i32, i32) {
    %c0_i32 = arith.constant 0 : i32
    %c0_i32_0 = arith.constant 0 : i32
    return %c0_i32, %arg0 : i32, i32
  }
}

</mosaic_0001>

<llo_original>
// kernel: tpu_custom_call.1
$region0: #{tpu_custom_call.1}
  #allocation0 [shape = 'u32[]', space=smem, size = 0x4, offset = 0x4, fixed_abs, tag = 'smem constant byte address 0x4 - core index']
  #allocation1 [shape = 'u32[144,128]{1,0:T(1,128)}', space=vmem, size = 0x12000, scoped, tag = 'internal scratch']
  #allocation2 [shape = 'f32[1,1]{1,0:T(1,128)S(1)}', space=vmem, size = 0x200, scoped, tag = 'scoped memory for tpu_custom_call.1']
  %s0 = inlined_call_operand.vmem [shape: f32[8,16], index: 0, kind: input, shape index: {}]
  %s1 = inlined_call_operand.vmem [shape: f32[96,16], index: 1, kind: input, shape index: {}]
  %s2 = inlined_call_operand.vmem [shape: f32[96,1], index: 2, kind: input, shape index: {}]
  %s3 = inlined_call_operand.vmem [shape: f32[96,96], index: 3, kind: input, shape index: {}]
  %s4 = inlined_call_operand.vmem [shape: f32[96,1], index: 4, kind: input, shape index: {}]
  %s5 = inlined_call_operand.vmem [shape: f32[6,96], index: 5, kind: input, shape index: {}]
  %s6 = inlined_call_operand.vmem [shape: f32[6,1], index: 6, kind: input, shape index: {}]
  %s7 = inlined_call_operand.vmem [shape: f32[32,96], index: 7, kind: input, shape index: {}]
  %s8 = inlined_call_operand.vmem [shape: f32[32,1], index: 8, kind: input, shape index: {}]
  %s9 = inlined_call_operand.vmem [shape: f32[32,32], index: 9, kind: input, shape index: {}]
  %s10 = inlined_call_operand.vmem [shape: f32[32,1], index: 10, kind: input, shape index: {}]
  %s11 = inlined_call_operand.vmem [shape: f32[1,32], index: 11, kind: input, shape index: {}]
  %s12 = inlined_call_operand.<no memory space> [shape: f32[1,1], index: 12, kind: input, shape index: {}]
  %s13 = inlined_call_operand.hbm [shape: f32[7,8], index: 13, kind: output, shape index: {}]
  %s14 = sld [smem:[#allocation0]]
  $region62: #{tpu_custom_call.1} parent=0
    _
  %s16 = ssub.s32 1, %s14
  %s17 = scalar_select 0, %s16, %s14
  %v18 = vstv %s12
  %19 = vst [vmem:[#allocation2] sm:$0x1] %v18
  $region1: #{tpu_custom_call.1} parent=0
    #allocation3 [shape = 'u8[4096]{0}', space=vmem, size = 0x1000, scoped, tag = 'output window, operand 0, single buffered']
    #allocation4 [shape = 's32[1]{0}', space=sflag, size = 0x4, scoped, tag = 'scoped memory for tpu_custom_call.1']
    %20 = vsyncpa [#allocation4], 0
    // Predicated region
    $region2: #{tpu_custom_call.1} parent=1 // pred_check
      _
    $region3: #{tpu_custom_call.1} parent=1 // pred_check_branch
      %22 = sbr.rel (0) target = $region5
    $region4: #{tpu_custom_call.1} parent=1 // pred_region
      _
    $region5: #{tpu_custom_call.1} parent=1 // pred_fallthru
      _
    // Predicated region
    $region6: #{tpu_custom_call.1} parent=1 // pred_check
      _
    $region7: #{tpu_custom_call.1} parent=1 // pred_check_branch
      %24 = sbr.rel (0) target = $region9
    $region8: #{tpu_custom_call.1} parent=1 // pred_region
      _
    $region9: #{tpu_custom_call.1} parent=1 // pred_fallthru
      _
    // Predicated region
    $region10: #{tpu_custom_call.1} parent=1 // pred_check
      _
    $region11: #{tpu_custom_call.1} parent=1 // pred_check_branch
      %26 = sbr.rel (0) target = $region13
    $region12: #{tpu_custom_call.1} parent=1 // pred_region
      _
    $region13: #{tpu_custom_call.1} parent=1 // pred_fallthru
      _
    // Predicated region
    $region14: #{tpu_custom_call.1} parent=1 // pred_check
      _
    $region15: #{tpu_custom_call.1} parent=1 // pred_check_branch
      %28 = sbr.rel (0) target = $region17
    $region16: #{tpu_custom_call.1} parent=1 // pred_region
      _
    $region17: #{tpu_custom_call.1} parent=1 // pred_fallthru
      _
    // Predicated region
    $region18: #{tpu_custom_call.1} parent=1 // pred_check
      _
    $region19: #{tpu_custom_call.1} parent=1 // pred_check_branch
      %30 = sbr.rel (0) target = $region21
    $region20: #{tpu_custom_call.1} parent=1 // pred_region
      _
    $region21: #{tpu_custom_call.1} parent=1 // pred_fallthru
      _
    // Predicated region
    $region22: #{tpu_custom_call.1} parent=1 // pred_check
      _
    $region23: #{tpu_custom_call.1} parent=1 // pred_check_branch
      %32 = sbr.rel (0) target = $region25
    $region24: #{tpu_custom_call.1} parent=1 // pred_region
      _
    $region25: #{tpu_custom_call.1} parent=1 // pred_fallthru
      _
    // Predicated region
    $region26: #{tpu_custom_call.1} parent=1 // pred_check
      _
    $region27: #{tpu_custom_call.1} parent=1 // pred_check_branch
      %34 = sbr.rel (0) target = $region29
    $region28: #{tpu_custom_call.1} parent=1 // pred_region
      _
    $region29: #{tpu_custom_call.1} parent=1 // pred_fallthru
      _
    // Predicated region
    $region30: #{tpu_custom_call.1} parent=1 // pred_check
      _
    $region31: #{tpu_custom_call.1} parent=1 // pred_check_branch
      %36 = sbr.rel (0) target = $region33
    $region32: #{tpu_custom_call.1} parent=1 // pred_region
      _
    $region33: #{tpu_custom_call.1} parent=1 // pred_fallthru
      _
    // Predicated region
    $region34: #{tpu_custom_call.1} parent=1 // pred_check
      _
    $region35: #{tpu_custom_call.1} parent=1 // pred_check_branch
      %38 = sbr.rel (0) target = $region37
    $region36: #{tpu_custom_call.1} parent=1 // pred_region
      _
    $region37: #{tpu_custom_call.1} parent=1 // pred_fallthru
      _
    // Predicated region
    $region38: #{tpu_custom_call.1} parent=1 // pred_check
      _
    $region39: #{tpu_custom_call.1} parent=1 // pred_check_branch
      %40 = sbr.rel (0) target = $region41
    $region40: #{tpu_custom_call.1} parent=1 // pred_region
      _
    $region41: #{tpu_custom_call.1} parent=1 // pred_fallthru
      _
    // Predicated region
    $region42: #{tpu_custom_call.1} parent=1 // pred_check
      _
    $region43: #{tpu_custom_call.1} parent=1 // pred_check_branch
      %42 = sbr.rel (0) target = $region45
    $region44: #{tpu_custom_call.1} parent=1 // pred_region
      _
    $region45: #{tpu_custom_call.1} parent=1 // pred_fallthru
      _
    // Predicated region
    $region46: #{tpu_custom_call.1} parent=1 // pred_check
      _
    $region47: #{tpu_custom_call.1} parent=1 // pred_check_branch
      %44 = sbr.rel (0) target = $region49
    $region48: #{tpu_custom_call.1} parent=1 // pred_region
      _
    $region49: #{tpu_custom_call.1} parent=1 // pred_fallthru
      _
    // Predicated region
    $region50: #{tpu_custom_call.1} parent=1 // pred_check
      _
    $region51: #{tpu_custom_call.1} parent=1 // pred_check_branch
      %46 = sbr.rel (0) target = $region53
    $region52: #{tpu_custom_call.1} parent=1 // pred_region
      _
    $region53: #{tpu_custom_call.1} parent=1 // pred_fallthru
      _
    %v47 = vld [vmem:[%s0] sm:$0xff]
    %v48 = vld [vmem:[%s1] sm:$0xff]
    %v49 = vld [vmem:[%s1 + $0x8] sm:$0xff]
    %v50 = vld [vmem:[%s1 + $0x10] sm:$0xff]
    %v51 = vld [vmem:[%s1 + $0x18] sm:$0xff]
    %v52 = vld [vmem:[%s1 + $0x20] sm:$0xff]
    %v53 = vld [vmem:[%s1 + $0x28] sm:$0xff]
    %v54 = vld [vmem:[%s1 + $0x30] sm:$0xff]
    %v55 = vld [vmem:[%s1 + $0x38] sm:$0xff]
    %v56 = vld [vmem:[%s1 + $0x40] sm:$0xff]
    %v57 = vld [vmem:[%s1 + $0x48] sm:$0xff]
    %v58 = vld [vmem:[%s1 + $0x50] sm:$0xff]
    %v59 = vld [vmem:[%s1 + $0x58] sm:$0xff]
    %v60 = vld [vmem:[%s2] sm:$0xff]
    %v61 = vld [vmem:[%s2 + $0x8] sm:$0xff]
    %v62 = vld [vmem:[%s2 + $0x10] sm:$0xff]
    %v63 = vld [vmem:[%s2 + $0x18] sm:$0xff]
    %v64 = vld [vmem:[%s2 + $0x20] sm:$0xff]
    %v65 = vld [vmem:[%s2 + $0x28] sm:$0xff]
    %v66 = vld [vmem:[%s2 + $0x30] sm:$0xff]
    %v67 = vld [vmem:[%s2 + $0x38] sm:$0xff]
    %v68 = vld [vmem:[%s2 + $0x40] sm:$0xff]
    %v69 = vld [vmem:[%s2 + $0x48] sm:$0xff]
    %v70 = vld [vmem:[%s2 + $0x50] sm:$0xff]
    %v71 = vld [vmem:[%s2 + $0x58] sm:$0xff]
    %73 = vset.pattern.permute.xlu0 0
    %74 = vperm.xlu0 %73, %v60
    %v75 = vpop.permute.xlu0 %74
    %78 = vset.pattern.permute.xlu0 0
    %79 = vperm.xlu0 %78, %v61
    %v80 = vpop.permute.xlu0 %79
    %83 = vset.pattern.permute.xlu0 0
    %84 = vperm.xlu0 %83, %v62
    %v85 = vpop.permute.xlu0 %84
    %88 = vset.pattern.permute.xlu0 0
    %89 = vperm.xlu0 %88, %v63
    %v90 = vpop.permute.xlu0 %89
    %93 = vset.pattern.permute.xlu0 0
    %94 = vperm.xlu0 %93, %v64
    %v95 = vpop.permute.xlu0 %94
    %98 = vset.pattern.permute.xlu0 0
    %99 = vperm.xlu0 %98, %v65
    %v100 = vpop.permute.xlu0 %99
    %103 = vset.pattern.permute.xlu0 0
    %104 = vperm.xlu0 %103, %v66
    %v105 = vpop.permute.xlu0 %104
    %108 = vset.pattern.permute.xlu0 0
    %109 = vperm.xlu0 %108, %v67
    %v110 = vpop.permute.xlu0 %109
    %113 = vset.pattern.permute.xlu0 0
    %114 = vperm.xlu0 %113, %v68
    %v115 = vpop.permute.xlu0 %114
    %118 = vset.pattern.permute.xlu0 0
    %119 = vperm.xlu0 %118, %v69
    %v120 = vpop.permute.xlu0 %119
    %123 = vset.pattern.permute.xlu0 0
    %124 = vperm.xlu0 %123, %v70
    %v125 = vpop.permute.xlu0 %124
    %128 = vset.pattern.permute.xlu0 0
    %129 = vperm.xlu0 %128, %v71
    %v130 = vpop.permute.xlu0 %129
    %vm132 = vcmask 130048
    %v134 = vsel %vm132, %v48, 0
    %v137 = vsel %vm132, %v49, 0
    %v140 = vsel %vm132, %v50, 0
    %v143 = vsel %vm132, %v51, 0
    %v146 = vsel %vm132, %v52, 0
    %v149 = vsel %vm132, %v53, 0
    %v152 = vsel %vm132, %v54, 0
    %v155 = vsel %vm132, %v55, 0
    %v158 = vsel %vm132, %v56, 0
    %v161 = vsel %vm132, %v57, 0
    %v164 = vsel %vm132, %v58, 0
    %v167 = vsel %vm132, %v59, 0
    %v170 = vsel %vm132, %v47, 0
    %172 = vmatprep.subr.mxu0 0.0
    %v173 = vand.u32 %v170, 4294901760
    %174 = vmatpush1.xpose.msra.mxu0 %v173
    %175 = vmatprep.subr.mxu0 0.0
    %176 = vmatpush1.xpose.msra.mxu0 0.0
    %177 = vmatprep.subr.mxu0 0.0
    %178 = vmatpush1.xpose.msra.mxu0 0.0
    %179 = vmatprep.subr.mxu0 0.0
    %180 = vmatpush1.xpose.msra.mxu0 0.0
    %181 = vmatprep.subr.mxu0 0.0
    %182 = vmatpush1.xpose.msra.mxu0 0.0
    %183 = vmatprep.subr.mxu0 0.0
    %184 = vmatpush1.xpose.msra.mxu0 0.0
    %185 = vmatprep.subr.mxu0 0.0
    %186 = vmatpush1.xpose.msra.mxu0 0.0
    %187 = vmatprep.subr.mxu0 0.0
    %188 = vmatpush1.xpose.msra.mxu0 0.0
    %189 = vmatprep.subr.mxu0 0.0
    %190 = vmatpush1.xpose.msra.mxu0 0.0
    %191 = vmatprep.subr.mxu0 0.0
    %192 = vmatpush1.xpose.msra.mxu0 0.0
    %193 = vmatprep.subr.mxu0 0.0
    %194 = vmatpush1.xpose.msra.mxu0 0.0
    %195 = vmatprep.subr.mxu0 0.0
    %196 = vmatpush1.xpose.msra.mxu0 0.0
    %197 = vmatprep.subr.mxu0 0.0
    %198 = vmatpush1.xpose.msra.mxu0 0.0
    %199 = vmatprep.subr.mxu0 0.0
    %200 = vmatpush1.xpose.msra.mxu0 0.0
    %201 = vmatprep.subr.mxu0 0.0
    %202 = vmatpush1.xpose.msra.mxu0 0.0
    %203 = vmatprep.subr.mxu0 0.0
    %204 = vmatpush1.xpose.msra.mxu0 0.0
    %205 = vmatprep.subr.mxu0 0.0
    %206 = vmatpush1.xpose.msra.mxu0 0.0
    %207 = vmatprep.subr.mxu0 0.0
    %208 = vmatpush1.xpose.msra.mxu0 0.0
    %209 = vmatprep.subr.mxu0 0.0
    %210 = vmatpush1.xpose.msra.mxu0 0.0
    %211 = vmatprep.subr.mxu0 0.0
    %212 = vmatpush1.xpose.msra.mxu0 0.0
    %213 = vmatprep.subr.mxu0 0.0
    %214 = vmatpush1.xpose.msra.mxu0 0.0
    %215 = vmatprep.subr.mxu0 0.0
    %216 = vmatpush1.xpose.msra.mxu0 0.0
    %217 = vmatprep.subr.mxu0 0.0
    %218 = vmatpush1.xpose.msra.mxu0 0.0
    %219 = vmatprep.subr.mxu0 0.0
    %220 = vmatpush1.xpose.msra.mxu0 0.0
    %221 = vmatprep.subr.mxu0 0.0
    %222 = vmatpush1.xpose.msra.mxu0 0.0
    %223 = vmatprep.subr.mxu0 0.0
    %224 = vmatpush1.xpose.msra.mxu0 0.0
    %225 = vmatprep.subr.mxu0 0.0
    %226 = vmatpush1.xpose.msra.mxu0 0.0
    %227 = vmatprep.subr.mxu0 0.0
    %228 = vmatpush1.xpose.msra.mxu0 0.0
    %229 = vmatprep.subr.mxu0 0.0
    %230 = vmatpush1.xpose.msra.mxu0 0.0
    %231 = vmatprep.subr.mxu0 0.0
    %232 = vmatpush1.xpose.msra.mxu0 0.0
    %233 = vmatprep.subr.mxu0 0.0
    %234 = vmatpush1.xpose.msra.mxu0 0.0
    %235 = vmatprep.subr.mxu0 0.0
    %236 = vmatpush1.xpose.msra.mxu0 0.0
    %237 = vmatprep.mubr.f32.mxu0 0.0
    %v238 = vand.u32 %v134, 4294901760
    %v239 = vsub.f32 %v134, %v238
    %v240 = vand.u32 %v239, 4294901760
    %v241 = vsub.f32 %v239, %v240
    %v242 = vand.u32 %v241, 4294901760
    %243 = vmatmul.mubr.f32.gmra.mrb[0].mxu0 %v242
    %v244 = vpop.f32.mrb[0].mxu0
    %v245 = vadd.f32 %v75, %v244
    %v246 = vpop.f32.mrb[0].mxu0
    %247 = vmatprep.mubr.f32.mxu0 0.0
    %v248 = vand.u32 %v137, 4294901760
    %v249 = vsub.f32 %v137, %v248
    %v250 = vand.u32 %v249, 4294901760
    %v251 = vsub.f32 %v249, %v250
    %v252 = vand.u32 %v251, 4294901760
    %253 = vmatmul.mubr.f32.gmra.mrb[0].mxu0 %v252
    %v254 = vpop.f32.mrb[0].mxu0
    %v255 = vadd.f32 %v80, %v254
    %v256 = vpop.f32.mrb[0].mxu0
    %257 = vmatprep.mubr.f32.mxu0 0.0
    %v258 = vand.u32 %v140, 4294901760
    %v259 = vsub.f32 %v140, %v258
    %v260 = vand.u32 %v259, 4294901760
    %v261 = vsub.f32 %v259, %v260
    %v262 = vand.u32 %v261, 4294901760
    %263 = vmatmul.mubr.f32.gmra.mrb[0].mxu0 %v262
    %v264 = vpop.f32.mrb[0].mxu0
    %v265 = vadd.f32 %v85, %v264
    %v266 = vpop.f32.mrb[0].mxu0
    %267 = vmatprep.mubr.f32.mxu0 0.0
    %v268 = vand.u32 %v143, 4294901760
    %v269 = vsub.f32 %v143, %v268
    %v270 = vand.u32 %v269, 4294901760
    %v271 = vsub.f32 %v269, %v270
    %v272 = vand.u32 %v271, 4294901760
    %273 = vmatmul.mubr.f32.gmra.mrb[0].mxu0 %v272
    %v274 = vpop.f32.mrb[0].mxu0
    %v275 = vadd.f32 %v90, %v274
    %v276 = vpop.f32.mrb[0].mxu0
    %277 = vmatprep.mubr.f32.mxu0 0.0
    %v278 = vand.u32 %v146, 4294901760
    %v279 = vsub.f32 %v146, %v278
    %v280 = vand.u32 %v279, 4294901760
    %v281 = vsub.f32 %v279, %v280
    %v282 = vand.u32 %v281, 4294901760
    %283 = vmatmul.mubr.f32.gmra.mrb[0].mxu0 %v282
    %v284 = vpop.f32.mrb[0].mxu0
    %v285 = vadd.f32 %v95, %v284
    %v286 = vpop.f32.mrb[0].mxu0
    %287 = vmatprep.mubr.f32.mxu0 0.0
    %v288 = vand.u32 %v149, 4294901760
    %v289 = vsub.f32 %v149, %v288
    %v290 = vand.u32 %v289, 4294901760
    %v291 = vsub.f32 %v289, %v290
    %v292 = vand.u32 %v291, 4294901760
    %293 = vmatmul.mubr.f32.gmra.mrb[0].mxu0 %v292
    %v294 = vpop.f32.mrb[0].mxu0
    %v295 = vadd.f32 %v100, %v294
    %v296 = vpop.f32.mrb[0].mxu0
    %297 = vmatprep.mubr.f32.mxu0 0.0
    %v298 = vand.u32 %v152, 4294901760
    %v299 = vsub.f32 %v152, %v298
    %v300 = vand.u32 %v299, 4294901760
    %v301 = vsub.f32 %v299, %v300
    %v302 = vand.u32 %v301, 4294901760
    %303 = vmatmul.mubr.f32.gmra.mrb[0].mxu0 %v302
    %v304 = vpop.f32.mrb[0].mxu0
    %v305 = vadd.f32 %v105, %v304
    %v306 = vpop.f32.mrb[0].mxu0
    %307 = vmatprep.mubr.f32.mxu0 0.0
    %v308 = vand.u32 %v155, 4294901760
    %v309 = vsub.f32 %v155, %v308
    %v310 = vand.u32 %v309, 4294901760
    %v311 = vsub.f32 %v309, %v310
    %v312 = vand.u32 %v311, 4294901760
    %313 = vmatmul.mubr.f32.gmra.mrb[0].mxu0 %v312
    %v314 = vpop.f32.mrb[0].mxu0
    %v315 = vadd.f32 %v110, %v314
    %v316 = vpop.f32.mrb[0].mxu0
    %317 = vmatprep.mubr.f32.mxu0 0.0
    %v318 = vand.u32 %v158, 4294901760
    %v319 = vsub.f32 %v158, %v318
    %v320 = vand.u32 %v319, 4294901760
    %v321 = vsub.f32 %v319, %v320
    %v322 = vand.u32 %v321, 4294901760
    %323 = vmatmul.mubr.f32.gmra.mrb[0].mxu0 %v322
    %v324 = vpop.f32.mrb[0].mxu0
    %v325 = vadd.f32 %v115, %v324
    %v326 = vpop.f32.mrb[0].mxu0
    %327 = vmatprep.mubr.f32.mxu0 0.0
    %v328 = vand.u32 %v161, 4294901760
    %v329 = vsub.f32 %v161, %v328
    %v330 = vand.u32 %v329, 4294901760
    %v331 = vsub.f32 %v329, %v330
    %v332 = vand.u32 %v331, 4294901760
    %333 = vmatmul.mubr.f32.gmra.mrb[0].mxu0 %v332
    %v334 = vpop.f32.mrb[0].mxu0
    %v335 = vadd.f32 %v120, %v334
    %v336 = vpop.f32.mrb[0].mxu0
    %337 = vmatprep.mubr.f32.mxu0 0.0
    %v338 = vand.u32 %v164, 4294901760
    %v339 = vsub.f32 %v164, %v338
    %v340 = vand.u32 %v339, 4294901760
    %v341 = vsub.f32 %v339, %v340
    %v342 = vand.u32 %v341, 4294901760
    %343 = vmatmul.mubr.f32.gmra.mrb[0].mxu0 %v342
    %v344 = vpop.f32.mrb[0].mxu0
    %v345 = vadd.f32 %v125, %v344
    %v346 = vpop.f32.mrb[0].mxu0
    %347 = vmatprep.mubr.f32.mxu0 0.0
    %v348 = vand.u32 %v167, 4294901760
    %v349 = vsub.f32 %v167, %v348
    %v350 = vand.u32 %v349, 4294901760
    %v351 = vsub.f32 %v349, %v350
    %v352 = vand.u32 %v351, 4294901760
    %353 = vmatmul.mubr.f32.gmra.mrb[0].mxu0 %v352
    %v354 = vpop.f32.mrb[0].mxu0
    %v355 = vadd.f32 %v130, %v354
    %v356 = vpop.f32.mrb[0].mxu0
    %357 = vdwg.mxu0
    %358 = vmatprep.subr.mxu0 0.0
    %v359 = vand.u32 %v170, 4294901760
    %v360 = vsub.f32 %v170, %v359
    %v361 = vand.u32 %v360, 4294901760
    %v362 = vsub.f32 %v360, %v361
    %v363 = vand.u32 %v362, 4294901760
    %364 = vmatpush1.xpose.msra.mxu0 %v363
    %365 = vmatprep.subr.mxu0 0.0
    %366 = vmatpush1.xpose.msra.mxu0 0.0
    %367 = vmatprep.subr.mxu0 0.0
    %368 = vmatpush1.xpose.msra.mxu0 0.0
    %369 = vmatprep.subr.mxu0 0.0
    %370 = vmatpush1.xpose.msra.mxu0 0.0
    %371 = vmatprep.subr.mxu0 0.0
    %372 = vmatpush1.xpose.msra.mxu0 0.0
    %373 = vmatprep.subr.mxu0 0.0
    %374 = vmatpush1.xpose.msra.mxu0 0.0
    %375 = vmatprep.subr.mxu0 0.0
    %376 = vmatpush1.xpose.msra.mxu0 0.0
    %377 = vmatprep.subr.mxu0 0.0
    %378 = vmatpush1.xpose.msra.mxu0 0.0
    %379 = vmatprep.subr.mxu0 0.0
    %380 = vmatpush1.xpose.msra.mxu0 0.0
    %381 = vmatprep.subr.mxu0 0.0
    %382 = vmatpush1.xpose.msra.mxu0 0.0
    %383 = vmatprep.subr.mxu0 0.0
    %384 = vmatpush1.xpose.msra.mxu0 0.0
    %385 = vmatprep.subr.mxu0 0.0
    %386 = vmatpush1.xpose.msra.mxu0 0.0
    %387 = vmatprep.subr.mxu0 0.0
    %388 = vmatpush1.xpose.msra.mxu0 0.0
    %389 = vmatprep.subr.mxu0 0.0
    %390 = vmatpush1.xpose.msra.mxu0 0.0
    %391 = vmatprep.subr.mxu0 0.0
    %392 = vmatpush1.xpose.msra.mxu0 0.0
    %393 = vmatprep.subr.mxu0 0.0
    %394 = vmatpush1.xpose.msra.mxu0 0.0
    %395 = vmatprep.subr.mxu0 0.0
    %396 = vmatpush1.xpose.msra.mxu0 0.0
    %397 = vmatprep.subr.mxu0 0.0
    %398 = vmatpush1.xpose.msra.mxu0 0.0
    %399 = vmatprep.subr.mxu0 0.0
    %400 = vmatpush1.xpose.msra.mxu0 0.0
    %401 = vmatprep.subr.mxu0 0.0
    %402 = vmatpush1.xpose.msra.mxu0 0.0
    %403 = vmatprep.subr.mxu0 0.0
    %404 = vmatpush1.xpose.msra.mxu0 0.0
    %405 = vmatprep.subr.mxu0 0.0
    %406 = vmatpush1.xpose.msra.mxu0 0.0
    %407 = vmatprep.subr.mxu0 0.0
    %408 = vmatpush1.xpose.msra.mxu0 0.0
    %409 = vmatprep.subr.mxu0 0.0
    %410 = vmatpush1.xpose.msra.mxu0 0.0
    %411 = vmatprep.subr.mxu0 0.0
    %412 = vmatpush1.xpose.msra.mxu0 0.0
    %413 = vmatprep.subr.mxu0 0.0
    %414 = vmatpush1.xpose.msra.mxu0 0.0
    %415 = vmatprep.subr.mxu0 0.0
    %416 = vmatpush1.xpose.msra.mxu0 0.0
    %417 = vmatprep.subr.mxu0 0.0
    %418 = vmatpush1.xpose.msra.mxu0 0.0
    %419 = vmatprep.subr.mxu0 0.0
    %420 = vmatpush1.xpose.msra.mxu0 0.0
    %421 = vmatprep.subr.mxu0 0.0
    %422 = vmatpush1.xpose.msra.mxu0 0.0
    %423 = vmatprep.subr.mxu0 0.0
    %424 = vmatpush1.xpose.msra.mxu0 0.0
    %425 = vmatprep.subr.mxu0 0.0
    %426 = vmatpush1.xpose.msra.mxu0 0.0
    %427 = vmatprep.mubr.f32.mxu0 0.0
    %v428 = vand.u32 %v134, 4294901760
    %429 = vmatmul.mubr.f32.gmra.mrb[0].mxu0 %v428
    %v430 = vpop.f32.mrb[0].mxu0
    %v431 = vadd.f32 %v245, %v430
    %v432 = vpop.f32.mrb[0].mxu0
    %433 = vmatprep.mubr.f32.mxu0 0.0
    %v434 = vand.u32 %v137, 4294901760
    %435 = vmatmul.mubr.f32.gmra.mrb[0].mxu0 %v434
    %v436 = vpop.f32.mrb[0].mxu0
    %v437 = vadd.f32 %v255, %v436
    %v438 = vpop.f32.mrb[0].mxu0
    %439 = vmatprep.mubr.f32.mxu0 0.0
    %v440 = vand.u32 %v140, 4294901760
    %441 = vmatmul.mubr.f32.gmra.mrb[0].mxu0 %v440
    %v442 = vpop.f32.mrb[0].mxu0
    %v443 = vadd.f32 %v265, %v442
    %v444 = vpop.f32.mrb[0].mxu0
    %445 = vmatprep.mubr.f32.mxu0 0.0
    %v446 = vand.u32 %v143, 4294901760
    %447 = vmatmul.mubr.f32.gmra.mrb[0].mxu0 %v446
    %v448 = vpop.f32.mrb[0].mxu0
    %v449 = vadd.f32 %v275, %v448
    %v450 = vpop.f32.mrb[0].mxu0
    %451 = vmatprep.mubr.f32.mxu0 0.0
    %v452 = vand.u32 %v146, 4294901760
    %453 = vmatmul.mubr.f32.gmra.mrb[0].mxu0 %v452
    %v454 = vpop.f32.mrb[0].mxu0
    %v455 = vadd.f32 %v285, %v454
    %v456 = vpop.f32.mrb[0].mxu0
    %457 = vmatprep.mubr.f32.mxu0 0.0
    %v458 = vand.u32 %v149, 4294901760
    %459 = vmatmul.mubr.f32.gmra.mrb[0].mxu0 %v458
    %v460 = vpop.f32.mrb[0].mxu0
    %v461 = vadd.f32 %v295, %v460
    %v462 = vpop.f32.mrb[0].mxu0
    %463 = vmatprep.mubr.f32.mxu0 0.0
    %v464 = vand.u32 %v152, 4294901760
    %465 = vmatmul.mubr.f32.gmra.mrb[0].mxu0 %v464
    %v466 = vpop.f32.mrb[0].mxu0
    %v467 = vadd.f32 %v305, %v466
    %v468 = vpop.f32.mrb[0].mxu0
    %469 = vmatprep.mubr.f32.mxu0 0.0
    %v470 = vand.u32 %v155, 4294901760
    %471 = vmatmul.mubr.f32.gmra.mrb[0].mxu0 %v470
    %v472 = vpop.f32.mrb[0].mxu0
    %v473 = vadd.f32 %v315, %v472
    %v474 = vpop.f32.mrb[0].mxu0
    %475 = vmatprep.mubr.f32.mxu0 0.0
    %v476 = vand.u32 %v158, 4294901760
    %477 = vmatmul.mubr.f32.gmra.mrb[0].mxu0 %v476
    %v478 = vpop.f32.mrb[0].mxu0
    %v479 = vadd.f32 %v325, %v478
    %v480 = vpop.f32.mrb[0].mxu0
    %481 = vmatprep.mubr.f32.mxu0 0.0
    %v482 = vand.u32 %v161, 4294901760
    %483 = vmatmul.mubr.f32.gmra.mrb[0].mxu0 %v482
    %v484 = vpop.f32.mrb[0].mxu0
    %v485 = vadd.f32 %v335, %v484
    %v486 = vpop.f32.mrb[0].mxu0
    %487 = vmatprep.mubr.f32.mxu0 0.0
    %v488 = vand.u32 %v164, 4294901760
    %489 = vmatmul.mubr.f32.gmra.mrb[0].mxu0 %v488
    %v490 = vpop.f32.mrb[0].mxu0
    %v491 = vadd.f32 %v345, %v490
    %v492 = vpop.f32.mrb[0].mxu0
    %493 = vmatprep.mubr.f32.mxu0 0.0
    %v494 = vand.u32 %v167, 4294901760
    %495 = vmatmul.mubr.f32.gmra.mrb[0].mxu0 %v494
    %v496 = vpop.f32.mrb[0].mxu0
    %v497 = vadd.f32 %v355, %v496
    %v498 = vpop.f32.mrb[0].mxu0
    %499 = vdwg.mxu0
    %500 = vmatprep.subr.mxu0 0.0
    %v501 = vand.u32 %v170, 4294901760
    %v502 = vsub.f32 %v170, %v501
    %503 = vmatpush1.xpose.msra.mxu0 %v502
    %504 = vmatprep.subr.mxu0 0.0
    %505 = vmatpush1.xpose.msra.mxu0 0.0
    %506 = vmatprep.subr.mxu0 0.0
    %507 = vmatpush1.xpose.msra.mxu0 0.0
    %508 = vmatprep.subr.mxu0 0.0
    %509 = vmatpush1.xpose.msra.mxu0 0.0
    %510 = vmatprep.subr.mxu0 0.0
    %511 = vmatpush1.xpose.msra.mxu0 0.0
    %512 = vmatprep.subr.mxu0 0.0
    %513 = vmatpush1.xpose.msra.mxu0 0.0
    %514 = vmatprep.subr.mxu0 0.0
    %515 = vmatpush1.xpose.msra.mxu0 0.0
    %516 = vmatprep.subr.mxu0 0.0
    %517 = vmatpush1.xpose.msra.mxu0 0.0
    %518 = vmatprep.subr.mxu0 0.0
    %519 = vmatpush1.xpose.msra.mxu0 0.0
    %520 = vmatprep.subr.mxu0 0.0
    %521 = vmatpush1.xpose.msra.mxu0 0.0
    %522 = vmatprep.subr.mxu0 0.0
    %523 = vmatpush1.xpose.msra.mxu0 0.0
    %524 = vmatprep.subr.mxu0 0.0
    %525 = vmatpush1.xpose.msra.mxu0 0.0
    %526 = vmatprep.subr.mxu0 0.0
    %527 = vmatpush1.xpose.msra.mxu0 0.0
    %528 = vmatprep.subr.mxu0 0.0
    %529 = vmatpush1.xpose.msra.mxu0 0.0
    %530 = vmatprep.subr.mxu0 0.0
    %531 = vmatpush1.xpose.msra.mxu0 0.0
    %532 = vmatprep.subr.mxu0 0.0
    %533 = vmatpush1.xpose.msra.mxu0 0.0
    %534 = vmatprep.subr.mxu0 0.0
    %535 = vmatpush1.xpose.msra.mxu0 0.0
    %536 = vmatprep.subr.mxu0 0.0
    %537 = vmatpush1.xpose.msra.mxu0 0.0
    %538 = vmatprep.subr.mxu0 0.0
    %539 = vmatpush1.xpose.msra.mxu0 0.0
    %540 = vmatprep.subr.mxu0 0.0
    %541 = vmatpush1.xpose.msra.mxu0 0.0
    %542 = vmatprep.subr.mxu0 0.0
    %543 = vmatpush1.xpose.msra.mxu0 0.0
    %544 = vmatprep.subr.mxu0 0.0
    %545 = vmatpush1.xpose.msra.mxu0 0.0
    %546 = vmatprep.subr.mxu0 0.0
    %547 = vmatpush1.xpose.msra.mxu0 0.0
    %548 = vmatprep.subr.mxu0 0.0
    %549 = vmatpush1.xpose.msra.mxu0 0.0
    %550 = vmatprep.subr.mxu0 0.0
    %551 = vmatpush1.xpose.msra.mxu0 0.0
    %552 = vmatprep.subr.mxu0 0.0
    %553 = vmatpush1.xpose.msra.mxu0 0.0
    %554 = vmatprep.subr.mxu0 0.0
    %555 = vmatpush1.xpose.msra.mxu0 0.0
    %556 = vmatprep.subr.mxu0 0.0
    %557 = vmatpush1.xpose.msra.mxu0 0.0
    %558 = vmatprep.subr.mxu0 0.0
    %559 = vmatpush1.xpose.msra.mxu0 0.0
    %560 = vmatprep.subr.mxu0 0.0
    %561 = vmatpush1.xpose.msra.mxu0 0.0
    %562 = vmatprep.subr.mxu0 0.0
    %563 = vmatpush1.xpose.msra.mxu0 0.0
    %564 = vmatprep.subr.mxu0 0.0
    %565 = vmatpush1.xpose.msra.mxu0 0.0
    %566 = vmatprep.mubr.f32.mxu0 0.0
    %v567 = vand.u32 %v134, 4294901760
    %v568 = vsub.f32 %v134, %v567
    %569 = vmatmul.mubr.f32.gmra.mrb[0].mxu0 %v568
    %v570 = vpop.f32.mrb[0].mxu0
    %v571 = vadd.f32 %v431, %v570
    %v572 = vpop.f32.mrb[0].mxu0
    %573 = vmatprep.mubr.f32.mxu0 0.0
    %v574 = vand.u32 %v137, 4294901760
    %v575 = vsub.f32 %v137, %v574
    %576 = vmatmul.mubr.f32.gmra.mrb[0].mxu0 %v575
    %v577 = vpop.f32.mrb[0].mxu0
    %v578 = vadd.f32 %v437, %v577
    %v579 = vpop.f32.mrb[0].mxu0
    %580 = vmatprep.mubr.f32.mxu0 0.0
    %v581 = vand.u32 %v140, 4294901760
    %v582 = vsub.f32 %v140, %v581
    %583 = vmatmul.mubr.f32.gmra.mrb[0].mxu0 %v582
    %v584 = vpop.f32.mrb[0].mxu0
    %v585 = vadd.f32 %v443, %v584
    %v586 = vpop.f32.mrb[0].mxu0
    %587 = vmatprep.mubr.f32.mxu0 0.0
    %v588 = vand.u32 %v143, 4294901760
    %v589 = vsub.f32 %v143, %v588
    %590 = vmatmul.mubr.f32.gmra.mrb[0].mxu0 %v589
    %v591 = vpop.f32.mrb[0].mxu0
    %v592 = vadd.f32 %v449, %v591
    %v593 = vpop.f32.mrb[0].mxu0
    %594 = vmatprep.mubr.f32.mxu0 0.0
    %v595 = vand.u32 %v146, 4294901760
    %v596 = vsub.f32 %v146, %v595
    %597 = vmatmul.mubr.f32.gmra.mrb[0].mxu0 %v596
    %v598 = vpop.f32.mrb[0].mxu0
    %v599 = vadd.f32 %v455, %v598
    %v600 = vpop.f32.mrb[0].mxu0
    %601 = vmatprep.mubr.f32.mxu0 0.0
    %v602 = vand.u32 %v149, 4294901760
    %v603 = vsub.f32 %v149, %v602
    %604 = vmatmul.mubr.f32.gmra.mrb[0].mxu0 %v603
    %v605 = vpop.f32.mrb[0].mxu0
    %v606 = vadd.f32 %v461, %v605
    %v607 = vpop.f32.mrb[0].mxu0
    %608 = vmatprep.mubr.f32.mxu0 0.0
    %v609 = vand.u32 %v152, 4294901760
    %v610 = vsub.f32 %v152, %v609
    %611 = vmatmul.mubr.f32.gmra.mrb[0].mxu0 %v610
    %v612 = vpop.f32.mrb[0].mxu0
    %v613 = vadd.f32 %v467, %v612
    %v614 = vpop.f32.mrb[0].mxu0
    %615 = vmatprep.mubr.f32.mxu0 0.0
    %v616 = vand.u32 %v155, 4294901760
    %v617 = vsub.f32 %v155, %v616
    %618 = vmatmul.mubr.f32.gmra.mrb[0].mxu0 %v617
    %v619 = vpop.f32.mrb[0].mxu0
    %v620 = vadd.f32 %v473, %v619
    %v621 = vpop.f32.mrb[0].mxu0
    %622 = vmatprep.mubr.f32.mxu0 0.0
    %v623 = vand.u32 %v158, 4294901760
    %v624 = vsub.f32 %v158, %v623
    %625 = vmatmul.mubr.f32.gmra.mrb[0].mxu0 %v624
    %v626 = vpop.f32.mrb[0].mxu0
    %v627 = vadd.f32 %v479, %v626
    %v628 = vpop.f32.mrb[0].mxu0
    %629 = vmatprep.mubr.f32.mxu0 0.0
    %v630 = vand.u32 %v161, 4294901760
    %v631 = vsub.f32 %v161, %v630
    %632 = vmatmul.mubr.f32.gmra.mrb[0].mxu0 %v631
    %v633 = vpop.f32.mrb[0].mxu0
    %v634 = vadd.f32 %v485, %v633
    %v635 = vpop.f32.mrb[0].mxu0
    %636 = vmatprep.mubr.f32.mxu0 0.0
    %v637 = vand.u32 %v164, 4294901760
    %v638 = vsub.f32 %v164, %v637
    %639 = vmatmul.mubr.f32.gmra.mrb[0].mxu0 %v638
    %v640 = vpop.f32.mrb[0].mxu0
    %v641 = vadd.f32 %v491, %v640
    %v642 = vpop.f32.mrb[0].mxu0
    %643 = vmatprep.mubr.f32.mxu0 0.0
    %v644 = vand.u32 %v167, 4294901760
    %v645 = vsub.f32 %v167, %v644
    %646 = vmatmul.mubr.f32.gmra.mrb[0].mxu0 %v645
    %v647 = vpop.f32.mrb[0].mxu0
    %v648 = vadd.f32 %v497, %v647
    %v649 = vpop.f32.mrb[0].mxu0
    %650 = vdwg.mxu0
    %651 = vmatprep.subr.mxu0 0.0
    %v652 = vand.u32 %v170, 4294901760
    %653 = vmatpush1.xpose.msra.mxu0 %v652
    %654 = vmatprep.subr.mxu0 0.0
    %655 = vmatpush1.xpose.msra.mxu0 0.0
    %656 = vmatprep.subr.mxu0 0.0
    %657 = vmatpush1.xpose.msra.mxu0 0.0
    %658 = vmatprep.subr.mxu0 0.0
    %659 = vmatpush1.xpose.msra.mxu0 0.0
    %660 = vmatprep.subr.mxu0 0.0
    %661 = vmatpush1.xpose.msra.mxu0 0.0
    %662 = vmatprep.subr.mxu0 0.0
    %663 = vmatpush1.xpose.msra.mxu0 0.0
    %664 = vmatprep.subr.mxu0 0.0
    %665 = vmatpush1.xpose.msra.mxu0 0.0
    %666 = vmatprep.subr.mxu0 0.0
    %667 = vmatpush1.xpose.msra.mxu0 0.0
    %668 = vmatprep.subr.mxu0 0.0
    %669 = vmatpush1.xpose.msra.mxu0 0.0
    %670 = vmatprep.subr.mxu0 0.0
    %671 = vmatpush1.xpose.msra.mxu0 0.0
    %672 = vmatprep.subr.mxu0 0.0
    %673 = vmatpush1.xpose.msra.mxu0 0.0
    %674 = vmatprep.subr.mxu0 0.0
    %675 = vmatpush1.xpose.msra.mxu0 0.0
    %676 = vmatprep.subr.mxu0 0.0
    %677 = vmatpush1.xpose.msra.mxu0 0.0
    %678 = vmatprep.subr.mxu0 0.0
    %679 = vmatpush1.xpose.msra.mxu0 0.0
    %680 = vmatprep.subr.mxu0 0.0
    %681 = vmatpush1.xpose.msra.mxu0 0.0
    %682 = vmatprep.subr.mxu0 0.0
    %683 = vmatpush1.xpose.msra.mxu0 0.0
    %684 = vmatprep.subr.mxu0 0.0
    %685 = vmatpush1.xpose.msra.mxu0 0.0
    %686 = vmatprep.subr.mxu0 0.0
    %687 = vmatpush1.xpose.msra.mxu0 0.0
    %688 = vmatprep.subr.mxu0 0.0
    %689 = vmatpush1.xpose.msra.mxu0 0.0
    %690 = vmatprep.subr.mxu0 0.0
    %691 = vmatpush1.xpose.msra.mxu0 0.0
    %692 = vmatprep.subr.mxu0 0.0
    %693 = vmatpush1.xpose.msra.mxu0 0.0
    %694 = vmatprep.subr.mxu0 0.0
    %695 = vmatpush1.xpose.msra.mxu0 0.0
    %696 = vmatprep.subr.mxu0 0.0
    %697 = vmatpush1.xpose.msra.mxu0 0.0
    %698 = vmatprep.subr.mxu0 0.0
    %699 = vmatpush1.xpose.msra.mxu0 0.0
    %700 = vmatprep.subr.mxu0 0.0
    %701 = vmatpush1.xpose.msra.mxu0 0.0
    %702 = vmatprep.subr.mxu0 0.0
    %703 = vmatpush1.xpose.msra.mxu0 0.0
    %704 = vmatprep.subr.mxu0 0.0
    %705 = vmatpush1.xpose.msra.mxu0 0.0
    %706 = vmatprep.subr.mxu0 0.0
    %707 = vmatpush1.xpose.msra.mxu0 0.0
    %708 = vmatprep.subr.mxu0 0.0
    %709 = vmatpush1.xpose.msra.mxu0 0.0
    %710 = vmatprep.subr.mxu0 0.0
    %711 = vmatpush1.xpose.msra.mxu0 0.0
    %712 = vmatprep.subr.mxu0 0.0
    %713 = vmatpush1.xpose.msra.mxu0 0.0
    %714 = vmatprep.subr.mxu0 0.0
    %715 = vmatpush1.xpose.msra.mxu0 0.0
    %716 = vmatprep.mubr.f32.mxu0 0.0
    %v717 = vand.u32 %v134, 4294901760
    %v718 = vsub.f32 %v134, %v717
    %v719 = vand.u32 %v718, 4294901760
    %720 = vmatmul.mubr.f32.gmra.mrb[0].mxu0 %v719
    %v721 = vpop.f32.mrb[0].mxu0
    %v722 = vadd.f32 %v571, %v721
    %v723 = vpop.f32.mrb[0].mxu0
    %724 = vmatprep.mubr.f32.mxu0 0.0
    %v725 = vand.u32 %v137, 4294901760
    %v726 = vsub.f32 %v137, %v725
    %v727 = vand.u32 %v726, 4294901760
    %728 = vmatmul.mubr.f32.gmra.mrb[0].mxu0 %v727
    %v729 = vpop.f32.mrb[0].mxu0
    %v730 = vadd.f32 %v578, %v729
    %v731 = vpop.f32.mrb[0].mxu0
    %732 = vmatprep.mubr.f32.mxu0 0.0
    %v733 = vand.u32 %v140, 4294901760
    %v734 = vsub.f32 %v140, %v733
    %v735 = vand.u32 %v734, 4294901760
    %736 = vmatmul.mubr.f32.gmra.mrb[0].mxu0 %v735
    %v737 = vpop.f32.mrb[0].mxu0
    %v738 = vadd.f32 %v585, %v737
    %v739 = vpop.f32.mrb[0].mxu0
    %740 = vmatprep.mubr.f32.mxu0 0.0
    %v741 = vand.u32 %v143, 4294901760
    %v742 = vsub.f32 %v143, %v741
    %v743 = vand.u32 %v742, 4294901760
    %744 = vmatmul.mubr.f32.gmra.mrb[0].mxu0 %v743
    %v745 = vpop.f32.mrb[0].mxu0
    %v746 = vadd.f32 %v592, %v745
    %v747 = vpop.f32.mrb[0].mxu0
    %748 = vmatprep.mubr.f32.mxu0 0.0
    %v749 = vand.u32 %v146, 4294901760
    %v750 = vsub.f32 %v146, %v749
    %v751 = vand.u32 %v750, 4294901760
    %752 = vmatmul.mubr.f32.gmra.mrb[0].mxu0 %v751
    %v753 = vpop.f32.mrb[0].mxu0
    %v754 = vadd.f32 %v599, %v753
    %v755 = vpop.f32.mrb[0].mxu0
    %756 = vmatprep.mubr.f32.mxu0 0.0
    %v757 = vand.u32 %v149, 4294901760
    %v758 = vsub.f32 %v149, %v757
    %v759 = vand.u32 %v758, 4294901760
    %760 = vmatmul.mubr.f32.gmra.mrb[0].mxu0 %v759
    %v761 = vpop.f32.mrb[0].mxu0
    %v762 = vadd.f32 %v606, %v761
    %v763 = vpop.f32.mrb[0].mxu0
    %764 = vmatprep.mubr.f32.mxu0 0.0
    %v765 = vand.u32 %v152, 4294901760
    %v766 = vsub.f32 %v152, %v765
    %v767 = vand.u32 %v766, 4294901760
    %768 = vmatmul.mubr.f32.gmra.mrb[0].mxu0 %v767
    %v769 = vpop.f32.mrb[0].mxu0
    %v770 = vadd.f32 %v613, %v769
    %v771 = vpop.f32.mrb[0].mxu0
    %772 = vmatprep.mubr.f32.mxu0 0.0
    %v773 = vand.u32 %v155, 4294901760
    %v774 = vsub.f32 %v155, %v773
    %v775 = vand.u32 %v774, 4294901760
    %776 = vmatmul.mubr.f32.gmra.mrb[0].mxu0 %v775
    %v777 = vpop.f32.mrb[0].mxu0
    %v778 = vadd.f32 %v620, %v777
    %v779 = vpop.f32.mrb[0].mxu0
    %780 = vmatprep.mubr.f32.mxu0 0.0
    %v781 = vand.u32 %v158, 4294901760
    %v782 = vsub.f32 %v158, %v781
    %v783 = vand.u32 %v782, 4294901760
    %784 = vmatmul.mubr.f32.gmra.mrb[0].mxu0 %v783
    %v785 = vpop.f32.mrb[0].mxu0
    %v786 = vadd.f32 %v627, %v785
    %v787 = vpop.f32.mrb[0].mxu0
    %788 = vmatprep.mubr.f32.mxu0 0.0
    %v789 = vand.u32 %v161, 4294901760
    %v790 = vsub.f32 %v161, %v789
    %v791 = vand.u32 %v790, 4294901760
    %792 = vmatmul.mubr.f32.gmra.mrb[0].mxu0 %v791
    %v793 = vpop.f32.mrb[0].mxu0
    %v794 = vadd.f32 %v634, %v793
    %v795 = vpop.f32.mrb[0].mxu0
    %796 = vmatprep.mubr.f32.mxu0 0.0
    %v797 = vand.u32 %v164, 4294901760
    %v798 = vsub.f32 %v164, %v797
    %v799 = vand.u32 %v798, 4294901760
    %800 = vmatmul.mubr.f32.gmra.mrb[0].mxu0 %v799
    %v801 = vpop.f32.mrb[0].mxu0
    %v802 = vadd.f32 %v641, %v801
    %v803 = vpop.f32.mrb[0].mxu0
    %804 = vmatprep.mubr.f32.mxu0 0.0
    %v805 = vand.u32 %v167, 4294901760
    %v806 = vsub.f32 %v167, %v805
    %v807 = vand.u32 %v806, 4294901760
    %808 = vmatmul.mubr.f32.gmra.mrb[0].mxu0 %v807
    %v809 = vpop.f32.mrb[0].mxu0
    %v810 = vadd.f32 %v648, %v809
    %v811 = vpop.f32.mrb[0].mxu0
    %812 = vdwg.mxu0
    %813 = vmatprep.subr.mxu0 0.0
    %v814 = vand.u32 %v170, 4294901760
    %v815 = vsub.f32 %v170, %v814
    %v816 = vand.u32 %v815, 4294901760
    %817 = vmatpush1.xpose.msra.mxu0 %v816
    %818 = vmatprep.subr.mxu0 0.0
    %819 = vmatpush1.xpose.msra.mxu0 0.0
    %820 = vmatprep.subr.mxu0 0.0
    %821 = vmatpush1.xpose.msra.mxu0 0.0
    %822 = vmatprep.subr.mxu0 0.0
    %823 = vmatpush1.xpose.msra.mxu0 0.0
    %824 = vmatprep.subr.mxu0 0.0
    %825 = vmatpush1.xpose.msra.mxu0 0.0
    %826 = vmatprep.subr.mxu0 0.0
    %827 = vmatpush1.xpose.msra.mxu0 0.0
    %828 = vmatprep.subr.mxu0 0.0
    %829 = vmatpush1.xpose.msra.mxu0 0.0
    %830 = vmatprep.subr.mxu0 0.0
    %831 = vmatpush1.xpose.msra.mxu0 0.0
    %832 = vmatprep.subr.mxu0 0.0
    %833 = vmatpush1.xpose.msra.mxu0 0.0
    %834 = vmatprep.subr.mxu0 0.0
    %835 = vmatpush1.xpose.msra.mxu0 0.0
    %836 = vmatprep.subr.mxu0 0.0
    %837 = vmatpush1.xpose.msra.mxu0 0.0
    %838 = vmatprep.subr.mxu0 0.0
    %839 = vmatpush1.xpose.msra.mxu0 0.0
    %840 = vmatprep.subr.mxu0 0.0
    %841 = vmatpush1.xpose.msra.mxu0 0.0
    %842 = vmatprep.subr.mxu0 0.0
    %843 = vmatpush1.xpose.msra.mxu0 0.0
    %844 = vmatprep.subr.mxu0 0.0
    %845 = vmatpush1.xpose.msra.mxu0 0.0
    %846 = vmatprep.subr.mxu0 0.0
    %847 = vmatpush1.xpose.msra.mxu0 0.0
    %848 = vmatprep.subr.mxu0 0.0
    %849 = vmatpush1.xpose.msra.mxu0 0.0
    %850 = vmatprep.subr.mxu0 0.0
    %851 = vmatpush1.xpose.msra.mxu0 0.0
    %852 = vmatprep.subr.mxu0 0.0
    %853 = vmatpush1.xpose.msra.mxu0 0.0
    %854 = vmatprep.subr.mxu0 0.0
    %855 = vmatpush1.xpose.msra.mxu0 0.0
    %856 = vmatprep.subr.mxu0 0.0
    %857 = vmatpush1.xpose.msra.mxu0 0.0
    %858 = vmatprep.subr.mxu0 0.0
    %859 = vmatpush1.xpose.msra.mxu0 0.0
    %860 = vmatprep.subr.mxu0 0.0
    %861 = vmatpush1.xpose.msra.mxu0 0.0
    %862 = vmatprep.subr.mxu0 0.0
    %863 = vmatpush1.xpose.msra.mxu0 0.0
    %864 = vmatprep.subr.mxu0 0.0
    %865 = vmatpush1.xpose.msra.mxu0 0.0
    %866 = vmatprep.subr.mxu0 0.0
    %867 = vmatpush1.xpose.msra.mxu0 0.0
    %868 = vmatprep.subr.mxu0 0.0
    %869 = vmatpush1.xpose.msra.mxu0 0.0
    %870 = vmatprep.subr.mxu0 0.0
    %871 = vmatpush1.xpose.msra.mxu0 0.0
    %872 = vmatprep.subr.mxu0 0.0
    %873 = vmatpush1.xpose.msra.mxu0 0.0
    %874 = vmatprep.subr.mxu0 0.0
    %875 = vmatpush1.xpose.msra.mxu0 0.0
    %876 = vmatprep.subr.mxu0 0.0
    %877 = vmatpush1.xpose.msra.mxu0 0.0
    %878 = vmatprep.subr.mxu0 0.0
    %879 = vmatpush1.xpose.msra.mxu0 0.0
    %880 = vmatprep.mubr.f32.mxu0 0.0
    %v881 = vand.u32 %v134, 4294901760
    %882 = vmatmul.mubr.f32.gmra.mrb[0].mxu0 %v881
    %v883 = vpop.f32.mrb[0].mxu0
    %v884 = vadd.f32 %v722, %v883
    %v885 = vpop.f32.mrb[0].mxu0
    %886 = vmatprep.mubr.f32.mxu0 0.0
    %v887 = vand.u32 %v137, 4294901760
    %888 = vmatmul.mubr.f32.gmra.mrb[0].mxu0 %v887
    %v889 = vpop.f32.mrb[0].mxu0
    %v890 = vadd.f32 %v730, %v889
    %v891 = vpop.f32.mrb[0].mxu0
    %892 = vmatprep.mubr.f32.mxu0 0.0
    %v893 = vand.u32 %v140, 4294901760
    %894 = vmatmul.mubr.f32.gmra.mrb[0].mxu0 %v893
    %v895 = vpop.f32.mrb[0].mxu0
    %v896 = vadd.f32 %v738, %v895
    %v897 = vpop.f32.mrb[0].mxu0
    %898 = vmatprep.mubr.f32.mxu0 0.0
    %v899 = vand.u32 %v143, 4294901760
    %900 = vmatmul.mubr.f32.gmra.mrb[0].mxu0 %v899
    %v901 = vpop.f32.mrb[0].mxu0
    %v902 = vadd.f32 %v746, %v901
    %v903 = vpop.f32.mrb[0].mxu0
    %904 = vmatprep.mubr.f32.mxu0 0.0
    %v905 = vand.u32 %v146, 4294901760
    %906 = vmatmul.mubr.f32.gmra.mrb[0].mxu0 %v905
    %v907 = vpop.f32.mrb[0].mxu0
    %v908 = vadd.f32 %v754, %v907
    %v909 = vpop.f32.mrb[0].mxu0
    %910 = vmatprep.mubr.f32.mxu0 0.0
    %v911 = vand.u32 %v149, 4294901760
    %912 = vmatmul.mubr.f32.gmra.mrb[0].mxu0 %v911
    %v913 = vpop.f32.mrb[0].mxu0
    %v914 = vadd.f32 %v762, %v913
    %v915 = vpop.f32.mrb[0].mxu0
    %916 = vmatprep.mubr.f32.mxu0 0.0
    %v917 = vand.u32 %v152, 4294901760
    %918 = vmatmul.mubr.f32.gmra.mrb[0].mxu0 %v917
    %v919 = vpop.f32.mrb[0].mxu0
    %v920 = vadd.f32 %v770, %v919
    %v921 = vpop.f32.mrb[0].mxu0
    %922 = vmatprep.mubr.f32.mxu0 0.0
    %v923 = vand.u32 %v155, 4294901760
    %924 = vmatmul.mubr.f32.gmra.mrb[0].mxu0 %v923
    %v925 = vpop.f32.mrb[0].mxu0
    %v926 = vadd.f32 %v778, %v925
    %v927 = vpop.f32.mrb[0].mxu0
    %928 = vmatprep.mubr.f32.mxu0 0.0
    %v929 = vand.u32 %v158, 4294901760
    %930 = vmatmul.mubr.f32.gmra.mrb[0].mxu0 %v929
    %v931 = vpop.f32.mrb[0].mxu0
    %v932 = vadd.f32 %v786, %v931
    %v933 = vpop.f32.mrb[0].mxu0
    %934 = vmatprep.mubr.f32.mxu0 0.0
    %v935 = vand.u32 %v161, 4294901760
    %936 = vmatmul.mubr.f32.gmra.mrb[0].mxu0 %v935
    %v937 = vpop.f32.mrb[0].mxu0
    %v938 = vadd.f32 %v794, %v937
    %v939 = vpop.f32.mrb[0].mxu0
    %940 = vmatprep.mubr.f32.mxu0 0.0
    %v941 = vand.u32 %v164, 4294901760
    %942 = vmatmul.mubr.f32.gmra.mrb[0].mxu0 %v941
    %v943 = vpop.f32.mrb[0].mxu0
    %v944 = vadd.f32 %v802, %v943
    %v945 = vpop.f32.mrb[0].mxu0
    %946 = vmatprep.mubr.f32.mxu0 0.0
    %v947 = vand.u32 %v167, 4294901760
    %948 = vmatmul.mubr.f32.gmra.mrb[0].mxu0 %v947
    %v949 = vpop.f32.mrb[0].mxu0
    %v950 = vadd.f32 %v810, %v949
    %v951 = vpop.f32.mrb[0].mxu0
    %952 = vdwg.mxu0
    %953 = vmatprep.subr.mxu0 0.0
    %v954 = vand.u32 %v170, 4294901760
    %955 = vmatpush1.xpose.msra.mxu0 %v954
    %956 = vmatprep.subr.mxu0 0.0
    %957 = vmatpush1.xpose.msra.mxu0 0.0
    %958 = vmatprep.subr.mxu0 0.0
    %959 = vmatpush1.xpose.msra.mxu0 0.0
    %960 = vmatprep.subr.mxu0 0.0
    %961 = vmatpush1.xpose.msra.mxu0 0.0
    %962 = vmatprep.subr.mxu0 0.0
    %963 = vmatpush1.xpose.msra.mxu0 0.0
    %964 = vmatprep.subr.mxu0 0.0
    %965 = vmatpush1.xpose.msra.mxu0 0.0
    %966 = vmatprep.subr.mxu0 0.0
    %967 = vmatpush1.xpose.msra.mxu0 0.0
    %968 = vmatprep.subr.mxu0 0.0
    %969 = vmatpush1.xpose.msra.mxu0 0.0
    %970 = vmatprep.subr.mxu0 0.0
    %971 = vmatpush1.xpose.msra.mxu0 0.0
    %972 = vmatprep.subr.mxu0 0.0
    %973 = vmatpush1.xpose.msra.mxu0 0.0
    %974 = vmatprep.subr.mxu0 0.0
    %975 = vmatpush1.xpose.msra.mxu0 0.0
    %976 = vmatprep.subr.mxu0 0.0
    %977 = vmatpush1.xpose.msra.mxu0 0.0
    %978 = vmatprep.subr.mxu0 0.0
    %979 = vmatpush1.xpose.msra.mxu0 0.0
    %980 = vmatprep.subr.mxu0 0.0
    %981 = vmatpush1.xpose.msra.mxu0 0.0
    %982 = vmatprep.subr.mxu0 0.0
    %983 = vmatpush1.xpose.msra.mxu0 0.0
    %984 = vmatprep.subr.mxu0 0.0
    %985 = vmatpush1.xpose.msra.mxu0 0.0
    %986 = vmatprep.subr.mxu0 0.0
    %987 = vmatpush1.xpose.msra.mxu0 0.0
    %988 = vmatprep.subr.mxu0 0.0
    %989 = vmatpush1.xpose.msra.mxu0 0.0
    %990 = vmatprep.subr.mxu0 0.0
    %991 = vmatpush1.xpose.msra.mxu0 0.0
    %992 = vmatprep.subr.mxu0 0.0
    %993 = vmatpush1.xpose.msra.mxu0 0.0
    %994 = vmatprep.subr.mxu0 0.0
    %995 = vmatpush1.xpose.msra.mxu0 0.0
    %996 = vmatprep.subr.mxu0 0.0
    %997 = vmatpush1.xpose.msra.mxu0 0.0
    %998 = vmatprep.subr.mxu0 0.0
    %999 = vmatpush1.xpose.msra.mxu0 0.0
    %1000 = vmatprep.subr.mxu0 0.0
    %1001 = vmatpush1.xpose.msra.mxu0 0.0
    %1002 = vmatprep.subr.mxu0 0.0
    %1003 = vmatpush1.xpose.msra.mxu0 0.0
    %1004 = vmatprep.subr.mxu0 0.0
    %1005 = vmatpush1.xpose.msra.mxu0 0.0
    %1006 = vmatprep.subr.mxu0 0.0
    %1007 = vmatpush1.xpose.msra.mxu0 0.0
    %1008 = vmatprep.subr.mxu0 0.0
    %1009 = vmatpush1.xpose.msra.mxu0 0.0
    %1010 = vmatprep.subr.mxu0 0.0
    %1011 = vmatpush1.xpose.msra.mxu0 0.0
    %1012 = vmatprep.subr.mxu0 0.0
    %1013 = vmatpush1.xpose.msra.mxu0 0.0
    %1014 = vmatprep.subr.mxu0 0.0
    %1015 = vmatpush1.xpose.msra.mxu0 0.0
    %1016 = vmatprep.subr.mxu0 0.0
    %1017 = vmatpush1.xpose.msra.mxu0 0.0
    %1018 = vmatprep.mubr.f32.mxu0 0.0
    %v1019 = vand.u32 %v134, 4294901760
    %1020 = vmatmul.mubr.f32.gmra.mrb[0].mxu0 %v1019
    %v1021 = vpop.f32.mrb[0].mxu0
    %v1022 = vadd.f32 %v884, %v1021
    %v1023 = vpop.f32.mrb[0].mxu0
    %1024 = vmatprep.mubr.f32.mxu0 0.0
    %v1025 = vand.u32 %v137, 4294901760
    %1026 = vmatmul.mubr.f32.gmra.mrb[0].mxu0 %v1025
    %v1027 = vpop.f32.mrb[0].mxu0
    %v1028 = vadd.f32 %v890, %v1027
    %v1029 = vpop.f32.mrb[0].mxu0
    %1030 = vmatprep.mubr.f32.mxu0 0.0
    %v1031 = vand.u32 %v140, 4294901760
    %1032 = vmatmul.mubr.f32.gmra.mrb[0].mxu0 %v1031
    %v1033 = vpop.f32.mrb[0].mxu0
    %v1034 = vadd.f32 %v896, %v1033
    %v1035 = vpop.f32.mrb[0].mxu0
    %1036 = vmatprep.mubr.f32.mxu0 0.0
    %v1037 = vand.u32 %v143, 4294901760
    %1038 = vmatmul.mubr.f32.gmra.mrb[0].mxu0 %v1037
    %v1039 = vpop.f32.mrb[0].mxu0
    %v1040 = vadd.f32 %v902, %v1039
    %v1041 = vpop.f32.mrb[0].mxu0
    %1042 = vmatprep.mubr.f32.mxu0 0.0
    %v1043 = vand.u32 %v146, 4294901760
    %1044 = vmatmul.mubr.f32.gmra.mrb[0].mxu0 %v1043
    %v1045 = vpop.f32.mrb[0].mxu0
    %v1046 = vadd.f32 %v908, %v1045
    %v1047 = vpop.f32.mrb[0].mxu0
    %1048 = vmatprep.mubr.f32.mxu0 0.0
    %v1049 = vand.u32 %v149, 4294901760
    %1050 = vmatmul.mubr.f32.gmra.mrb[0].mxu0 %v1049
    %v1051 = vpop.f32.mrb[0].mxu0
    %v1052 = vadd.f32 %v914, %v1051
    %v1053 = vpop.f32.mrb[0].mxu0
    %1054 = vmatprep.mubr.f32.mxu0 0.0
    %v1055 = vand.u32 %v152, 4294901760
    %1056 = vmatmul.mubr.f32.gmra.mrb[0].mxu0 %v1055
    %v1057 = vpop.f32.mrb[0].mxu0
    %v1058 = vadd.f32 %v920, %v1057
    %v1059 = vpop.f32.mrb[0].mxu0
    %1060 = vmatprep.mubr.f32.mxu0 0.0
    %v1061 = vand.u32 %v155, 4294901760
    %1062 = vmatmul.mubr.f32.gmra.mrb[0].mxu0 %v1061
    %v1063 = vpop.f32.mrb[0].mxu0
    %v1064 = vadd.f32 %v926, %v1063
    %v1065 = vpop.f32.mrb[0].mxu0
    %1066 = vmatprep.mubr.f32.mxu0 0.0
    %v1067 = vand.u32 %v158, 4294901760
    %1068 = vmatmul.mubr.f32.gmra.mrb[0].mxu0 %v1067
    %v1069 = vpop.f32.mrb[0].mxu0
    %v1070 = vadd.f32 %v932, %v1069
    %v1071 = vpop.f32.mrb[0].mxu0
    %1072 = vmatprep.mubr.f32.mxu0 0.0
    %v1073 = vand.u32 %v161, 4294901760
    %1074 = vmatmul.mubr.f32.gmra.mrb[0].mxu0 %v1073
    %v1075 = vpop.f32.mrb[0].mxu0
    %v1076 = vadd.f32 %v938, %v1075
    %v1077 = vpop.f32.mrb[0].mxu0
    %1078 = vmatprep.mubr.f32.mxu0 0.0
    %v1079 = vand.u32 %v164, 4294901760
    %1080 = vmatmul.mubr.f32.gmra.mrb[0].mxu0 %v1079
    %v1081 = vpop.f32.mrb[0].mxu0
    %v1082 = vadd.f32 %v944, %v1081
    %v1083 = vpop.f32.mrb[0].mxu0
    %1084 = vmatprep.mubr.f32.mxu0 0.0
    %v1085 = vand.u32 %v167, 4294901760
    %1086 = vmatmul.mubr.f32.gmra.mrb[0].mxu0 %v1085
    %v1087 = vpop.f32.mrb[0].mxu0
    %v1088 = vadd.f32 %v950, %v1087
    %v1089 = vpop.f32.mrb[0].mxu0
    %1090 = vdwg.mxu0
    %v1091 = vmax.f32 %v1022, 0.0
    %v1092 = vmax.f32 %v1028, 0.0
    %v1093 = vmax.f32 %v1034, 0.0
    %v1094 = vmax.f32 %v1040, 0.0
    %v1095 = vmax.f32 %v1046, 0.0
    %v1096 = vmax.f32 %v1052, 0.0
    %v1097 = vmax.f32 %v1058, 0.0
    %v1098 = vmax.f32 %v1064, 0.0
    %v1099 = vmax.f32 %v1070, 0.0
    %v1100 = vmax.f32 %v1076, 0.0
    %v1101 = vmax.f32 %v1082, 0.0
    %v1102 = vmax.f32 %v1088, 0.0
    %v1103 = vld [vmem:[%s3] sm:$0xff]
    %v1104 = vld [vmem:[%s3 + $0x8] sm:$0xff]
    %v1105 = vld [vmem:[%s3 + $0x10] sm:$0xff]
    %v1106 = vld [vmem:[%s3 + $0x18] sm:$0xff]
    %v1107 = vld [vmem:[%s3 + $0x20] sm:$0xff]
    %v1108 = vld [vmem:[%s3 + $0x28] sm:$0xff]
    %v1109 = vld [vmem:[%s3 + $0x30] sm:$0xff]
    %v1110 = vld [vmem:[%s3 + $0x38] sm:$0xff]
    %v1111 = vld [vmem:[%s3 + $0x40] sm:$0xff]
    %v1112 = vld [vmem:[%s3 + $0x48] sm:$0xff]
    %v1113 = vld [vmem:[%s3 + $0x50] sm:$0xff]
    %v1114 = vld [vmem:[%s3 + $0x58] sm:$0xff]
    %v1115 = vld [vmem:[%s4] sm:$0xff]
    %v1116 = vld [vmem:[%s4 + $0x8] sm:$0xff]
    %v1117 = vld [vmem:[%s4 + $0x10] sm:$0xff]
    %v1118 = vld [vmem:[%s4 + $0x18] sm:$0xff]
    %v1119 = vld [vmem:[%s4 + $0x20] sm:$0xff]
    %v1120 = vld [vmem:[%s4 + $0x28] sm:$0xff]
    %v1121 = vld [vmem:[%s4 + $0x30] sm:$0xff]
    %v1122 = vld [vmem:[%s4 + $0x38] sm:$0xff]
    %v1123 = vld [vmem:[%s4 + $0x40] sm:$0xff]
    %v1124 = vld [vmem:[%s4 + $0x48] sm:$0xff]
    %v1125 = vld [vmem:[%s4 + $0x50] sm:$0xff]
    %v1126 = vld [vmem:[%s4 + $0x58] sm:$0xff]
    %1128 = vset.pattern.permute.xlu0 0
    %1129 = vperm.xlu0 %1128, %v1115
    %v1130 = vpop.permute.xlu0 %1129
    %1133 = vset.pattern.permute.xlu0 0
    %1134 = vperm.xlu0 %1133, %v1116
    %v1135 = vpop.permute.xlu0 %1134
    %1138 = vset.pattern.permute.xlu0 0
    %1139 = vperm.xlu0 %1138, %v1117
    %v1140 = vpop.permute.xlu0 %1139
    %1143 = vset.pattern.permute.xlu0 0
    %1144 = vperm.xlu0 %1143, %v1118
    %v1145 = vpop.permute.xlu0 %1144
    %1148 = vset.pattern.permute.xlu0 0
    %1149 = vperm.xlu0 %1148, %v1119
    %v1150 = vpop.permute.xlu0 %1149
    %1153 = vset.pattern.permute.xlu0 0
    %1154 = vperm.xlu0 %1153, %v1120
    %v1155 = vpop.permute.xlu0 %1154
    %1158 = vset.pattern.permute.xlu0 0
    %1159 = vperm.xlu0 %1158, %v1121
    %v1160 = vpop.permute.xlu0 %1159
    %1163 = vset.pattern.permute.xlu0 0
    %1164 = vperm.xlu0 %1163, %v1122
    %v1165 = vpop.permute.xlu0 %1164
    %1168 = vset.pattern.permute.xlu0 0
    %1169 = vperm.xlu0 %1168, %v1123
    %v1170 = vpop.permute.xlu0 %1169
    %1173 = vset.pattern.permute.xlu0 0
    %1174 = vperm.xlu0 %1173, %v1124
    %v1175 = vpop.permute.xlu0 %1174
    %1178 = vset.pattern.permute.xlu0 0
    %1179 = vperm.xlu0 %1178, %v1125
    %v1180 = vpop.permute.xlu0 %1179
    %1183 = vset.pattern.permute.xlu0 0
    %1184 = vperm.xlu0 %1183, %v1126
    %v1185 = vpop.permute.xlu0 %1184
    %vm1187 = vcmask 785408
    %v1189 = vsel %vm1187, %v1103, 0
    %v1192 = vsel %vm1187, %v1104, 0
    %v1195 = vsel %vm1187, %v1105, 0
    %v1198 = vsel %vm1187, %v1106, 0
    %v1201 = vsel %vm1187, %v1107, 0
    %v1204 = vsel %vm1187, %v1108, 0
    %v1207 = vsel %vm1187, %v1109, 0
    %v1210 = vsel %vm1187, %v1110, 0
    %v1213 = vsel %vm1187, %v1111, 0
    %v1216 = vsel %vm1187, %v1112, 0
    %v1219 = vsel %vm1187, %v1113, 0
    %v1222 = vsel %vm1187, %v1114, 0
    %1224 = vmatprep.subr.mxu0 0.0
    %v1225 = vand.u32 %v1091, 4294901760
    %1226 = vmatpush1.msra.mxu0 %v1225
    %1227 = vmatprep.subr.mxu0 0.0
    %v1228 = vand.u32 %v1092, 4294901760
    %1229 = vmatpush1.msra.mxu0 %v1228
    %1230 = vmatprep.subr.mxu0 0.0
    %v1231 = vand.u32 %v1093, 4294901760
    %1232 = vmatpush1.msra.mxu0 %v1231
    %1233 = vmatprep.subr.mxu0 0.0
    %v1234 = vand.u32 %v1094, 4294901760
    %1235 = vmatpush1.msra.mxu0 %v1234
    %1236 = vmatprep.subr.mxu0 0.0
    %v1237 = vand.u32 %v1095, 4294901760
    %1238 = vmatpush1.msra.mxu0 %v1237
    %1239 = vmatprep.subr.mxu0 0.0
    %v1240 = vand.u32 %v1096, 4294901760
    %1241 = vmatpush1.msra.mxu0 %v1240
    %1242 = vmatprep.subr.mxu0 0.0
    %v1243 = vand.u32 %v1097, 4294901760
    %1244 = vmatpush1.msra.mxu0 %v1243
    %1245 = vmatprep.subr.mxu0 0.0
    %v1246 = vand.u32 %v1098, 4294901760
    %1247 = vmatpush1.msra.mxu0 %v1246
    %1248 = vmatprep.subr.mxu0 0.0
    %v1249 = vand.u32 %v1099, 4294901760
    %1250 = vmatpush1.msra.mxu0 %v1249
    %1251 = vmatprep.subr.mxu0 0.0
    %v1252 = vand.u32 %v1100, 4294901760
    %1253 = vmatpush1.msra.mxu0 %v1252
    %1254 = vmatprep.subr.mxu0 0.0
    %v1255 = vand.u32 %v1101, 4294901760
    %1256 = vmatpush1.msra.mxu0 %v1255
    %1257 = vmatprep.subr.mxu0 0.0
    %v1258 = vand.u32 %v1102, 4294901760
    %1259 = vmatpush1.msra.mxu0 %v1258
    %1260 = vmatprep.subr.mxu0 0.0
    %1261 = vmatpush1.msra.mxu0 0.0
    %1262 = vmatprep.subr.mxu0 0.0
    %1263 = vmatpush1.msra.mxu0 0.0
    %1264 = vmatprep.subr.mxu0 0.0
    %1265 = vmatpush1.msra.mxu0 0.0
    %1266 = vmatprep.subr.mxu0 0.0
    %1267 = vmatpush1.msra.mxu0 0.0
    %1268 = vmatprep.subr.mxu0 0.0
    %1269 = vmatpush1.msra.mxu0 0.0
    %1270 = vmatprep.subr.mxu0 0.0
    %1271 = vmatpush1.msra.mxu0 0.0
    %1272 = vmatprep.subr.mxu0 0.0
    %1273 = vmatpush1.msra.mxu0 0.0
    %1274 = vmatprep.subr.mxu0 0.0
    %1275 = vmatpush1.msra.mxu0 0.0
    %1276 = vmatprep.subr.mxu0 0.0
    %1277 = vmatpush1.msra.mxu0 0.0
    %1278 = vmatprep.subr.mxu0 0.0
    %1279 = vmatpush1.msra.mxu0 0.0
    %1280 = vmatprep.subr.mxu0 0.0
    %1281 = vmatpush1.msra.mxu0 0.0
    %1282 = vmatprep.subr.mxu0 0.0
    %1283 = vmatpush1.msra.mxu0 0.0
    %1284 = vmatprep.subr.mxu0 0.0
    %1285 = vmatpush1.msra.mxu0 0.0
    %1286 = vmatprep.subr.mxu0 0.0
    %1287 = vmatpush1.msra.mxu0 0.0
    %1288 = vmatprep.subr.mxu0 0.0
    %1289 = vmatpush1.msra.mxu0 0.0
    %1290 = vmatprep.subr.mxu0 0.0
    %1291 = vmatpush1.msra.mxu0 0.0
    %1292 = vmatprep.subr.mxu0 0.0
    %1293 = vmatpush1.msra.mxu0 0.0
    %1294 = vmatprep.subr.mxu0 0.0
    %1295 = vmatpush1.msra.mxu0 0.0
    %1296 = vmatprep.subr.mxu0 0.0
    %1297 = vmatpush1.msra.mxu0 0.0
    %1298 = vmatprep.subr.mxu0 0.0
    %1299 = vmatpush1.msra.mxu0 0.0
    %1300 = vmatprep.mubr.f32.mxu0 0.0
    %v1301 = vand.u32 %v1189, 4294901760
    %v1302 = vsub.f32 %v1189, %v1301
    %v1303 = vand.u32 %v1302, 4294901760
    %v1304 = vsub.f32 %v1302, %v1303
    %v1305 = vand.u32 %v1304, 4294901760
    %1306 = vmatmul.mubr.f32.gmra.mrb[0].mxu0 %v1305
    %v1307 = vpop.f32.mrb[0].mxu0
    %v1308 = vadd.f32 %v1130, %v1307
    %v1309 = vpop.f32.mrb[0].mxu0
    %1310 = vmatprep.mubr.f32.mxu0 0.0
    %v1311 = vand.u32 %v1192, 4294901760
    %v1312 = vsub.f32 %v1192, %v1311
    %v1313 = vand.u32 %v1312, 4294901760
    %v1314 = vsub.f32 %v1312, %v1313
    %v1315 = vand.u32 %v1314, 4294901760
    %1316 = vmatmul.mubr.f32.gmra.mrb[0].mxu0 %v1315
    %v1317 = vpop.f32.mrb[0].mxu0
    %v1318 = vadd.f32 %v1135, %v1317
    %v1319 = vpop.f32.mrb[0].mxu0
    %1320 = vmatprep.mubr.f32.mxu0 0.0
    %v1321 = vand.u32 %v1195, 4294901760
    %v1322 = vsub.f32 %v1195, %v1321
    %v1323 = vand.u32 %v1322, 4294901760
    %v1324 = vsub.f32 %v1322, %v1323
    %v1325 = vand.u32 %v1324, 4294901760
    %1326 = vmatmul.mubr.f32.gmra.mrb[0].mxu0 %v1325
    %v1327 = vpop.f32.mrb[0].mxu0
    %v1328 = vadd.f32 %v1140, %v1327
    %v1329 = vpop.f32.mrb[0].mxu0
    %1330 = vmatprep.mubr.f32.mxu0 0.0
    %v1331 = vand.u32 %v1198, 4294901760
    %v1332 = vsub.f32 %v1198, %v1331
    %v1333 = vand.u32 %v1332, 4294901760
    %v1334 = vsub.f32 %v1332, %v1333
    %v1335 = vand.u32 %v1334, 4294901760
    %1336 = vmatmul.mubr.f32.gmra.mrb[0].mxu0 %v1335
    %v1337 = vpop.f32.mrb[0].mxu0
    %v1338 = vadd.f32 %v1145, %v1337
    %v1339 = vpop.f32.mrb[0].mxu0
    %1340 = vmatprep.mubr.f32.mxu0 0.0
    %v1341 = vand.u32 %v1201, 4294901760
    %v1342 = vsub.f32 %v1201, %v1341
    %v1343 = vand.u32 %v1342, 4294901760
    %v1344 = vsub.f32 %v1342, %v1343
    %v1345 = vand.u32 %v1344, 4294901760
    %1346 = vmatmul.mubr.f32.gmra.mrb[0].mxu0 %v1345
    %v1347 = vpop.f32.mrb[0].mxu0
    %v1348 = vadd.f32 %v1150, %v1347
    %v1349 = vpop.f32.mrb[0].mxu0
    %1350 = vmatprep.mubr.f32.mxu0 0.0
    %v1351 = vand.u32 %v1204, 4294901760
    %v1352 = vsub.f32 %v1204, %v1351
    %v1353 = vand.u32 %v1352, 4294901760
    %v1354 = vsub.f32 %v1352, %v1353
    %v1355 = vand.u32 %v1354, 4294901760
    %1356 = vmatmul.mubr.f32.gmra.mrb[0].mxu0 %v1355
    %v1357 = vpop.f32.mrb[0].mxu0
    %v1358 = vadd.f32 %v1155, %v1357
    %v1359 = vpop.f32.mrb[0].mxu0
    %1360 = vmatprep.mubr.f32.mxu0 0.0
    %v1361 = vand.u32 %v1207, 4294901760
    %v1362 = vsub.f32 %v1207, %v1361
    %v1363 = vand.u32 %v1362, 4294901760
    %v1364 = vsub.f32 %v1362, %v1363
    %v1365 = vand.u32 %v1364, 4294901760
    %1366 = vmatmul.mubr.f32.gmra.mrb[0].mxu0 %v1365
    %v1367 = vpop.f32.mrb[0].mxu0
    %v1368 = vadd.f32 %v1160, %v1367
    %v1369 = vpop.f32.mrb[0].mxu0
    %1370 = vmatprep.mubr.f32.mxu0 0.0
    %v1371 = vand.u32 %v1210, 4294901760
    %v1372 = vsub.f32 %v1210, %v1371
    %v1373 = vand.u32 %v1372, 4294901760
    %v1374 = vsub.f32 %v1372, %v1373
    %v1375 = vand.u32 %v1374, 4294901760
    %1376 = vmatmul.mubr.f32.gmra.mrb[0].mxu0 %v1375
    %v1377 = vpop.f32.mrb[0].mxu0
    %v1378 = vadd.f32 %v1165, %v1377
    %v1379 = vpop.f32.mrb[0].mxu0
    %1380 = vmatprep.mubr.f32.mxu0 0.0
    %v1381 = vand.u32 %v1213, 4294901760
    %v1382 = vsub.f32 %v1213, %v1381
    %v1383 = vand.u32 %v1382, 4294901760
    %v1384 = vsub.f32 %v1382, %v1383
    %v1385 = vand.u32 %v1384, 4294901760
    %1386 = vmatmul.mubr.f32.gmra.mrb[0].mxu0 %v1385
    %v1387 = vpop.f32.mrb[0].mxu0
    %v1388 = vadd.f32 %v1170, %v1387
    %v1389 = vpop.f32.mrb[0].mxu0
    %1390 = vmatprep.mubr.f32.mxu0 0.0
    %v1391 = vand.u32 %v1216, 4294901760
    %v1392 = vsub.f32 %v1216, %v1391
    %v1393 = vand.u32 %v1392, 4294901760
    %v1394 = vsub.f32 %v1392, %v1393
    %v1395 = vand.u32 %v1394, 4294901760
    %1396 = vmatmul.mubr.f32.gmra.mrb[0].mxu0 %v1395
    %v1397 = vpop.f32.mrb[0].mxu0
    %v1398 = vadd.f32 %v1175, %v1397
    %v1399 = vpop.f32.mrb[0].mxu0
    %1400 = vmatprep.mubr.f32.mxu0 0.0
    %v1401 = vand.u32 %v1219, 4294901760
    %v1402 = vsub.f32 %v1219, %v1401
    %v1403 = vand.u32 %v1402, 4294901760
    %v1404 = vsub.f32 %v1402, %v1403
    %v1405 = vand.u32 %v1404, 4294901760
    %1406 = vmatmul.mubr.f32.gmra.mrb[0].mxu0 %v1405
    %v1407 = vpop.f32.mrb[0].mxu0
    %v1408 = vadd.f32 %v1180, %v1407
    %v1409 = vpop.f32.mrb[0].mxu0
    %1410 = vmatprep.mubr.f32.mxu0 0.0
    %v1411 = vand.u32 %v1222, 4294901760
    %v1412 = vsub.f32 %v1222, %v1411
    %v1413 = vand.u32 %v1412, 4294901760
    %v1414 = vsub.f32 %v1412, %v1413
    %v1415 = vand.u32 %v1414, 4294901760
    %1416 = vmatmul.mubr.f32.gmra.mrb[0].mxu0 %v1415
    %v1417 = vpop.f32.mrb[0].mxu0
    %v1418 = vadd.f32 %v1185, %v1417
    %v1419 = vpop.f32.mrb[0].mxu0
    %1420 = vdwg.mxu0
    %1421 = vmatprep.subr.mxu0 0.0
    %v1422 = vand.u32 %v1091, 4294901760
    %v1423 = vsub.f32 %v1091, %v1422
    %v1424 = vand.u32 %v1423, 4294901760
    %v1425 = vsub.f32 %v1423, %v1424
    %v1426 = vand.u32 %v1425, 4294901760
    %1427 = vmatpush1.msra.mxu0 %v1426
    %1428 = vmatprep.subr.mxu0 0.0
    %v1429 = vand.u32 %v1092, 4294901760
    %v1430 = vsub.f32 %v1092, %v1429
    %v1431 = vand.u32 %v1430, 4294901760
    %v1432 = vsub.f32 %v1430, %v1431
    %v1433 = vand.u32 %v1432, 4294901760
    %1434 = vmatpush1.msra.mxu0 %v1433
    %1435 = vmatprep.subr.mxu0 0.0
    %v1436 = vand.u32 %v1093, 4294901760
    %v1437 = vsub.f32 %v1093, %v1436
    %v1438 = vand.u32 %v1437, 4294901760
    %v1439 = vsub.f32 %v1437, %v1438
    %v1440 = vand.u32 %v1439, 4294901760
    %1441 = vmatpush1.msra.mxu0 %v1440
    %1442 = vmatprep.subr.mxu0 0.0
    %v1443 = vand.u32 %v1094, 4294901760
    %v1444 = vsub.f32 %v1094, %v1443
    %v1445 = vand.u32 %v1444, 4294901760
    %v1446 = vsub.f32 %v1444, %v1445
    %v1447 = vand.u32 %v1446, 4294901760
    %1448 = vmatpush1.msra.mxu0 %v1447
    %1449 = vmatprep.subr.mxu0 0.0
    %v1450 = vand.u32 %v1095, 4294901760
    %v1451 = vsub.f32 %v1095, %v1450
    %v1452 = vand.u32 %v1451, 4294901760
    %v1453 = vsub.f32 %v1451, %v1452
    %v1454 = vand.u32 %v1453, 4294901760
    %1455 = vmatpush1.msra.mxu0 %v1454
    %1456 = vmatprep.subr.mxu0 0.0
    %v1457 = vand.u32 %v1096, 4294901760
    %v1458 = vsub.f32 %v1096, %v1457
    %v1459 = vand.u32 %v1458, 4294901760
    %v1460 = vsub.f32 %v1458, %v1459
    %v1461 = vand.u32 %v1460, 4294901760
    %1462 = vmatpush1.msra.mxu0 %v1461
    %1463 = vmatprep.subr.mxu0 0.0
    %v1464 = vand.u32 %v1097, 4294901760
    %v1465 = vsub.f32 %v1097, %v1464
    %v1466 = vand.u32 %v1465, 4294901760
    %v1467 = vsub.f32 %v1465, %v1466
    %v1468 = vand.u32 %v1467, 4294901760
    %1469 = vmatpush1.msra.mxu0 %v1468
    %1470 = vmatprep.subr.mxu0 0.0
    %v1471 = vand.u32 %v1098, 4294901760
    %v1472 = vsub.f32 %v1098, %v1471
    %v1473 = vand.u32 %v1472, 4294901760
    %v1474 = vsub.f32 %v1472, %v1473
    %v1475 = vand.u32 %v1474, 4294901760
    %1476 = vmatpush1.msra.mxu0 %v1475
    %1477 = vmatprep.subr.mxu0 0.0
    %v1478 = vand.u32 %v1099, 4294901760
    %v1479 = vsub.f32 %v1099, %v1478
    %v1480 = vand.u32 %v1479, 4294901760
    %v1481 = vsub.f32 %v1479, %v1480
    %v1482 = vand.u32 %v1481, 4294901760
    %1483 = vmatpush1.msra.mxu0 %v1482
    %1484 = vmatprep.subr.mxu0 0.0
    %v1485 = vand.u32 %v1100, 4294901760
    %v1486 = vsub.f32 %v1100, %v1485
    %v1487 = vand.u32 %v1486, 4294901760
    %v1488 = vsub.f32 %v1486, %v1487
    %v1489 = vand.u32 %v1488, 4294901760
    %1490 = vmatpush1.msra.mxu0 %v1489
    %1491 = vmatprep.subr.mxu0 0.0
    %v1492 = vand.u32 %v1101, 4294901760
    %v1493 = vsub.f32 %v1101, %v1492
    %v1494 = vand.u32 %v1493, 4294901760
    %v1495 = vsub.f32 %v1493, %v1494
    %v1496 = vand.u32 %v1495, 4294901760
    %1497 = vmatpush1.msra.mxu0 %v1496
    %1498 = vmatprep.subr.mxu0 0.0
    %v1499 = vand.u32 %v1102, 4294901760
    %v1500 = vsub.f32 %v1102, %v1499
    %v1501 = vand.u32 %v1500, 4294901760
    %v1502 = vsub.f32 %v1500, %v1501
    %v1503 = vand.u32 %v1502, 4294901760
    %1504 = vmatpush1.msra.mxu0 %v1503
    %1505 = vmatprep.subr.mxu0 0.0
    %1506 = vmatpush1.msra.mxu0 0.0
    %1507 = vmatprep.subr.mxu0 0.0
    %1508 = vmatpush1.msra.mxu0 0.0
    %1509 = vmatprep.subr.mxu0 0.0
    %1510 = vmatpush1.msra.mxu0 0.0
    %1511 = vmatprep.subr.mxu0 0.0
    %1512 = vmatpush1.msra.mxu0 0.0
    %1513 = vmatprep.subr.mxu0 0.0
    %1514 = vmatpush1.msra.mxu0 0.0
    %1515 = vmatprep.subr.mxu0 0.0
    %1516 = vmatpush1.msra.mxu0 0.0
    %1517 = vmatprep.subr.mxu0 0.0
    %1518 = vmatpush1.msra.mxu0 0.0
    %1519 = vmatprep.subr.mxu0 0.0
    %1520 = vmatpush1.msra.mxu0 0.0
    %1521 = vmatprep.subr.mxu0 0.0
    %1522 = vmatpush1.msra.mxu0 0.0
    %1523 = vmatprep.subr.mxu0 0.0
    %1524 = vmatpush1.msra.mxu0 0.0
    %1525 = vmatprep.subr.mxu0 0.0
    %1526 = vmatpush1.msra.mxu0 0.0
    %1527 = vmatprep.subr.mxu0 0.0
    %1528 = vmatpush1.msra.mxu0 0.0
    %1529 = vmatprep.subr.mxu0 0.0
    %1530 = vmatpush1.msra.mxu0 0.0
    %1531 = vmatprep.subr.mxu0 0.0
    %1532 = vmatpush1.msra.mxu0 0.0
    %1533 = vmatprep.subr.mxu0 0.0
    %1534 = vmatpush1.msra.mxu0 0.0
    %1535 = vmatprep.subr.mxu0 0.0
    %1536 = vmatpush1.msra.mxu0 0.0
    %1537 = vmatprep.subr.mxu0 0.0
    %1538 = vmatpush1.msra.mxu0 0.0
    %1539 = vmatprep.subr.mxu0 0.0
    %1540 = vmatpush1.msra.mxu0 0.0
    %1541 = vmatprep.subr.mxu0 0.0
    %1542 = vmatpush1.msra.mxu0 0.0
    %1543 = vmatprep.subr.mxu0 0.0
    %1544 = vmatpush1.msra.mxu0 0.0
    %1545 = vmatprep.mubr.f32.mxu0 0.0
    %v1546 = vand.u32 %v1189, 4294901760
    %1547 = vmatmul.mubr.f32.gmra.mrb[0].mxu0 %v1546
    %v1548 = vpop.f32.mrb[0].mxu0
    %v1549 = vadd.f32 %v1308, %v1548
    %v1550 = vpop.f32.mrb[0].mxu0
    %1551 = vmatprep.mubr.f32.mxu0 0.0
    %v1552 = vand.u32 %v1192, 4294901760
    %1553 = vmatmul.mubr.f32.gmra.mrb[0].mxu0 %v1552
    %v1554 = vpop.f32.mrb[0].mxu0
    %v1555 = vadd.f32 %v1318, %v1554
    %v1556 = vpop.f32.mrb[0].mxu0
    %1557 = vmatprep.mubr.f32.mxu0 0.0
    %v1558 = vand.u32 %v1195, 4294901760
    %1559 = vmatmul.mubr.f32.gmra.mrb[0].mxu0 %v1558
    %v1560 = vpop.f32.mrb[0].mxu0
    %v1561 = vadd.f32 %v1328, %v1560
    %v1562 = vpop.f32.mrb[0].mxu0
    %1563 = vmatprep.mubr.f32.mxu0 0.0
    %v1564 = vand.u32 %v1198, 4294901760
    %1565 = vmatmul.mubr.f32.gmra.mrb[0].mxu0 %v1564
    %v1566 = vpop.f32.mrb[0].mxu0
    %v1567 = vadd.f32 %v1338, %v1566
    %v1568 = vpop.f32.mrb[0].mxu0
    %1569 = vmatprep.mubr.f32.mxu0 0.0
    %v1570 = vand.u32 %v1201, 4294901760
    %1571 = vmatmul.mubr.f32.gmra.mrb[0].mxu0 %v1570
    %v1572 = vpop.f32.mrb[0].mxu0
    %v1573 = vadd.f32 %v1348, %v1572
    %v1574 = vpop.f32.mrb[0].mxu0
    %1575 = vmatprep.mubr.f32.mxu0 0.0
    %v1576 = vand.u32 %v1204, 4294901760
    %1577 = vmatmul.mubr.f32.gmra.mrb[0].mxu0 %v1576
    %v1578 = vpop.f32.mrb[0].mxu0
    %v1579 = vadd.f32 %v1358, %v1578
    %v1580 = vpop.f32.mrb[0].mxu0
    %1581 = vmatprep.mubr.f32.mxu0 0.0
    %v1582 = vand.u32 %v1207, 4294901760
    %1583 = vmatmul.mubr.f32.gmra.mrb[0].mxu0 %v1582
    %v1584 = vpop.f32.mrb[0].mxu0
    %v1585 = vadd.f32 %v1368, %v1584
    %v1586 = vpop.f32.mrb[0].mxu0
    %1587 = vmatprep.mubr.f32.mxu0 0.0
    %v1588 = vand.u32 %v1210, 4294901760
    %1589 = vmatmul.mubr.f32.gmra.mrb[0].mxu0 %v1588
    %v1590 = vpop.f32.mrb[0].mxu0
    %v1591 = vadd.f32 %v1378, %v1590
    %v1592 = vpop.f32.mrb[0].mxu0
    %1593 = vmatprep.mubr.f32.mxu0 0.0
    %v1594 = vand.u32 %v1213, 4294901760
    %1595 = vmatmul.mubr.f32.gmra.mrb[0].mxu0 %v1594
    %v1596 = vpop.f32.mrb[0].mxu0
    %v1597 = vadd.f32 %v1388, %v1596
    %v1598 = vpop.f32.mrb[0].mxu0
    %1599 = vmatprep.mubr.f32.mxu0 0.0
    %v1600 = vand.u32 %v1216, 4294901760
    %1601 = vmatmul.mubr.f32.gmra.mrb[0].mxu0 %v1600
    %v1602 = vpop.f32.mrb[0].mxu0
    %v1603 = vadd.f32 %v1398, %v1602
    %v1604 = vpop.f32.mrb[0].mxu0
    %1605 = vmatprep.mubr.f32.mxu0 0.0
    %v1606 = vand.u32 %v1219, 4294901760
    %1607 = vmatmul.mubr.f32.gmra.mrb[0].mxu0 %v1606
    %v1608 = vpop.f32.mrb[0].mxu0
    %v1609 = vadd.f32 %v1408, %v1608
    %v1610 = vpop.f32.mrb[0].mxu0
    %1611 = vmatprep.mubr.f32.mxu0 0.0
    %v1612 = vand.u32 %v1222, 4294901760
    %1613 = vmatmul.mubr.f32.gmra.mrb[0].mxu0 %v1612
    %v1614 = vpop.f32.mrb[0].mxu0
    %v1615 = vadd.f32 %v1418, %v1614
    %v1616 = vpop.f32.mrb[0].mxu0
    %1617 = vdwg.mxu0
    %1618 = vmatprep.subr.mxu0 0.0
    %v1619 = vand.u32 %v1091, 4294901760
    %v1620 = vsub.f32 %v1091, %v1619
    %1621 = vmatpush1.msra.mxu0 %v1620
    %1622 = vmatprep.subr.mxu0 0.0
    %v1623 = vand.u32 %v1092, 4294901760
    %v1624 = vsub.f32 %v1092, %v1623
    %1625 = vmatpush1.msra.mxu0 %v1624
    %1626 = vmatprep.subr.mxu0 0.0
    %v1627 = vand.u32 %v1093, 4294901760
    %v1628 = vsub.f32 %v1093, %v1627
    %1629 = vmatpush1.msra.mxu0 %v1628
    %1630 = vmatprep.subr.mxu0 0.0
    %v1631 = vand.u32 %v1094, 4294901760
    %v1632 = vsub.f32 %v1094, %v1631
    %1633 = vmatpush1.msra.mxu0 %v1632
    %1634 = vmatprep.subr.mxu0 0.0
    %v1635 = vand.u32 %v1095, 4294901760
    %v1636 = vsub.f32 %v1095, %v1635
    %1637 = vmatpush1.msra.mxu0 %v1636
    %1638 = vmatprep.subr.mxu0 0.0
    %v1639 = vand.u32 %v1096, 4294901760
    %v1640 = vsub.f32 %v1096, %v1639
    %1641 = vmatpush1.msra.mxu0 %v1640
    %1642 = vmatprep.subr.mxu0 0.0
    %v1643 = vand.u32 %v1097, 4294901760
    %v1644 = vsub.f32 %v1097, %v1643
    %1645 = vmatpush1.msra.mxu0 %v1644
    %1646 = vmatprep.subr.mxu0 0.0
    %v1647 = vand.u32 %v1098, 4294901760
    %v1648 = vsub.f32 %v1098, %v1647
    %1649 = vmatpush1.msra.mxu0 %v1648
    %1650 = vmatprep.subr.mxu0 0.0
    %v1651 = vand.u32 %v1099, 4294901760
    %v1652 = vsub.f32 %v1099, %v1651
    %1653 = vmatpush1.msra.mxu0 %v1652
    %1654 = vmatprep.subr.mxu0 0.0
    %v1655 = vand.u32 %v1100, 4294901760
    %v1656 = vsub.f32 %v1100, %v1655
    %1657 = vmatpush1.msra.mxu0 %v1656
    %1658 = vmatprep.subr.mxu0 0.0
    %v1659 = vand.u32 %v1101, 4294901760
    %v1660 = vsub.f32 %v1101, %v1659
    %1661 = vmatpush1.msra.mxu0 %v1660
    %1662 = vmatprep.subr.mxu0 0.0
    %v1663 = vand.u32 %v1102, 4294901760
    %v1664 = vsub.f32 %v1102, %v1663
    %1665 = vmatpush1.msra.mxu0 %v1664
    %1666 = vmatprep.subr.mxu0 0.0
    %1667 = vmatpush1.msra.mxu0 0.0
    %1668 = vmatprep.subr.mxu0 0.0
    %1669 = vmatpush1.msra.mxu0 0.0
    %1670 = vmatprep.subr.mxu0 0.0
    %1671 = vmatpush1.msra.mxu0 0.0
    %1672 = vmatprep.subr.mxu0 0.0
    %1673 = vmatpush1.msra.mxu0 0.0
    %1674 = vmatprep.subr.mxu0 0.0
    %1675 = vmatpush1.msra.mxu0 0.0
    %1676 = vmatprep.subr.mxu0 0.0
    %1677 = vmatpush1.msra.mxu0 0.0
    %1678 = vmatprep.subr.mxu0 0.0
    %1679 = vmatpush1.msra.mxu0 0.0
    %1680 = vmatprep.subr.mxu0 0.0
    %1681 = vmatpush1.msra.mxu0 0.0
    %1682 = vmatprep.subr.mxu0 0.0
    %1683 = vmatpush1.msra.mxu0 0.0
    %1684 = vmatprep.subr.mxu0 0.0
    %1685 = vmatpush1.msra.mxu0 0.0
    %1686 = vmatprep.subr.mxu0 0.0
    %1687 = vmatpush1.msra.mxu0 0.0
    %1688 = vmatprep.subr.mxu0 0.0
    %1689 = vmatpush1.msra.mxu0 0.0
    %1690 = vmatprep.subr.mxu0 0.0
    %1691 = vmatpush1.msra.mxu0 0.0
    %1692 = vmatprep.subr.mxu0 0.0
    %1693 = vmatpush1.msra.mxu0 0.0
    %1694 = vmatprep.subr.mxu0 0.0
    %1695 = vmatpush1.msra.mxu0 0.0
    %1696 = vmatprep.subr.mxu0 0.0
    %1697 = vmatpush1.msra.mxu0 0.0
    %1698 = vmatprep.subr.mxu0 0.0
    %1699 = vmatpush1.msra.mxu0 0.0
    %1700 = vmatprep.subr.mxu0 0.0
    %1701 = vmatpush1.msra.mxu0 0.0
    %1702 = vmatprep.subr.mxu0 0.0
    %1703 = vmatpush1.msra.mxu0 0.0
    %1704 = vmatprep.subr.mxu0 0.0
    %1705 = vmatpush1.msra.mxu0 0.0
    %1706 = vmatprep.mubr.f32.mxu0 0.0
    %v1707 = vand.u32 %v1189, 4294901760
    %v1708 = vsub.f32 %v1189, %v1707
    %1709 = vmatmul.mubr.f32.gmra.mrb[0].mxu0 %v1708
    %v1710 = vpop.f32.mrb[0].mxu0
    %v1711 = vadd.f32 %v1549, %v1710
    %v1712 = vpop.f32.mrb[0].mxu0
    %1713 = vmatprep.mubr.f32.mxu0 0.0
    %v1714 = vand.u32 %v1192, 4294901760
    %v1715 = vsub.f32 %v1192, %v1714
    %1716 = vmatmul.mubr.f32.gmra.mrb[0].mxu0 %v1715
    %v1717 = vpop.f32.mrb[0].mxu0
    %v1718 = vadd.f32 %v1555, %v1717
    %v1719 = vpop.f32.mrb[0].mxu0
    %1720 = vmatprep.mubr.f32.mxu0 0.0
    %v1721 = vand.u32 %v1195, 4294901760
    %v1722 = vsub.f32 %v1195, %v1721
    %1723 = vmatmul.mubr.f32.gmra.mrb[0].mxu0 %v1722
    %v1724 = vpop.f32.mrb[0].mxu0
    %v1725 = vadd.f32 %v1561, %v1724
    %v1726 = vpop.f32.mrb[0].mxu0
    %1727 = vmatprep.mubr.f32.mxu0 0.0
    %v1728 = vand.u32 %v1198, 4294901760
    %v1729 = vsub.f32 %v1198, %v1728
    %1730 = vmatmul.mubr.f32.gmra.mrb[0].mxu0 %v1729
    %v1731 = vpop.f32.mrb[0].mxu0
    %v1732 = vadd.f32 %v1567, %v1731
    %v1733 = vpop.f32.mrb[0].mxu0
    %1734 = vmatprep.mubr.f32.mxu0 0.0
    %v1735 = vand.u32 %v1201, 4294901760
    %v1736 = vsub.f32 %v1201, %v1735
    %1737 = vmatmul.mubr.f32.gmra.mrb[0].mxu0 %v1736
    %v1738 = vpop.f32.mrb[0].mxu0
    %v1739 = vadd.f32 %v1573, %v1738
    %v1740 = vpop.f32.mrb[0].mxu0
    %1741 = vmatprep.mubr.f32.mxu0 0.0
    %v1742 = vand.u32 %v1204, 4294901760
    %v1743 = vsub.f32 %v1204, %v1742
    %1744 = vmatmul.mubr.f32.gmra.mrb[0].mxu0 %v1743
    %v1745 = vpop.f32.mrb[0].mxu0
    %v1746 = vadd.f32 %v1579, %v1745
    %v1747 = vpop.f32.mrb[0].mxu0
    %1748 = vmatprep.mubr.f32.mxu0 0.0
    %v1749 = vand.u32 %v1207, 4294901760
    %v1750 = vsub.f32 %v1207, %v1749
    %1751 = vmatmul.mubr.f32.gmra.mrb[0].mxu0 %v1750
    %v1752 = vpop.f32.mrb[0].mxu0
    %v1753 = vadd.f32 %v1585, %v1752
    %v1754 = vpop.f32.mrb[0].mxu0
    %1755 = vmatprep.mubr.f32.mxu0 0.0
    %v1756 = vand.u32 %v1210, 4294901760
    %v1757 = vsub.f32 %v1210, %v1756
    %1758 = vmatmul.mubr.f32.gmra.mrb[0].mxu0 %v1757
    %v1759 = vpop.f32.mrb[0].mxu0
    %v1760 = vadd.f32 %v1591, %v1759
    %v1761 = vpop.f32.mrb[0].mxu0
    %1762 = vmatprep.mubr.f32.mxu0 0.0
    %v1763 = vand.u32 %v1213, 4294901760
    %v1764 = vsub.f32 %v1213, %v1763
    %1765 = vmatmul.mubr.f32.gmra.mrb[0].mxu0 %v1764
    %v1766 = vpop.f32.mrb[0].mxu0
    %v1767 = vadd.f32 %v1597, %v1766
    %v1768 = vpop.f32.mrb[0].mxu0
    %1769 = vmatprep.mubr.f32.mxu0 0.0
    %v1770 = vand.u32 %v1216, 4294901760
    %v1771 = vsub.f32 %v1216, %v1770
    %1772 = vmatmul.mubr.f32.gmra.mrb[0].mxu0 %v1771
    %v1773 = vpop.f32.mrb[0].mxu0
    %v1774 = vadd.f32 %v1603, %v1773
    %v1775 = vpop.f32.mrb[0].mxu0
    %1776 = vmatprep.mubr.f32.mxu0 0.0
    %v1777 = vand.u32 %v1219, 4294901760
    %v1778 = vsub.f32 %v1219, %v1777
    %1779 = vmatmul.mubr.f32.gmra.mrb[0].mxu0 %v1778
    %v1780 = vpop.f32.mrb[0].mxu0
    %v1781 = vadd.f32 %v1609, %v1780
    %v1782 = vpop.f32.mrb[0].mxu0
    %1783 = vmatprep.mubr.f32.mxu0 0.0
    %v1784 = vand.u32 %v1222, 4294901760
    %v1785 = vsub.f32 %v1222, %v1784
    %1786 = vmatmul.mubr.f32.gmra.mrb[0].mxu0 %v1785
    %v1787 = vpop.f32.mrb[0].mxu0
    %v1788 = vadd.f32 %v1615, %v1787
    %v1789 = vpop.f32.mrb[0].mxu0
    %1790 = vdwg.mxu0
    %1791 = vmatprep.subr.mxu0 0.0
    %v1792 = vand.u32 %v1091, 4294901760
    %1793 = vmatpush1.msra.mxu0 %v1792
    %1794 = vmatprep.subr.mxu0 0.0
    %v1795 = vand.u32 %v1092, 4294901760
    %1796 = vmatpush1.msra.mxu0 %v1795
    %1797 = vmatprep.subr.mxu0 0.0
    %v1798 = vand.u32 %v1093, 4294901760
    %1799 = vmatpush1.msra.mxu0 %v1798
    %1800 = vmatprep.subr.mxu0 0.0
    %v1801 = vand.u32 %v1094, 4294901760
    %1802 = vmatpush1.msra.mxu0 %v1801
    %1803 = vmatprep.subr.mxu0 0.0
    %v1804 = vand.u32 %v1095, 4294901760
    %1805 = vmatpush1.msra.mxu0 %v1804
    %1806 = vmatprep.subr.mxu0 0.0
    %v1807 = vand.u32 %v1096, 4294901760
    %1808 = vmatpush1.msra.mxu0 %v1807
    %1809 = vmatprep.subr.mxu0 0.0
    %v1810 = vand.u32 %v1097, 4294901760
    %1811 = vmatpush1.msra.mxu0 %v1810
    %1812 = vmatprep.subr.mxu0 0.0
    %v1813 = vand.u32 %v1098, 4294901760
    %1814 = vmatpush1.msra.mxu0 %v1813
    %1815 = vmatprep.subr.mxu0 0.0
    %v1816 = vand.u32 %v1099, 4294901760
    %1817 = vmatpush1.msra.mxu0 %v1816
    %1818 = vmatprep.subr.mxu0 0.0
    %v1819 = vand.u32 %v1100, 4294901760
    %1820 = vmatpush1.msra.mxu0 %v1819
    %1821 = vmatprep.subr.mxu0 0.0
    %v1822 = vand.u32 %v1101, 4294901760
    %1823 = vmatpush1.msra.mxu0 %v1822
    %1824 = vmatprep.subr.mxu0 0.0
    %v1825 = vand.u32 %v1102, 4294901760
    %1826 = vmatpush1.msra.mxu0 %v1825
    %1827 = vmatprep.subr.mxu0 0.0
    %1828 = vmatpush1.msra.mxu0 0.0
    %1829 = vmatprep.subr.mxu0 0.0
    %1830 = vmatpush1.msra.mxu0 0.0
    %1831 = vmatprep.subr.mxu0 0.0
    %1832 = vmatpush1.msra.mxu0 0.0
    %1833 = vmatprep.subr.mxu0 0.0
    %1834 = vmatpush1.msra.mxu0 0.0
    %1835 = vmatprep.subr.mxu0 0.0
    %1836 = vmatpush1.msra.mxu0 0.0
    %1837 = vmatprep.subr.mxu0 0.0
    %1838 = vmatpush1.msra.mxu0 0.0
    %1839 = vmatprep.subr.mxu0 0.0
    %1840 = vmatpush1.msra.mxu0 0.0
    %1841 = vmatprep.subr.mxu0 0.0
    %1842 = vmatpush1.msra.mxu0 0.0
    %1843 = vmatprep.subr.mxu0 0.0
    %1844 = vmatpush1.msra.mxu0 0.0
    %1845 = vmatprep.subr.mxu0 0.0
    %1846 = vmatpush1.msra.mxu0 0.0
    %1847 = vmatprep.subr.mxu0 0.0
    %1848 = vmatpush1.msra.mxu0 0.0
    %1849 = vmatprep.subr.mxu0 0.0
    %1850 = vmatpush1.msra.mxu0 0.0
    %1851 = vmatprep.subr.mxu0 0.0
    %1852 = vmatpush1.msra.mxu0 0.0
    %1853 = vmatprep.subr.mxu0 0.0
    %1854 = vmatpush1.msra.mxu0 0.0
    %1855 = vmatprep.subr.mxu0 0.0
    %1856 = vmatpush1.msra.mxu0 0.0
    %1857 = vmatprep.subr.mxu0 0.0
    %1858 = vmatpush1.msra.mxu0 0.0
    %1859 = vmatprep.subr.mxu0 0.0
    %1860 = vmatpush1.msra.mxu0 0.0
    %1861 = vmatprep.subr.mxu0 0.0
    %1862 = vmatpush1.msra.mxu0 0.0
    %1863 = vmatprep.subr.mxu0 0.0
    %1864 = vmatpush1.msra.mxu0 0.0
    %1865 = vmatprep.subr.mxu0 0.0
    %1866 = vmatpush1.msra.mxu0 0.0
    %1867 = vmatprep.mubr.f32.mxu0 0.0
    %v1868 = vand.u32 %v1189, 4294901760
    %v1869 = vsub.f32 %v1189, %v1868
    %v1870 = vand.u32 %v1869, 4294901760
    %1871 = vmatmul.mubr.f32.gmra.mrb[0].mxu0 %v1870
    %v1872 = vpop.f32.mrb[0].mxu0
    %v1873 = vadd.f32 %v1711, %v1872
    %v1874 = vpop.f32.mrb[0].mxu0
    %1875 = vmatprep.mubr.f32.mxu0 0.0
    %v1876 = vand.u32 %v1192, 4294901760
    %v1877 = vsub.f32 %v1192, %v1876
    %v1878 = vand.u32 %v1877, 4294901760
    %1879 = vmatmul.mubr.f32.gmra.mrb[0].mxu0 %v1878
    %v1880 = vpop.f32.mrb[0].mxu0
    %v1881 = vadd.f32 %v1718, %v1880
    %v1882 = vpop.f32.mrb[0].mxu0
    %1883 = vmatprep.mubr.f32.mxu0 0.0
    %v1884 = vand.u32 %v1195, 4294901760
    %v1885 = vsub.f32 %v1195, %v1884
    %v1886 = vand.u32 %v1885, 4294901760
    %1887 = vmatmul.mubr.f32.gmra.mrb[0].mxu0 %v1886
    %v1888 = vpop.f32.mrb[0].mxu0
    %v1889 = vadd.f32 %v1725, %v1888
    %v1890 = vpop.f32.mrb[0].mxu0
    %1891 = vmatprep.mubr.f32.mxu0 0.0
    %v1892 = vand.u32 %v1198, 4294901760
    %v1893 = vsub.f32 %v1198, %v1892
    %v1894 = vand.u32 %v1893, 4294901760
    %1895 = vmatmul.mubr.f32.gmra.mrb[0].mxu0 %v1894
    %v1896 = vpop.f32.mrb[0].mxu0
    %v1897 = vadd.f32 %v1732, %v1896
    %v1898 = vpop.f32.mrb[0].mxu0
    %1899 = vmatprep.mubr.f32.mxu0 0.0
    %v1900 = vand.u32 %v1201, 4294901760
    %v1901 = vsub.f32 %v1201, %v1900
    %v1902 = vand.u32 %v1901, 4294901760
    %1903 = vmatmul.mubr.f32.gmra.mrb[0].mxu0 %v1902
    %v1904 = vpop.f32.mrb[0].mxu0
    %v1905 = vadd.f32 %v1739, %v1904
    %v1906 = vpop.f32.mrb[0].mxu0
    %1907 = vmatprep.mubr.f32.mxu0 0.0
    %v1908 = vand.u32 %v1204, 4294901760
    %v1909 = vsub.f32 %v1204, %v1908
    %v1910 = vand.u32 %v1909, 4294901760
    %1911 = vmatmul.mubr.f32.gmra.mrb[0].mxu0 %v1910
    %v1912 = vpop.f32.mrb[0].mxu0
    %v1913 = vadd.f32 %v1746, %v1912
    %v1914 = vpop.f32.mrb[0].mxu0
    %1915 = vmatprep.mubr.f32.mxu0 0.0
    %v1916 = vand.u32 %v1207, 4294901760
    %v1917 = vsub.f32 %v1207, %v1916
    %v1918 = vand.u32 %v1917, 4294901760
    %1919 = vmatmul.mubr.f32.gmra.mrb[0].mxu0 %v1918
    %v1920 = vpop.f32.mrb[0].mxu0
    %v1921 = vadd.f32 %v1753, %v1920
    %v1922 = vpop.f32.mrb[0].mxu0
    %1923 = vmatprep.mubr.f32.mxu0 0.0
    %v1924 = vand.u32 %v1210, 4294901760
    %v1925 = vsub.f32 %v1210, %v1924
    %v1926 = vand.u32 %v1925, 4294901760
    %1927 = vmatmul.mubr.f32.gmra.mrb[0].mxu0 %v1926
    %v1928 = vpop.f32.mrb[0].mxu0
    %v1929 = vadd.f32 %v1760, %v1928
    %v1930 = vpop.f32.mrb[0].mxu0
    %1931 = vmatprep.mubr.f32.mxu0 0.0
    %v1932 = vand.u32 %v1213, 4294901760
    %v1933 = vsub.f32 %v1213, %v1932
    %v1934 = vand.u32 %v1933, 4294901760
    %1935 = vmatmul.mubr.f32.gmra.mrb[0].mxu0 %v1934
    %v1936 = vpop.f32.mrb[0].mxu0
    %v1937 = vadd.f32 %v1767, %v1936
    %v1938 = vpop.f32.mrb[0].mxu0
    %1939 = vmatprep.mubr.f32.mxu0 0.0
    %v1940 = vand.u32 %v1216, 4294901760
    %v1941 = vsub.f32 %v1216, %v1940
    %v1942 = vand.u32 %v1941, 4294901760
    %1943 = vmatmul.mubr.f32.gmra.mrb[0].mxu0 %v1942
    %v1944 = vpop.f32.mrb[0].mxu0
    %v1945 = vadd.f32 %v1774, %v1944
    %v1946 = vpop.f32.mrb[0].mxu0
    %1947 = vmatprep.mubr.f32.mxu0 0.0
    %v1948 = vand.u32 %v1219, 4294901760
    %v1949 = vsub.f32 %v1219, %v1948
    %v1950 = vand.u32 %v1949, 4294901760
    %1951 = vmatmul.mubr.f32.gmra.mrb[0].mxu0 %v1950
    %v1952 = vpop.f32.mrb[0].mxu0
    %v1953 = vadd.f32 %v1781, %v1952
    %v1954 = vpop.f32.mrb[0].mxu0
    %1955 = vmatprep.mubr.f32.mxu0 0.0
    %v1956 = vand.u32 %v1222, 4294901760
    %v1957 = vsub.f32 %v1222, %v1956
    %v1958 = vand.u32 %v1957, 4294901760
    %1959 = vmatmul.mubr.f32.gmra.mrb[0].mxu0 %v1958
    %v1960 = vpop.f32.mrb[0].mxu0
    %v1961 = vadd.f32 %v1788, %v1960
    %v1962 = vpop.f32.mrb[0].mxu0
    %1963 = vdwg.mxu0
    %1964 = vmatprep.subr.mxu0 0.0
    %v1965 = vand.u32 %v1091, 4294901760
    %v1966 = vsub.f32 %v1091, %v1965
    %v1967 = vand.u32 %v1966, 4294901760
    %1968 = vmatpush1.msra.mxu0 %v1967
    %1969 = vmatprep.subr.mxu0 0.0
    %v1970 = vand.u32 %v1092, 4294901760
    %v1971 = vsub.f32 %v1092, %v1970
    %v1972 = vand.u32 %v1971, 4294901760
    %1973 = vmatpush1.msra.mxu0 %v1972
    %1974 = vmatprep.subr.mxu0 0.0
    %v1975 = vand.u32 %v1093, 4294901760
    %v1976 = vsub.f32 %v1093, %v1975
    %v1977 = vand.u32 %v1976, 4294901760
    %1978 = vmatpush1.msra.mxu0 %v1977
    %1979 = vmatprep.subr.mxu0 0.0
    %v1980 = vand.u32 %v1094, 4294901760
    %v1981 = vsub.f32 %v1094, %v1980
    %v1982 = vand.u32 %v1981, 4294901760
    %1983 = vmatpush1.msra.mxu0 %v1982
    %1984 = vmatprep.subr.mxu0 0.0
    %v1985 = vand.u32 %v1095, 4294901760
    %v1986 = vsub.f32 %v1095, %v1985
    %v1987 = vand.u32 %v1986, 4294901760
    %1988 = vmatpush1.msra.mxu0 %v1987
    %1989 = vmatprep.subr.mxu0 0.0
    %v1990 = vand.u32 %v1096, 4294901760
    %v1991 = vsub.f32 %v1096, %v1990
    %v1992 = vand.u32 %v1991, 4294901760
    %1993 = vmatpush1.msra.mxu0 %v1992
    %1994 = vmatprep.subr.mxu0 0.0
    %v1995 = vand.u32 %v1097, 4294901760
    %v1996 = vsub.f32 %v1097, %v1995
    %v1997 = vand.u32 %v1996, 4294901760
    %1998 = vmatpush1.msra.mxu0 %v1997
    %1999 = vmatprep.subr.mxu0 0.0
    %v2000 = vand.u32 %v1098, 4294901760
    %v2001 = vsub.f32 %v1098, %v2000
    %v2002 = vand.u32 %v2001, 4294901760
    %2003 = vmatpush1.msra.mxu0 %v2002
    %2004 = vmatprep.subr.mxu0 0.0
    %v2005 = vand.u32 %v1099, 4294901760
    %v2006 = vsub.f32 %v1099, %v2005
    %v2007 = vand.u32 %v2006, 4294901760
    %2008 = vmatpush1.msra.mxu0 %v2007
    %2009 = vmatprep.subr.mxu0 0.0
    %v2010 = vand.u32 %v1100, 4294901760
    %v2011 = vsub.f32 %v1100, %v2010
    %v2012 = vand.u32 %v2011, 4294901760
    %2013 = vmatpush1.msra.mxu0 %v2012
    %2014 = vmatprep.subr.mxu0 0.0
    %v2015 = vand.u32 %v1101, 4294901760
    %v2016 = vsub.f32 %v1101, %v2015
    %v2017 = vand.u32 %v2016, 4294901760
    %2018 = vmatpush1.msra.mxu0 %v2017
    %2019 = vmatprep.subr.mxu0 0.0
    %v2020 = vand.u32 %v1102, 4294901760
    %v2021 = vsub.f32 %v1102, %v2020
    %v2022 = vand.u32 %v2021, 4294901760
    %2023 = vmatpush1.msra.mxu0 %v2022
    %2024 = vmatprep.subr.mxu0 0.0
    %2025 = vmatpush1.msra.mxu0 0.0
    %2026 = vmatprep.subr.mxu0 0.0
    %2027 = vmatpush1.msra.mxu0 0.0
    %2028 = vmatprep.subr.mxu0 0.0
    %2029 = vmatpush1.msra.mxu0 0.0
    %2030 = vmatprep.subr.mxu0 0.0
    %2031 = vmatpush1.msra.mxu0 0.0
    %2032 = vmatprep.subr.mxu0 0.0
    %2033 = vmatpush1.msra.mxu0 0.0
    %2034 = vmatprep.subr.mxu0 0.0
    %2035 = vmatpush1.msra.mxu0 0.0
    %2036 = vmatprep.subr.mxu0 0.0
    %2037 = vmatpush1.msra.mxu0 0.0
    %2038 = vmatprep.subr.mxu0 0.0
    %2039 = vmatpush1.msra.mxu0 0.0
    %2040 = vmatprep.subr.mxu0 0.0
    %2041 = vmatpush1.msra.mxu0 0.0
    %2042 = vmatprep.subr.mxu0 0.0
    %2043 = vmatpush1.msra.mxu0 0.0
    %2044 = vmatprep.subr.mxu0 0.0
    %2045 = vmatpush1.msra.mxu0 0.0
    %2046 = vmatprep.subr.mxu0 0.0
    %2047 = vmatpush1.msra.mxu0 0.0
    %2048 = vmatprep.subr.mxu0 0.0
    %2049 = vmatpush1.msra.mxu0 0.0
    %2050 = vmatprep.subr.mxu0 0.0
    %2051 = vmatpush1.msra.mxu0 0.0
    %2052 = vmatprep.subr.mxu0 0.0
    %2053 = vmatpush1.msra.mxu0 0.0
    %2054 = vmatprep.subr.mxu0 0.0
    %2055 = vmatpush1.msra.mxu0 0.0
    %2056 = vmatprep.subr.mxu0 0.0
    %2057 = vmatpush1.msra.mxu0 0.0
    %2058 = vmatprep.subr.mxu0 0.0
    %2059 = vmatpush1.msra.mxu0 0.0
    %2060 = vmatprep.subr.mxu0 0.0
    %2061 = vmatpush1.msra.mxu0 0.0
    %2062 = vmatprep.subr.mxu0 0.0
    %2063 = vmatpush1.msra.mxu0 0.0
    %2064 = vmatprep.mubr.f32.mxu0 0.0
    %v2065 = vand.u32 %v1189, 4294901760
    %2066 = vmatmul.mubr.f32.gmra.mrb[0].mxu0 %v2065
    %v2067 = vpop.f32.mrb[0].mxu0
    %v2068 = vadd.f32 %v1873, %v2067
    %v2069 = vpop.f32.mrb[0].mxu0
    %2070 = vmatprep.mubr.f32.mxu0 0.0
    %v2071 = vand.u32 %v1192, 4294901760
    %2072 = vmatmul.mubr.f32.gmra.mrb[0].mxu0 %v2071
    %v2073 = vpop.f32.mrb[0].mxu0
    %v2074 = vadd.f32 %v1881, %v2073
    %v2075 = vpop.f32.mrb[0].mxu0
    %2076 = vmatprep.mubr.f32.mxu0 0.0
    %v2077 = vand.u32 %v1195, 4294901760
    %2078 = vmatmul.mubr.f32.gmra.mrb[0].mxu0 %v2077
    %v2079 = vpop.f32.mrb[0].mxu0
    %v2080 = vadd.f32 %v1889, %v2079
    %v2081 = vpop.f32.mrb[0].mxu0
    %2082 = vmatprep.mubr.f32.mxu0 0.0
    %v2083 = vand.u32 %v1198, 4294901760
    %2084 = vmatmul.mubr.f32.gmra.mrb[0].mxu0 %v2083
    %v2085 = vpop.f32.mrb[0].mxu0
    %v2086 = vadd.f32 %v1897, %v2085
    %v2087 = vpop.f32.mrb[0].mxu0
    %2088 = vmatprep.mubr.f32.mxu0 0.0
    %v2089 = vand.u32 %v1201, 4294901760
    %2090 = vmatmul.mubr.f32.gmra.mrb[0].mxu0 %v2089
    %v2091 = vpop.f32.mrb[0].mxu0
    %v2092 = vadd.f32 %v1905, %v2091
    %v2093 = vpop.f32.mrb[0].mxu0
    %2094 = vmatprep.mubr.f32.mxu0 0.0
    %v2095 = vand.u32 %v1204, 4294901760
    %2096 = vmatmul.mubr.f32.gmra.mrb[0].mxu0 %v2095
    %v2097 = vpop.f32.mrb[0].mxu0
    %v2098 = vadd.f32 %v1913, %v2097
    %v2099 = vpop.f32.mrb[0].mxu0
    %2100 = vmatprep.mubr.f32.mxu0 0.0
    %v2101 = vand.u32 %v1207, 4294901760
    %2102 = vmatmul.mubr.f32.gmra.mrb[0].mxu0 %v2101
    %v2103 = vpop.f32.mrb[0].mxu0
    %v2104 = vadd.f32 %v1921, %v2103
    %v2105 = vpop.f32.mrb[0].mxu0
    %2106 = vmatprep.mubr.f32.mxu0 0.0
    %v2107 = vand.u32 %v1210, 4294901760
    %2108 = vmatmul.mubr.f32.gmra.mrb[0].mxu0 %v2107
    %v2109 = vpop.f32.mrb[0].mxu0
    %v2110 = vadd.f32 %v1929, %v2109
    %v2111 = vpop.f32.mrb[0].mxu0
    %2112 = vmatprep.mubr.f32.mxu0 0.0
    %v2113 = vand.u32 %v1213, 4294901760
    %2114 = vmatmul.mubr.f32.gmra.mrb[0].mxu0 %v2113
    %v2115 = vpop.f32.mrb[0].mxu0
    %v2116 = vadd.f32 %v1937, %v2115
    %v2117 = vpop.f32.mrb[0].mxu0
    %2118 = vmatprep.mubr.f32.mxu0 0.0
    %v2119 = vand.u32 %v1216, 4294901760
    %2120 = vmatmul.mubr.f32.gmra.mrb[0].mxu0 %v2119
    %v2121 = vpop.f32.mrb[0].mxu0
    %v2122 = vadd.f32 %v1945, %v2121
    %v2123 = vpop.f32.mrb[0].mxu0
    %2124 = vmatprep.mubr.f32.mxu0 0.0
    %v2125 = vand.u32 %v1219, 4294901760
    %2126 = vmatmul.mubr.f32.gmra.mrb[0].mxu0 %v2125
    %v2127 = vpop.f32.mrb[0].mxu0
    %v2128 = vadd.f32 %v1953, %v2127
    %v2129 = vpop.f32.mrb[0].mxu0
    %2130 = vmatprep.mubr.f32.mxu0 0.0
    %v2131 = vand.u32 %v1222, 4294901760
    %2132 = vmatmul.mubr.f32.gmra.mrb[0].mxu0 %v2131
    %v2133 = vpop.f32.mrb[0].mxu0
    %v2134 = vadd.f32 %v1961, %v2133
    %v2135 = vpop.f32.mrb[0].mxu0
    %2136 = vdwg.mxu0
    %2137 = vmatprep.subr.mxu0 0.0
    %v2138 = vand.u32 %v1091, 4294901760
    %2139 = vmatpush1.msra.mxu0 %v2138
    %2140 = vmatprep.subr.mxu0 0.0
    %v2141 = vand.u32 %v1092, 4294901760
    %2142 = vmatpush1.msra.mxu0 %v2141
    %2143 = vmatprep.subr.mxu0 0.0
    %v2144 = vand.u32 %v1093, 4294901760
    %2145 = vmatpush1.msra.mxu0 %v2144
    %2146 = vmatprep.subr.mxu0 0.0
    %v2147 = vand.u32 %v1094, 4294901760
    %2148 = vmatpush1.msra.mxu0 %v2147
    %2149 = vmatprep.subr.mxu0 0.0
    %v2150 = vand.u32 %v1095, 4294901760
    %2151 = vmatpush1.msra.mxu0 %v2150
    %2152 = vmatprep.subr.mxu0 0.0
    %v2153 = vand.u32 %v1096, 4294901760
    %2154 = vmatpush1.msra.mxu0 %v2153
    %2155 = vmatprep.subr.mxu0 0.0
    %v2156 = vand.u32 %v1097, 4294901760
    %2157 = vmatpush1.msra.mxu0 %v2156
    %2158 = vmatprep.subr.mxu0 0.0
    %v2159 = vand.u32 %v1098, 4294901760
    %2160 = vmatpush1.msra.mxu0 %v2159
    %2161 = vmatprep.subr.mxu0 0.0
    %v2162 = vand.u32 %v1099, 4294901760
    %2163 = vmatpush1.msra.mxu0 %v2162
    %2164 = vmatprep.subr.mxu0 0.0
    %v2165 = vand.u32 %v1100, 4294901760
    %2166 = vmatpush1.msra.mxu0 %v2165
    %2167 = vmatprep.subr.mxu0 0.0
    %v2168 = vand.u32 %v1101, 4294901760
    %2169 = vmatpush1.msra.mxu0 %v2168
    %2170 = vmatprep.subr.mxu0 0.0
    %v2171 = vand.u32 %v1102, 4294901760
    %2172 = vmatpush1.msra.mxu0 %v2171
    %2173 = vmatprep.subr.mxu0 0.0
    %2174 = vmatpush1.msra.mxu0 0.0
    %2175 = vmatprep.subr.mxu0 0.0
    %2176 = vmatpush1.msra.mxu0 0.0
    %2177 = vmatprep.subr.mxu0 0.0
    %2178 = vmatpush1.msra.mxu0 0.0
    %2179 = vmatprep.subr.mxu0 0.0
    %2180 = vmatpush1.msra.mxu0 0.0
    %2181 = vmatprep.subr.mxu0 0.0
    %2182 = vmatpush1.msra.mxu0 0.0
    %2183 = vmatprep.subr.mxu0 0.0
    %2184 = vmatpush1.msra.mxu0 0.0
    %2185 = vmatprep.subr.mxu0 0.0
    %2186 = vmatpush1.msra.mxu0 0.0
    %2187 = vmatprep.subr.mxu0 0.0
    %2188 = vmatpush1.msra.mxu0 0.0
    %2189 = vmatprep.subr.mxu0 0.0
    %2190 = vmatpush1.msra.mxu0 0.0
    %2191 = vmatprep.subr.mxu0 0.0
    %2192 = vmatpush1.msra.mxu0 0.0
    %2193 = vmatprep.subr.mxu0 0.0
    %2194 = vmatpush1.msra.mxu0 0.0
    %2195 = vmatprep.subr.mxu0 0.0
    %2196 = vmatpush1.msra.mxu0 0.0
    %2197 = vmatprep.subr.mxu0 0.0
    %2198 = vmatpush1.msra.mxu0 0.0
    %2199 = vmatprep.subr.mxu0 0.0
    %2200 = vmatpush1.msra.mxu0 0.0
    %2201 = vmatprep.subr.mxu0 0.0
    %2202 = vmatpush1.msra.mxu0 0.0
    %2203 = vmatprep.subr.mxu0 0.0
    %2204 = vmatpush1.msra.mxu0 0.0
    %2205 = vmatprep.subr.mxu0 0.0
    %2206 = vmatpush1.msra.mxu0 0.0
    %2207 = vmatprep.subr.mxu0 0.0
    %2208 = vmatpush1.msra.mxu0 0.0
    %2209 = vmatprep.subr.mxu0 0.0
    %2210 = vmatpush1.msra.mxu0 0.0
    %2211 = vmatprep.subr.mxu0 0.0
    %2212 = vmatpush1.msra.mxu0 0.0
    %2213 = vmatprep.mubr.f32.mxu0 0.0
    %v2214 = vand.u32 %v1189, 4294901760
    %2215 = vmatmul.mubr.f32.gmra.mrb[0].mxu0 %v2214
    %v2216 = vpop.f32.mrb[0].mxu0
    %v2217 = vadd.f32 %v2068, %v2216
    %v2218 = vpop.f32.mrb[0].mxu0
    %2219 = vmatprep.mubr.f32.mxu0 0.0
    %v2220 = vand.u32 %v1192, 4294901760
    %2221 = vmatmul.mubr.f32.gmra.mrb[0].mxu0 %v2220
    %v2222 = vpop.f32.mrb[0].mxu0
    %v2223 = vadd.f32 %v2074, %v2222
    %v2224 = vpop.f32.mrb[0].mxu0
    %2225 = vmatprep.mubr.f32.mxu0 0.0
    %v2226 = vand.u32 %v1195, 4294901760
    %2227 = vmatmul.mubr.f32.gmra.mrb[0].mxu0 %v2226
    %v2228 = vpop.f32.mrb[0].mxu0
    %v2229 = vadd.f32 %v2080, %v2228
    %v2230 = vpop.f32.mrb[0].mxu0
    %2231 = vmatprep.mubr.f32.mxu0 0.0
    %v2232 = vand.u32 %v1198, 4294901760
    %2233 = vmatmul.mubr.f32.gmra.mrb[0].mxu0 %v2232
    %v2234 = vpop.f32.mrb[0].mxu0
    %v2235 = vadd.f32 %v2086, %v2234
    %v2236 = vpop.f32.mrb[0].mxu0
    %2237 = vmatprep.mubr.f32.mxu0 0.0
    %v2238 = vand.u32 %v1201, 4294901760
    %2239 = vmatmul.mubr.f32.gmra.mrb[0].mxu0 %v2238
    %v2240 = vpop.f32.mrb[0].mxu0
    %v2241 = vadd.f32 %v2092, %v2240
    %v2242 = vpop.f32.mrb[0].mxu0
    %2243 = vmatprep.mubr.f32.mxu0 0.0
    %v2244 = vand.u32 %v1204, 4294901760
    %2245 = vmatmul.mubr.f32.gmra.mrb[0].mxu0 %v2244
    %v2246 = vpop.f32.mrb[0].mxu0
    %v2247 = vadd.f32 %v2098, %v2246
    %v2248 = vpop.f32.mrb[0].mxu0
    %2249 = vmatprep.mubr.f32.mxu0 0.0
    %v2250 = vand.u32 %v1207, 4294901760
    %2251 = vmatmul.mubr.f32.gmra.mrb[0].mxu0 %v2250
    %v2252 = vpop.f32.mrb[0].mxu0
    %v2253 = vadd.f32 %v2104, %v2252
    %v2254 = vpop.f32.mrb[0].mxu0
    %2255 = vmatprep.mubr.f32.mxu0 0.0
    %v2256 = vand.u32 %v1210, 4294901760
    %2257 = vmatmul.mubr.f32.gmra.mrb[0].mxu0 %v2256
    %v2258 = vpop.f32.mrb[0].mxu0
    %v2259 = vadd.f32 %v2110, %v2258
    %v2260 = vpop.f32.mrb[0].mxu0
    %2261 = vmatprep.mubr.f32.mxu0 0.0
    %v2262 = vand.u32 %v1213, 4294901760
    %2263 = vmatmul.mubr.f32.gmra.mrb[0].mxu0 %v2262
    %v2264 = vpop.f32.mrb[0].mxu0
    %v2265 = vadd.f32 %v2116, %v2264
    %v2266 = vpop.f32.mrb[0].mxu0
    %2267 = vmatprep.mubr.f32.mxu0 0.0
    %v2268 = vand.u32 %v1216, 4294901760
    %2269 = vmatmul.mubr.f32.gmra.mrb[0].mxu0 %v2268
    %v2270 = vpop.f32.mrb[0].mxu0
    %v2271 = vadd.f32 %v2122, %v2270
    %v2272 = vpop.f32.mrb[0].mxu0
    %2273 = vmatprep.mubr.f32.mxu0 0.0
    %v2274 = vand.u32 %v1219, 4294901760
    %2275 = vmatmul.mubr.f32.gmra.mrb[0].mxu0 %v2274
    %v2276 = vpop.f32.mrb[0].mxu0
    %v2277 = vadd.f32 %v2128, %v2276
    %v2278 = vpop.f32.mrb[0].mxu0
    %2279 = vmatprep.mubr.f32.mxu0 0.0
    %v2280 = vand.u32 %v1222, 4294901760
    %2281 = vmatmul.mubr.f32.gmra.mrb[0].mxu0 %v2280
    %v2282 = vpop.f32.mrb[0].mxu0
    %v2283 = vadd.f32 %v2134, %v2282
    %v2284 = vpop.f32.mrb[0].mxu0
    %2285 = vdwg.mxu0
    %v2286 = vmax.f32 %v2217, 0.0
    %v2287 = vmax.f32 %v2223, 0.0
    %v2288 = vmax.f32 %v2229, 0.0
    %v2289 = vmax.f32 %v2235, 0.0
    %v2290 = vmax.f32 %v2241, 0.0
    %v2291 = vmax.f32 %v2247, 0.0
    %v2292 = vmax.f32 %v2253, 0.0
    %v2293 = vmax.f32 %v2259, 0.0
    %v2294 = vmax.f32 %v2265, 0.0
    %v2295 = vmax.f32 %v2271, 0.0
    %v2296 = vmax.f32 %v2277, 0.0
    %v2297 = vmax.f32 %v2283, 0.0
    %v2298 = vld [vmem:[%s5] sm:$0x3f]
    %v2299 = vld [vmem:[%s6] sm:$0x3f]
    %2301 = vset.pattern.permute.xlu0 0
    %2302 = vperm.xlu0 %2301, %v2299
    %v2303 = vpop.permute.xlu0 %2302
    %v2306 = vsel %vm1187, %v2298, 0
    %2308 = vmatprep.subr.mxu0 0.0
    %v2309 = vand.u32 %v2286, 4294901760
    %2310 = vmatpush1.msra.mxu0 %v2309
    %2311 = vmatprep.subr.mxu0 0.0
    %v2312 = vand.u32 %v2287, 4294901760
    %2313 = vmatpush1.msra.mxu0 %v2312
    %2314 = vmatprep.subr.mxu0 0.0
    %v2315 = vand.u32 %v2288, 4294901760
    %2316 = vmatpush1.msra.mxu0 %v2315
    %2317 = vmatprep.subr.mxu0 0.0
    %v2318 = vand.u32 %v2289, 4294901760
    %2319 = vmatpush1.msra.mxu0 %v2318
    %2320 = vmatprep.subr.mxu0 0.0
    %v2321 = vand.u32 %v2290, 4294901760
    %2322 = vmatpush1.msra.mxu0 %v2321
    %2323 = vmatprep.subr.mxu0 0.0
    %v2324 = vand.u32 %v2291, 4294901760
    %2325 = vmatpush1.msra.mxu0 %v2324
    %2326 = vmatprep.subr.mxu0 0.0
    %v2327 = vand.u32 %v2292, 4294901760
    %2328 = vmatpush1.msra.mxu0 %v2327
    %2329 = vmatprep.subr.mxu0 0.0
    %v2330 = vand.u32 %v2293, 4294901760
    %2331 = vmatpush1.msra.mxu0 %v2330
    %2332 = vmatprep.subr.mxu0 0.0
    %v2333 = vand.u32 %v2294, 4294901760
    %2334 = vmatpush1.msra.mxu0 %v2333
    %2335 = vmatprep.subr.mxu0 0.0
    %v2336 = vand.u32 %v2295, 4294901760
    %2337 = vmatpush1.msra.mxu0 %v2336
    %2338 = vmatprep.subr.mxu0 0.0
    %v2339 = vand.u32 %v2296, 4294901760
    %2340 = vmatpush1.msra.mxu0 %v2339
    %2341 = vmatprep.subr.mxu0 0.0
    %v2342 = vand.u32 %v2297, 4294901760
    %2343 = vmatpush1.msra.mxu0 %v2342
    %2344 = vmatprep.subr.mxu0 0.0
    %2345 = vmatpush1.msra.mxu0 0.0
    %2346 = vmatprep.subr.mxu0 0.0
    %2347 = vmatpush1.msra.mxu0 0.0
    %2348 = vmatprep.subr.mxu0 0.0
    %2349 = vmatpush1.msra.mxu0 0.0
    %2350 = vmatprep.subr.mxu0 0.0
    %2351 = vmatpush1.msra.mxu0 0.0
    %2352 = vmatprep.subr.mxu0 0.0
    %2353 = vmatpush1.msra.mxu0 0.0
    %2354 = vmatprep.subr.mxu0 0.0
    %2355 = vmatpush1.msra.mxu0 0.0
    %2356 = vmatprep.subr.mxu0 0.0
    %2357 = vmatpush1.msra.mxu0 0.0
    %2358 = vmatprep.subr.mxu0 0.0
    %2359 = vmatpush1.msra.mxu0 0.0
    %2360 = vmatprep.subr.mxu0 0.0
    %2361 = vmatpush1.msra.mxu0 0.0
    %2362 = vmatprep.subr.mxu0 0.0
    %2363 = vmatpush1.msra.mxu0 0.0
    %2364 = vmatprep.subr.mxu0 0.0
    %2365 = vmatpush1.msra.mxu0 0.0
    %2366 = vmatprep.subr.mxu0 0.0
    %2367 = vmatpush1.msra.mxu0 0.0
    %2368 = vmatprep.subr.mxu0 0.0
    %2369 = vmatpush1.msra.mxu0 0.0
    %2370 = vmatprep.subr.mxu0 0.0
    %2371 = vmatpush1.msra.mxu0 0.0
    %2372 = vmatprep.subr.mxu0 0.0
    %2373 = vmatpush1.msra.mxu0 0.0
    %2374 = vmatprep.subr.mxu0 0.0
    %2375 = vmatpush1.msra.mxu0 0.0
    %2376 = vmatprep.subr.mxu0 0.0
    %2377 = vmatpush1.msra.mxu0 0.0
    %2378 = vmatprep.subr.mxu0 0.0
    %2379 = vmatpush1.msra.mxu0 0.0
    %2380 = vmatprep.subr.mxu0 0.0
    %2381 = vmatpush1.msra.mxu0 0.0
    %2382 = vmatprep.subr.mxu0 0.0
    %2383 = vmatpush1.msra.mxu0 0.0
    %2384 = vmatprep.mubr.f32.mxu0 0.0
    %v2385 = vand.u32 %v2306, 4294901760
    %v2386 = vsub.f32 %v2306, %v2385
    %v2387 = vand.u32 %v2386, 4294901760
    %v2388 = vsub.f32 %v2386, %v2387
    %v2389 = vand.u32 %v2388, 4294901760
    %2390 = vmatmul.mubr.f32.gmra.mrb[0].mxu0 %v2389
    %v2391 = vpop.f32.mrb[0].mxu0
    %v2392 = vadd.f32 %v2303, %v2391
    %v2393 = vpop.f32.mrb[0].mxu0
    %2394 = vdwg.mxu0
    %2395 = vmatprep.subr.mxu0 0.0
    %v2396 = vand.u32 %v2286, 4294901760
    %v2397 = vsub.f32 %v2286, %v2396
    %v2398 = vand.u32 %v2397, 4294901760
    %v2399 = vsub.f32 %v2397, %v2398
    %v2400 = vand.u32 %v2399, 4294901760
    %2401 = vmatpush1.msra.mxu0 %v2400
    %2402 = vmatprep.subr.mxu0 0.0
    %v2403 = vand.u32 %v2287, 4294901760
    %v2404 = vsub.f32 %v2287, %v2403
    %v2405 = vand.u32 %v2404, 4294901760
    %v2406 = vsub.f32 %v2404, %v2405
    %v2407 = vand.u32 %v2406, 4294901760
    %2408 = vmatpush1.msra.mxu0 %v2407
    %2409 = vmatprep.subr.mxu0 0.0
    %v2410 = vand.u32 %v2288, 4294901760
    %v2411 = vsub.f32 %v2288, %v2410
    %v2412 = vand.u32 %v2411, 4294901760
    %v2413 = vsub.f32 %v2411, %v2412
    %v2414 = vand.u32 %v2413, 4294901760
    %2415 = vmatpush1.msra.mxu0 %v2414
    %2416 = vmatprep.subr.mxu0 0.0
    %v2417 = vand.u32 %v2289, 4294901760
    %v2418 = vsub.f32 %v2289, %v2417
    %v2419 = vand.u32 %v2418, 4294901760
    %v2420 = vsub.f32 %v2418, %v2419
    %v2421 = vand.u32 %v2420, 4294901760
    %2422 = vmatpush1.msra.mxu0 %v2421
    %2423 = vmatprep.subr.mxu0 0.0
    %v2424 = vand.u32 %v2290, 4294901760
    %v2425 = vsub.f32 %v2290, %v2424
    %v2426 = vand.u32 %v2425, 4294901760
    %v2427 = vsub.f32 %v2425, %v2426
    %v2428 = vand.u32 %v2427, 4294901760
    %2429 = vmatpush1.msra.mxu0 %v2428
    %2430 = vmatprep.subr.mxu0 0.0
    %v2431 = vand.u32 %v2291, 4294901760
    %v2432 = vsub.f32 %v2291, %v2431
    %v2433 = vand.u32 %v2432, 4294901760
    %v2434 = vsub.f32 %v2432, %v2433
    %v2435 = vand.u32 %v2434, 4294901760
    %2436 = vmatpush1.msra.mxu0 %v2435
    %2437 = vmatprep.subr.mxu0 0.0
    %v2438 = vand.u32 %v2292, 4294901760
    %v2439 = vsub.f32 %v2292, %v2438
    %v2440 = vand.u32 %v2439, 4294901760
    %v2441 = vsub.f32 %v2439, %v2440
    %v2442 = vand.u32 %v2441, 4294901760
    %2443 = vmatpush1.msra.mxu0 %v2442
    %2444 = vmatprep.subr.mxu0 0.0
    %v2445 = vand.u32 %v2293, 4294901760
    %v2446 = vsub.f32 %v2293, %v2445
    %v2447 = vand.u32 %v2446, 4294901760
    %v2448 = vsub.f32 %v2446, %v2447
    %v2449 = vand.u32 %v2448, 4294901760
    %2450 = vmatpush1.msra.mxu0 %v2449
    %2451 = vmatprep.subr.mxu0 0.0
    %v2452 = vand.u32 %v2294, 4294901760
    %v2453 = vsub.f32 %v2294, %v2452
    %v2454 = vand.u32 %v2453, 4294901760
    %v2455 = vsub.f32 %v2453, %v2454
    %v2456 = vand.u32 %v2455, 4294901760
    %2457 = vmatpush1.msra.mxu0 %v2456
    %2458 = vmatprep.subr.mxu0 0.0
    %v2459 = vand.u32 %v2295, 4294901760
    %v2460 = vsub.f32 %v2295, %v2459
    %v2461 = vand.u32 %v2460, 4294901760
    %v2462 = vsub.f32 %v2460, %v2461
    %v2463 = vand.u32 %v2462, 4294901760
    %2464 = vmatpush1.msra.mxu0 %v2463
    %2465 = vmatprep.subr.mxu0 0.0
    %v2466 = vand.u32 %v2296, 4294901760
    %v2467 = vsub.f32 %v2296, %v2466
    %v2468 = vand.u32 %v2467, 4294901760
    %v2469 = vsub.f32 %v2467, %v2468
    %v2470 = vand.u32 %v2469, 4294901760
    %2471 = vmatpush1.msra.mxu0 %v2470
    %2472 = vmatprep.subr.mxu0 0.0
    %v2473 = vand.u32 %v2297, 4294901760
    %v2474 = vsub.f32 %v2297, %v2473
    %v2475 = vand.u32 %v2474, 4294901760
    %v2476 = vsub.f32 %v2474, %v2475
    %v2477 = vand.u32 %v2476, 4294901760
    %2478 = vmatpush1.msra.mxu0 %v2477
    %2479 = vmatprep.subr.mxu0 0.0
    %2480 = vmatpush1.msra.mxu0 0.0
    %2481 = vmatprep.subr.mxu0 0.0
    %2482 = vmatpush1.msra.mxu0 0.0
    %2483 = vmatprep.subr.mxu0 0.0
    %2484 = vmatpush1.msra.mxu0 0.0
    %2485 = vmatprep.subr.mxu0 0.0
    %2486 = vmatpush1.msra.mxu0 0.0
    %2487 = vmatprep.subr.mxu0 0.0
    %2488 = vmatpush1.msra.mxu0 0.0
    %2489 = vmatprep.subr.mxu0 0.0
    %2490 = vmatpush1.msra.mxu0 0.0
    %2491 = vmatprep.subr.mxu0 0.0
    %2492 = vmatpush1.msra.mxu0 0.0
    %2493 = vmatprep.subr.mxu0 0.0
    %2494 = vmatpush1.msra.mxu0 0.0
    %2495 = vmatprep.subr.mxu0 0.0
    %2496 = vmatpush1.msra.mxu0 0.0
    %2497 = vmatprep.subr.mxu0 0.0
    %2498 = vmatpush1.msra.mxu0 0.0
    %2499 = vmatprep.subr.mxu0 0.0
    %2500 = vmatpush1.msra.mxu0 0.0
    %2501 = vmatprep.subr.mxu0 0.0
    %2502 = vmatpush1.msra.mxu0 0.0
    %2503 = vmatprep.subr.mxu0 0.0
    %2504 = vmatpush1.msra.mxu0 0.0
    %2505 = vmatprep.subr.mxu0 0.0
    %2506 = vmatpush1.msra.mxu0 0.0
    %2507 = vmatprep.subr.mxu0 0.0
    %2508 = vmatpush1.msra.mxu0 0.0
    %2509 = vmatprep.subr.mxu0 0.0
    %2510 = vmatpush1.msra.mxu0 0.0
    %2511 = vmatprep.subr.mxu0 0.0
    %2512 = vmatpush1.msra.mxu0 0.0
    %2513 = vmatprep.subr.mxu0 0.0
    %2514 = vmatpush1.msra.mxu0 0.0
    %2515 = vmatprep.subr.mxu0 0.0
    %2516 = vmatpush1.msra.mxu0 0.0
    %2517 = vmatprep.subr.mxu0 0.0
    %2518 = vmatpush1.msra.mxu0 0.0
    %2519 = vmatprep.mubr.f32.mxu0 0.0
    %v2520 = vand.u32 %v2306, 4294901760
    %2521 = vmatmul.mubr.f32.gmra.mrb[0].mxu0 %v2520
    %v2522 = vpop.f32.mrb[0].mxu0
    %v2523 = vadd.f32 %v2392, %v2522
    %v2524 = vpop.f32.mrb[0].mxu0
    %2525 = vdwg.mxu0
    %2526 = vmatprep.subr.mxu0 0.0
    %v2527 = vand.u32 %v2286, 4294901760
    %v2528 = vsub.f32 %v2286, %v2527
    %2529 = vmatpush1.msra.mxu0 %v2528
    %2530 = vmatprep.subr.mxu0 0.0
    %v2531 = vand.u32 %v2287, 4294901760
    %v2532 = vsub.f32 %v2287, %v2531
    %2533 = vmatpush1.msra.mxu0 %v2532
    %2534 = vmatprep.subr.mxu0 0.0
    %v2535 = vand.u32 %v2288, 4294901760
    %v2536 = vsub.f32 %v2288, %v2535
    %2537 = vmatpush1.msra.mxu0 %v2536
    %2538 = vmatprep.subr.mxu0 0.0
    %v2539 = vand.u32 %v2289, 4294901760
    %v2540 = vsub.f32 %v2289, %v2539
    %2541 = vmatpush1.msra.mxu0 %v2540
    %2542 = vmatprep.subr.mxu0 0.0
    %v2543 = vand.u32 %v2290, 4294901760
    %v2544 = vsub.f32 %v2290, %v2543
    %2545 = vmatpush1.msra.mxu0 %v2544
    %2546 = vmatprep.subr.mxu0 0.0
    %v2547 = vand.u32 %v2291, 4294901760
    %v2548 = vsub.f32 %v2291, %v2547
    %2549 = vmatpush1.msra.mxu0 %v2548
    %2550 = vmatprep.subr.mxu0 0.0
    %v2551 = vand.u32 %v2292, 4294901760
    %v2552 = vsub.f32 %v2292, %v2551
    %2553 = vmatpush1.msra.mxu0 %v2552
    %2554 = vmatprep.subr.mxu0 0.0
    %v2555 = vand.u32 %v2293, 4294901760
    %v2556 = vsub.f32 %v2293, %v2555
    %2557 = vmatpush1.msra.mxu0 %v2556
    %2558 = vmatprep.subr.mxu0 0.0
    %v2559 = vand.u32 %v2294, 4294901760
    %v2560 = vsub.f32 %v2294, %v2559
    %2561 = vmatpush1.msra.mxu0 %v2560
    %2562 = vmatprep.subr.mxu0 0.0
    %v2563 = vand.u32 %v2295, 4294901760
    %v2564 = vsub.f32 %v2295, %v2563
    %2565 = vmatpush1.msra.mxu0 %v2564
    %2566 = vmatprep.subr.mxu0 0.0
    %v2567 = vand.u32 %v2296, 4294901760
    %v2568 = vsub.f32 %v2296, %v2567
    %2569 = vmatpush1.msra.mxu0 %v2568
    %2570 = vmatprep.subr.mxu0 0.0
    %v2571 = vand.u32 %v2297, 4294901760
    %v2572 = vsub.f32 %v2297, %v2571
    %2573 = vmatpush1.msra.mxu0 %v2572
    %2574 = vmatprep.subr.mxu0 0.0
    %2575 = vmatpush1.msra.mxu0 0.0
    %2576 = vmatprep.subr.mxu0 0.0
    %2577 = vmatpush1.msra.mxu0 0.0
    %2578 = vmatprep.subr.mxu0 0.0
    %2579 = vmatpush1.msra.mxu0 0.0
    %2580 = vmatprep.subr.mxu0 0.0
    %2581 = vmatpush1.msra.mxu0 0.0
    %2582 = vmatprep.subr.mxu0 0.0
    %2583 = vmatpush1.msra.mxu0 0.0
    %2584 = vmatprep.subr.mxu0 0.0
    %2585 = vmatpush1.msra.mxu0 0.0
    %2586 = vmatprep.subr.mxu0 0.0
    %2587 = vmatpush1.msra.mxu0 0.0
    %2588 = vmatprep.subr.mxu0 0.0
    %2589 = vmatpush1.msra.mxu0 0.0
    %2590 = vmatprep.subr.mxu0 0.0
    %2591 = vmatpush1.msra.mxu0 0.0
    %2592 = vmatprep.subr.mxu0 0.0
    %2593 = vmatpush1.msra.mxu0 0.0
    %2594 = vmatprep.subr.mxu0 0.0
    %2595 = vmatpush1.msra.mxu0 0.0
    %2596 = vmatprep.subr.mxu0 0.0
    %2597 = vmatpush1.msra.mxu0 0.0
    %2598 = vmatprep.subr.mxu0 0.0
    %2599 = vmatpush1.msra.mxu0 0.0
    %2600 = vmatprep.subr.mxu0 0.0
    %2601 = vmatpush1.msra.mxu0 0.0
    %2602 = vmatprep.subr.mxu0 0.0
    %2603 = vmatpush1.msra.mxu0 0.0
    %2604 = vmatprep.subr.mxu0 0.0
    %2605 = vmatpush1.msra.mxu0 0.0
    %2606 = vmatprep.subr.mxu0 0.0
    %2607 = vmatpush1.msra.mxu0 0.0
    %2608 = vmatprep.subr.mxu0 0.0
    %2609 = vmatpush1.msra.mxu0 0.0
    %2610 = vmatprep.subr.mxu0 0.0
    %2611 = vmatpush1.msra.mxu0 0.0
    %2612 = vmatprep.subr.mxu0 0.0
    %2613 = vmatpush1.msra.mxu0 0.0
    %2614 = vmatprep.mubr.f32.mxu0 0.0
    %v2615 = vand.u32 %v2306, 4294901760
    %v2616 = vsub.f32 %v2306, %v2615
    %2617 = vmatmul.mubr.f32.gmra.mrb[0].mxu0 %v2616
    %v2618 = vpop.f32.mrb[0].mxu0
    %v2619 = vadd.f32 %v2523, %v2618
    %v2620 = vpop.f32.mrb[0].mxu0
    %2621 = vdwg.mxu0
    %2622 = vmatprep.subr.mxu0 0.0
    %v2623 = vand.u32 %v2286, 4294901760
    %2624 = vmatpush1.msra.mxu0 %v2623
    %2625 = vmatprep.subr.mxu0 0.0
    %v2626 = vand.u32 %v2287, 4294901760
    %2627 = vmatpush1.msra.mxu0 %v2626
    %2628 = vmatprep.subr.mxu0 0.0
    %v2629 = vand.u32 %v2288, 4294901760
    %2630 = vmatpush1.msra.mxu0 %v2629
    %2631 = vmatprep.subr.mxu0 0.0
    %v2632 = vand.u32 %v2289, 4294901760
    %2633 = vmatpush1.msra.mxu0 %v2632
    %2634 = vmatprep.subr.mxu0 0.0
    %v2635 = vand.u32 %v2290, 4294901760
    %2636 = vmatpush1.msra.mxu0 %v2635
    %2637 = vmatprep.subr.mxu0 0.0
    %v2638 = vand.u32 %v2291, 4294901760
    %2639 = vmatpush1.msra.mxu0 %v2638
    %2640 = vmatprep.subr.mxu0 0.0
    %v2641 = vand.u32 %v2292, 4294901760
    %2642 = vmatpush1.msra.mxu0 %v2641
    %2643 = vmatprep.subr.mxu0 0.0
    %v2644 = vand.u32 %v2293, 4294901760
    %2645 = vmatpush1.msra.mxu0 %v2644
    %2646 = vmatprep.subr.mxu0 0.0
    %v2647 = vand.u32 %v2294, 4294901760
    %2648 = vmatpush1.msra.mxu0 %v2647
    %2649 = vmatprep.subr.mxu0 0.0
    %v2650 = vand.u32 %v2295, 4294901760
    %2651 = vmatpush1.msra.mxu0 %v2650
    %2652 = vmatprep.subr.mxu0 0.0
    %v2653 = vand.u32 %v2296, 4294901760
    %2654 = vmatpush1.msra.mxu0 %v2653
    %2655 = vmatprep.subr.mxu0 0.0
    %v2656 = vand.u32 %v2297, 4294901760
    %2657 = vmatpush1.msra.mxu0 %v2656
    %2658 = vmatprep.subr.mxu0 0.0
    %2659 = vmatpush1.msra.mxu0 0.0
    %2660 = vmatprep.subr.mxu0 0.0
    %2661 = vmatpush1.msra.mxu0 0.0
    %2662 = vmatprep.subr.mxu0 0.0
    %2663 = vmatpush1.msra.mxu0 0.0
    %2664 = vmatprep.subr.mxu0 0.0
    %2665 = vmatpush1.msra.mxu0 0.0
    %2666 = vmatprep.subr.mxu0 0.0
    %2667 = vmatpush1.msra.mxu0 0.0
    %2668 = vmatprep.subr.mxu0 0.0
    %2669 = vmatpush1.msra.mxu0 0.0
    %2670 = vmatprep.subr.mxu0 0.0
    %2671 = vmatpush1.msra.mxu0 0.0
    %2672 = vmatprep.subr.mxu0 0.0
    %2673 = vmatpush1.msra.mxu0 0.0
    %2674 = vmatprep.subr.mxu0 0.0
    %2675 = vmatpush1.msra.mxu0 0.0
    %2676 = vmatprep.subr.mxu0 0.0
    %2677 = vmatpush1.msra.mxu0 0.0
    %2678 = vmatprep.subr.mxu0 0.0
    %2679 = vmatpush1.msra.mxu0 0.0
    %2680 = vmatprep.subr.mxu0 0.0
    %2681 = vmatpush1.msra.mxu0 0.0
    %2682 = vmatprep.subr.mxu0 0.0
    %2683 = vmatpush1.msra.mxu0 0.0
    %2684 = vmatprep.subr.mxu0 0.0
    %2685 = vmatpush1.msra.mxu0 0.0
    %2686 = vmatprep.subr.mxu0 0.0
    %2687 = vmatpush1.msra.mxu0 0.0
    %2688 = vmatprep.subr.mxu0 0.0
    %2689 = vmatpush1.msra.mxu0 0.0
    %2690 = vmatprep.subr.mxu0 0.0
    %2691 = vmatpush1.msra.mxu0 0.0
    %2692 = vmatprep.subr.mxu0 0.0
    %2693 = vmatpush1.msra.mxu0 0.0
    %2694 = vmatprep.subr.mxu0 0.0
    %2695 = vmatpush1.msra.mxu0 0.0
    %2696 = vmatprep.subr.mxu0 0.0
    %2697 = vmatpush1.msra.mxu0 0.0
    %2698 = vmatprep.mubr.f32.mxu0 0.0
    %v2699 = vand.u32 %v2306, 4294901760
    %v2700 = vsub.f32 %v2306, %v2699
    %v2701 = vand.u32 %v2700, 4294901760
    %2702 = vmatmul.mubr.f32.gmra.mrb[0].mxu0 %v2701
    %v2703 = vpop.f32.mrb[0].mxu0
    %v2704 = vadd.f32 %v2619, %v2703
    %v2705 = vpop.f32.mrb[0].mxu0
    %2706 = vdwg.mxu0
    %2707 = vmatprep.subr.mxu0 0.0
    %v2708 = vand.u32 %v2286, 4294901760
    %v2709 = vsub.f32 %v2286, %v2708
    %v2710 = vand.u32 %v2709, 4294901760
    %2711 = vmatpush1.msra.mxu0 %v2710
    %2712 = vmatprep.subr.mxu0 0.0
    %v2713 = vand.u32 %v2287, 4294901760
    %v2714 = vsub.f32 %v2287, %v2713
    %v2715 = vand.u32 %v2714, 4294901760
    %2716 = vmatpush1.msra.mxu0 %v2715
    %2717 = vmatprep.subr.mxu0 0.0
    %v2718 = vand.u32 %v2288, 4294901760
    %v2719 = vsub.f32 %v2288, %v2718
    %v2720 = vand.u32 %v2719, 4294901760
    %2721 = vmatpush1.msra.mxu0 %v2720
    %2722 = vmatprep.subr.mxu0 0.0
    %v2723 = vand.u32 %v2289, 4294901760
    %v2724 = vsub.f32 %v2289, %v2723
    %v2725 = vand.u32 %v2724, 4294901760
    %2726 = vmatpush1.msra.mxu0 %v2725
    %2727 = vmatprep.subr.mxu0 0.0
    %v2728 = vand.u32 %v2290, 4294901760
    %v2729 = vsub.f32 %v2290, %v2728
    %v2730 = vand.u32 %v2729, 4294901760
    %2731 = vmatpush1.msra.mxu0 %v2730
    %2732 = vmatprep.subr.mxu0 0.0
    %v2733 = vand.u32 %v2291, 4294901760
    %v2734 = vsub.f32 %v2291, %v2733
    %v2735 = vand.u32 %v2734, 4294901760
    %2736 = vmatpush1.msra.mxu0 %v2735
    %2737 = vmatprep.subr.mxu0 0.0
    %v2738 = vand.u32 %v2292, 4294901760
    %v2739 = vsub.f32 %v2292, %v2738
    %v2740 = vand.u32 %v2739, 4294901760
    %2741 = vmatpush1.msra.mxu0 %v2740
    %2742 = vmatprep.subr.mxu0 0.0
    %v2743 = vand.u32 %v2293, 4294901760
    %v2744 = vsub.f32 %v2293, %v2743
    %v2745 = vand.u32 %v2744, 4294901760
    %2746 = vmatpush1.msra.mxu0 %v2745
    %2747 = vmatprep.subr.mxu0 0.0
    %v2748 = vand.u32 %v2294, 4294901760
    %v2749 = vsub.f32 %v2294, %v2748
    %v2750 = vand.u32 %v2749, 4294901760
    %2751 = vmatpush1.msra.mxu0 %v2750
    %2752 = vmatprep.subr.mxu0 0.0
    %v2753 = vand.u32 %v2295, 4294901760
    %v2754 = vsub.f32 %v2295, %v2753
    %v2755 = vand.u32 %v2754, 4294901760
    %2756 = vmatpush1.msra.mxu0 %v2755
    %2757 = vmatprep.subr.mxu0 0.0
    %v2758 = vand.u32 %v2296, 4294901760
    %v2759 = vsub.f32 %v2296, %v2758
    %v2760 = vand.u32 %v2759, 4294901760
    %2761 = vmatpush1.msra.mxu0 %v2760
    %2762 = vmatprep.subr.mxu0 0.0
    %v2763 = vand.u32 %v2297, 4294901760
    %v2764 = vsub.f32 %v2297, %v2763
    %v2765 = vand.u32 %v2764, 4294901760
    %2766 = vmatpush1.msra.mxu0 %v2765
    %2767 = vmatprep.subr.mxu0 0.0
    %2768 = vmatpush1.msra.mxu0 0.0
    %2769 = vmatprep.subr.mxu0 0.0
    %2770 = vmatpush1.msra.mxu0 0.0
    %2771 = vmatprep.subr.mxu0 0.0
    %2772 = vmatpush1.msra.mxu0 0.0
    %2773 = vmatprep.subr.mxu0 0.0
    %2774 = vmatpush1.msra.mxu0 0.0
    %2775 = vmatprep.subr.mxu0 0.0
    %2776 = vmatpush1.msra.mxu0 0.0
    %2777 = vmatprep.subr.mxu0 0.0
    %2778 = vmatpush1.msra.mxu0 0.0
    %2779 = vmatprep.subr.mxu0 0.0
    %2780 = vmatpush1.msra.mxu0 0.0
    %2781 = vmatprep.subr.mxu0 0.0
    %2782 = vmatpush1.msra.mxu0 0.0
    %2783 = vmatprep.subr.mxu0 0.0
    %2784 = vmatpush1.msra.mxu0 0.0
    %2785 = vmatprep.subr.mxu0 0.0
    %2786 = vmatpush1.msra.mxu0 0.0
    %2787 = vmatprep.subr.mxu0 0.0
    %2788 = vmatpush1.msra.mxu0 0.0
    %2789 = vmatprep.subr.mxu0 0.0
    %2790 = vmatpush1.msra.mxu0 0.0
    %2791 = vmatprep.subr.mxu0 0.0
    %2792 = vmatpush1.msra.mxu0 0.0
    %2793 = vmatprep.subr.mxu0 0.0
    %2794 = vmatpush1.msra.mxu0 0.0
    %2795 = vmatprep.subr.mxu0 0.0
    %2796 = vmatpush1.msra.mxu0 0.0
    %2797 = vmatprep.subr.mxu0 0.0
    %2798 = vmatpush1.msra.mxu0 0.0
    %2799 = vmatprep.subr.mxu0 0.0
    %2800 = vmatpush1.msra.mxu0 0.0
    %2801 = vmatprep.subr.mxu0 0.0
    %2802 = vmatpush1.msra.mxu0 0.0
    %2803 = vmatprep.subr.mxu0 0.0
    %2804 = vmatpush1.msra.mxu0 0.0
    %2805 = vmatprep.subr.mxu0 0.0
    %2806 = vmatpush1.msra.mxu0 0.0
    %2807 = vmatprep.mubr.f32.mxu0 0.0
    %v2808 = vand.u32 %v2306, 4294901760
    %2809 = vmatmul.mubr.f32.gmra.mrb[0].mxu0 %v2808
    %v2810 = vpop.f32.mrb[0].mxu0
    %v2811 = vadd.f32 %v2704, %v2810
    %v2812 = vpop.f32.mrb[0].mxu0
    %2813 = vdwg.mxu0
    %2814 = vmatprep.subr.mxu0 0.0
    %v2815 = vand.u32 %v2286, 4294901760
    %2816 = vmatpush1.msra.mxu0 %v2815
    %2817 = vmatprep.subr.mxu0 0.0
    %v2818 = vand.u32 %v2287, 4294901760
    %2819 = vmatpush1.msra.mxu0 %v2818
    %2820 = vmatprep.subr.mxu0 0.0
    %v2821 = vand.u32 %v2288, 4294901760
    %2822 = vmatpush1.msra.mxu0 %v2821
    %2823 = vmatprep.subr.mxu0 0.0
    %v2824 = vand.u32 %v2289, 4294901760
    %2825 = vmatpush1.msra.mxu0 %v2824
    %2826 = vmatprep.subr.mxu0 0.0
    %v2827 = vand.u32 %v2290, 4294901760
    %2828 = vmatpush1.msra.mxu0 %v2827
    %2829 = vmatprep.subr.mxu0 0.0
    %v2830 = vand.u32 %v2291, 4294901760
    %2831 = vmatpush1.msra.mxu0 %v2830
    %2832 = vmatprep.subr.mxu0 0.0
    %v2833 = vand.u32 %v2292, 4294901760
    %2834 = vmatpush1.msra.mxu0 %v2833
    %2835 = vmatprep.subr.mxu0 0.0
    %v2836 = vand.u32 %v2293, 4294901760
    %2837 = vmatpush1.msra.mxu0 %v2836
    %2838 = vmatprep.subr.mxu0 0.0
    %v2839 = vand.u32 %v2294, 4294901760
    %2840 = vmatpush1.msra.mxu0 %v2839
    %2841 = vmatprep.subr.mxu0 0.0
    %v2842 = vand.u32 %v2295, 4294901760
    %2843 = vmatpush1.msra.mxu0 %v2842
    %2844 = vmatprep.subr.mxu0 0.0
    %v2845 = vand.u32 %v2296, 4294901760
    %2846 = vmatpush1.msra.mxu0 %v2845
    %2847 = vmatprep.subr.mxu0 0.0
    %v2848 = vand.u32 %v2297, 4294901760
    %2849 = vmatpush1.msra.mxu0 %v2848
    %2850 = vmatprep.subr.mxu0 0.0
    %2851 = vmatpush1.msra.mxu0 0.0
    %2852 = vmatprep.subr.mxu0 0.0
    %2853 = vmatpush1.msra.mxu0 0.0
    %2854 = vmatprep.subr.mxu0 0.0
    %2855 = vmatpush1.msra.mxu0 0.0
    %2856 = vmatprep.subr.mxu0 0.0
    %2857 = vmatpush1.msra.mxu0 0.0
    %2858 = vmatprep.subr.mxu0 0.0
    %2859 = vmatpush1.msra.mxu0 0.0
    %2860 = vmatprep.subr.mxu0 0.0
    %2861 = vmatpush1.msra.mxu0 0.0
    %2862 = vmatprep.subr.mxu0 0.0
    %2863 = vmatpush1.msra.mxu0 0.0
    %2864 = vmatprep.subr.mxu0 0.0
    %2865 = vmatpush1.msra.mxu0 0.0
    %2866 = vmatprep.subr.mxu0 0.0
    %2867 = vmatpush1.msra.mxu0 0.0
    %2868 = vmatprep.subr.mxu0 0.0
    %2869 = vmatpush1.msra.mxu0 0.0
    %2870 = vmatprep.subr.mxu0 0.0
    %2871 = vmatpush1.msra.mxu0 0.0
    %2872 = vmatprep.subr.mxu0 0.0
    %2873 = vmatpush1.msra.mxu0 0.0
    %2874 = vmatprep.subr.mxu0 0.0
    %2875 = vmatpush1.msra.mxu0 0.0
    %2876 = vmatprep.subr.mxu0 0.0
    %2877 = vmatpush1.msra.mxu0 0.0
    %2878 = vmatprep.subr.mxu0 0.0
    %2879 = vmatpush1.msra.mxu0 0.0
    %2880 = vmatprep.subr.mxu0 0.0
    %2881 = vmatpush1.msra.mxu0 0.0
    %2882 = vmatprep.subr.mxu0 0.0
    %2883 = vmatpush1.msra.mxu0 0.0
    %2884 = vmatprep.subr.mxu0 0.0
    %2885 = vmatpush1.msra.mxu0 0.0
    %2886 = vmatprep.subr.mxu0 0.0
    %2887 = vmatpush1.msra.mxu0 0.0
    %2888 = vmatprep.subr.mxu0 0.0
    %2889 = vmatpush1.msra.mxu0 0.0
    %2890 = vmatprep.mubr.f32.mxu0 0.0
    %v2891 = vand.u32 %v2306, 4294901760
    %2892 = vmatmul.mubr.f32.gmra.mrb[0].mxu0 %v2891
    %v2893 = vpop.f32.mrb[0].mxu0
    %v2894 = vadd.f32 %v2811, %v2893
    %v2895 = vpop.f32.mrb[0].mxu0
    %2896 = vdwg.mxu0
    %v2897 = vld [vmem:[%s7] sm:$0xff]
    %v2898 = vld [vmem:[%s7 + $0x8] sm:$0xff]
    %v2899 = vld [vmem:[%s7 + $0x10] sm:$0xff]
    %v2900 = vld [vmem:[%s7 + $0x18] sm:$0xff]
    %v2901 = vld [vmem:[%s8] sm:$0xff]
    %v2902 = vld [vmem:[%s8 + $0x8] sm:$0xff]
    %v2903 = vld [vmem:[%s8 + $0x10] sm:$0xff]
    %v2904 = vld [vmem:[%s8 + $0x18] sm:$0xff]
    %2906 = vset.pattern.permute.xlu0 0
    %2907 = vperm.xlu0 %2906, %v2901
    %v2908 = vpop.permute.xlu0 %2907
    %2911 = vset.pattern.permute.xlu0 0
    %2912 = vperm.xlu0 %2911, %v2902
    %v2913 = vpop.permute.xlu0 %2912
    %2916 = vset.pattern.permute.xlu0 0
    %2917 = vperm.xlu0 %2916, %v2903
    %v2918 = vpop.permute.xlu0 %2917
    %2921 = vset.pattern.permute.xlu0 0
    %2922 = vperm.xlu0 %2921, %v2904
    %v2923 = vpop.permute.xlu0 %2922
    %v2926 = vsel %vm1187, %v2897, 0
    %v2929 = vsel %vm1187, %v2898, 0
    %v2932 = vsel %vm1187, %v2899, 0
    %v2935 = vsel %vm1187, %v2900, 0
    %2937 = vmatprep.subr.mxu0 0.0
    %v2938 = vand.u32 %v2286, 4294901760
    %2939 = vmatpush1.msra.mxu0 %v2938
    %2940 = vmatprep.subr.mxu0 0.0
    %v2941 = vand.u32 %v2287, 4294901760
    %2942 = vmatpush1.msra.mxu0 %v2941
    %2943 = vmatprep.subr.mxu0 0.0
    %v2944 = vand.u32 %v2288, 4294901760
    %2945 = vmatpush1.msra.mxu0 %v2944
    %2946 = vmatprep.subr.mxu0 0.0
    %v2947 = vand.u32 %v2289, 4294901760
    %2948 = vmatpush1.msra.mxu0 %v2947
    %2949 = vmatprep.subr.mxu0 0.0
    %v2950 = vand.u32 %v2290, 4294901760
    %2951 = vmatpush1.msra.mxu0 %v2950
    %2952 = vmatprep.subr.mxu0 0.0
    %v2953 = vand.u32 %v2291, 4294901760
    %2954 = vmatpush1.msra.mxu0 %v2953
    %2955 = vmatprep.subr.mxu0 0.0
    %v2956 = vand.u32 %v2292, 4294901760
    %2957 = vmatpush1.msra.mxu0 %v2956
    %2958 = vmatprep.subr.mxu0 0.0
    %v2959 = vand.u32 %v2293, 4294901760
    %2960 = vmatpush1.msra.mxu0 %v2959
    %2961 = vmatprep.subr.mxu0 0.0
    %v2962 = vand.u32 %v2294, 4294901760
    %2963 = vmatpush1.msra.mxu0 %v2962
    %2964 = vmatprep.subr.mxu0 0.0
    %v2965 = vand.u32 %v2295, 4294901760
    %2966 = vmatpush1.msra.mxu0 %v2965
    %2967 = vmatprep.subr.mxu0 0.0
    %v2968 = vand.u32 %v2296, 4294901760
    %2969 = vmatpush1.msra.mxu0 %v2968
    %2970 = vmatprep.subr.mxu0 0.0
    %v2971 = vand.u32 %v2297, 4294901760
    %2972 = vmatpush1.msra.mxu0 %v2971
    %2973 = vmatprep.subr.mxu0 0.0
    %2974 = vmatpush1.msra.mxu0 0.0
    %2975 = vmatprep.subr.mxu0 0.0
    %2976 = vmatpush1.msra.mxu0 0.0
    %2977 = vmatprep.subr.mxu0 0.0
    %2978 = vmatpush1.msra.mxu0 0.0
    %2979 = vmatprep.subr.mxu0 0.0
    %2980 = vmatpush1.msra.mxu0 0.0
    %2981 = vmatprep.subr.mxu0 0.0
    %2982 = vmatpush1.msra.mxu0 0.0
    %2983 = vmatprep.subr.mxu0 0.0
    %2984 = vmatpush1.msra.mxu0 0.0
    %2985 = vmatprep.subr.mxu0 0.0
    %2986 = vmatpush1.msra.mxu0 0.0
    %2987 = vmatprep.subr.mxu0 0.0
    %2988 = vmatpush1.msra.mxu0 0.0
    %2989 = vmatprep.subr.mxu0 0.0
    %2990 = vmatpush1.msra.mxu0 0.0
    %2991 = vmatprep.subr.mxu0 0.0
    %2992 = vmatpush1.msra.mxu0 0.0
    %2993 = vmatprep.subr.mxu0 0.0
    %2994 = vmatpush1.msra.mxu0 0.0
    %2995 = vmatprep.subr.mxu0 0.0
    %2996 = vmatpush1.msra.mxu0 0.0
    %2997 = vmatprep.subr.mxu0 0.0
    %2998 = vmatpush1.msra.mxu0 0.0
    %2999 = vmatprep.subr.mxu0 0.0
    %3000 = vmatpush1.msra.mxu0 0.0
    %3001 = vmatprep.subr.mxu0 0.0
    %3002 = vmatpush1.msra.mxu0 0.0
    %3003 = vmatprep.subr.mxu0 0.0
    %3004 = vmatpush1.msra.mxu0 0.0
    %3005 = vmatprep.subr.mxu0 0.0
    %3006 = vmatpush1.msra.mxu0 0.0
    %3007 = vmatprep.subr.mxu0 0.0
    %3008 = vmatpush1.msra.mxu0 0.0
    %3009 = vmatprep.subr.mxu0 0.0
    %3010 = vmatpush1.msra.mxu0 0.0
    %3011 = vmatprep.subr.mxu0 0.0
    %3012 = vmatpush1.msra.mxu0 0.0
    %3013 = vmatprep.mubr.f32.mxu0 0.0
    %v3014 = vand.u32 %v2926, 4294901760
    %v3015 = vsub.f32 %v2926, %v3014
    %v3016 = vand.u32 %v3015, 4294901760
    %v3017 = vsub.f32 %v3015, %v3016
    %v3018 = vand.u32 %v3017, 4294901760
    %3019 = vmatmul.mubr.f32.gmra.mrb[0].mxu0 %v3018
    %v3020 = vpop.f32.mrb[0].mxu0
    %v3021 = vadd.f32 %v2908, %v3020
    %v3022 = vpop.f32.mrb[0].mxu0
    %3023 = vmatprep.mubr.f32.mxu0 0.0
    %v3024 = vand.u32 %v2929, 4294901760
    %v3025 = vsub.f32 %v2929, %v3024
    %v3026 = vand.u32 %v3025, 4294901760
    %v3027 = vsub.f32 %v3025, %v3026
    %v3028 = vand.u32 %v3027, 4294901760
    %3029 = vmatmul.mubr.f32.gmra.mrb[0].mxu0 %v3028
    %v3030 = vpop.f32.mrb[0].mxu0
    %v3031 = vadd.f32 %v2913, %v3030
    %v3032 = vpop.f32.mrb[0].mxu0
    %3033 = vmatprep.mubr.f32.mxu0 0.0
    %v3034 = vand.u32 %v2932, 4294901760
    %v3035 = vsub.f32 %v2932, %v3034
    %v3036 = vand.u32 %v3035, 4294901760
    %v3037 = vsub.f32 %v3035, %v3036
    %v3038 = vand.u32 %v3037, 4294901760
    %3039 = vmatmul.mubr.f32.gmra.mrb[0].mxu0 %v3038
    %v3040 = vpop.f32.mrb[0].mxu0
    %v3041 = vadd.f32 %v2918, %v3040
    %v3042 = vpop.f32.mrb[0].mxu0
    %3043 = vmatprep.mubr.f32.mxu0 0.0
    %v3044 = vand.u32 %v2935, 4294901760
    %v3045 = vsub.f32 %v2935, %v3044
    %v3046 = vand.u32 %v3045, 4294901760
    %v3047 = vsub.f32 %v3045, %v3046
    %v3048 = vand.u32 %v3047, 4294901760
    %3049 = vmatmul.mubr.f32.gmra.mrb[0].mxu0 %v3048
    %v3050 = vpop.f32.mrb[0].mxu0
    %v3051 = vadd.f32 %v2923, %v3050
    %v3052 = vpop.f32.mrb[0].mxu0
    %3053 = vdwg.mxu0
    %3054 = vmatprep.subr.mxu0 0.0
    %v3055 = vand.u32 %v2286, 4294901760
    %v3056 = vsub.f32 %v2286, %v3055
    %v3057 = vand.u32 %v3056, 4294901760
    %v3058 = vsub.f32 %v3056, %v3057
    %v3059 = vand.u32 %v3058, 4294901760
    %3060 = vmatpush1.msra.mxu0 %v3059
    %3061 = vmatprep.subr.mxu0 0.0
    %v3062 = vand.u32 %v2287, 4294901760
    %v3063 = vsub.f32 %v2287, %v3062
    %v3064 = vand.u32 %v3063, 4294901760
    %v3065 = vsub.f32 %v3063, %v3064
    %v3066 = vand.u32 %v3065, 4294901760
    %3067 = vmatpush1.msra.mxu0 %v3066
    %3068 = vmatprep.subr.mxu0 0.0
    %v3069 = vand.u32 %v2288, 4294901760
    %v3070 = vsub.f32 %v2288, %v3069
    %v3071 = vand.u32 %v3070, 4294901760
    %v3072 = vsub.f32 %v3070, %v3071
    %v3073 = vand.u32 %v3072, 4294901760
    %3074 = vmatpush1.msra.mxu0 %v3073
    %3075 = vmatprep.subr.mxu0 0.0
    %v3076 = vand.u32 %v2289, 4294901760
    %v3077 = vsub.f32 %v2289, %v3076
    %v3078 = vand.u32 %v3077, 4294901760
    %v3079 = vsub.f32 %v3077, %v3078
    %v3080 = vand.u32 %v3079, 4294901760
    %3081 = vmatpush1.msra.mxu0 %v3080
    %3082 = vmatprep.subr.mxu0 0.0
    %v3083 = vand.u32 %v2290, 4294901760
    %v3084 = vsub.f32 %v2290, %v3083
    %v3085 = vand.u32 %v3084, 4294901760
    %v3086 = vsub.f32 %v3084, %v3085
    %v3087 = vand.u32 %v3086, 4294901760
    %3088 = vmatpush1.msra.mxu0 %v3087
    %3089 = vmatprep.subr.mxu0 0.0
    %v3090 = vand.u32 %v2291, 4294901760
    %v3091 = vsub.f32 %v2291, %v3090
    %v3092 = vand.u32 %v3091, 4294901760
    %v3093 = vsub.f32 %v3091, %v3092
    %v3094 = vand.u32 %v3093, 4294901760
    %3095 = vmatpush1.msra.mxu0 %v3094
    %3096 = vmatprep.subr.mxu0 0.0
    %v3097 = vand.u32 %v2292, 4294901760
    %v3098 = vsub.f32 %v2292, %v3097
    %v3099 = vand.u32 %v3098, 4294901760
    %v3100 = vsub.f32 %v3098, %v3099
    %v3101 = vand.u32 %v3100, 4294901760
    %3102 = vmatpush1.msra.mxu0 %v3101
    %3103 = vmatprep.subr.mxu0 0.0
    %v3104 = vand.u32 %v2293, 4294901760
    %v3105 = vsub.f32 %v2293, %v3104
    %v3106 = vand.u32 %v3105, 4294901760
    %v3107 = vsub.f32 %v3105, %v3106
    %v3108 = vand.u32 %v3107, 4294901760
    %3109 = vmatpush1.msra.mxu0 %v3108
    %3110 = vmatprep.subr.mxu0 0.0
    %v3111 = vand.u32 %v2294, 4294901760
    %v3112 = vsub.f32 %v2294, %v3111
    %v3113 = vand.u32 %v3112, 4294901760
    %v3114 = vsub.f32 %v3112, %v3113
    %v3115 = vand.u32 %v3114, 4294901760
    %3116 = vmatpush1.msra.mxu0 %v3115
    %3117 = vmatprep.subr.mxu0 0.0
    %v3118 = vand.u32 %v2295, 4294901760
    %v3119 = vsub.f32 %v2295, %v3118
    %v3120 = vand.u32 %v3119, 4294901760
    %v3121 = vsub.f32 %v3119, %v3120
    %v3122 = vand.u32 %v3121, 4294901760
    %3123 = vmatpush1.msra.mxu0 %v3122
    %3124 = vmatprep.subr.mxu0 0.0
    %v3125 = vand.u32 %v2296, 4294901760
    %v3126 = vsub.f32 %v2296, %v3125
    %v3127 = vand.u32 %v3126, 4294901760
    %v3128 = vsub.f32 %v3126, %v3127
    %v3129 = vand.u32 %v3128, 4294901760
    %3130 = vmatpush1.msra.mxu0 %v3129
    %3131 = vmatprep.subr.mxu0 0.0
    %v3132 = vand.u32 %v2297, 4294901760
    %v3133 = vsub.f32 %v2297, %v3132
    %v3134 = vand.u32 %v3133, 4294901760
    %v3135 = vsub.f32 %v3133, %v3134
    %v3136 = vand.u32 %v3135, 4294901760
    %3137 = vmatpush1.msra.mxu0 %v3136
    %3138 = vmatprep.subr.mxu0 0.0
    %3139 = vmatpush1.msra.mxu0 0.0
    %3140 = vmatprep.subr.mxu0 0.0
    %3141 = vmatpush1.msra.mxu0 0.0
    %3142 = vmatprep.subr.mxu0 0.0
    %3143 = vmatpush1.msra.mxu0 0.0
    %3144 = vmatprep.subr.mxu0 0.0
    %3145 = vmatpush1.msra.mxu0 0.0
    %3146 = vmatprep.subr.mxu0 0.0
    %3147 = vmatpush1.msra.mxu0 0.0
    %3148 = vmatprep.subr.mxu0 0.0
    %3149 = vmatpush1.msra.mxu0 0.0
    %3150 = vmatprep.subr.mxu0 0.0
    %3151 = vmatpush1.msra.mxu0 0.0
    %3152 = vmatprep.subr.mxu0 0.0
    %3153 = vmatpush1.msra.mxu0 0.0
    %3154 = vmatprep.subr.mxu0 0.0
    %3155 = vmatpush1.msra.mxu0 0.0
    %3156 = vmatprep.subr.mxu0 0.0
    %3157 = vmatpush1.msra.mxu0 0.0
    %3158 = vmatprep.subr.mxu0 0.0
    %3159 = vmatpush1.msra.mxu0 0.0
    %3160 = vmatprep.subr.mxu0 0.0
    %3161 = vmatpush1.msra.mxu0 0.0
    %3162 = vmatprep.subr.mxu0 0.0
    %3163 = vmatpush1.msra.mxu0 0.0
    %3164 = vmatprep.subr.mxu0 0.0
    %3165 = vmatpush1.msra.mxu0 0.0
    %3166 = vmatprep.subr.mxu0 0.0
    %3167 = vmatpush1.msra.mxu0 0.0
    %3168 = vmatprep.subr.mxu0 0.0
    %3169 = vmatpush1.msra.mxu0 0.0
    %3170 = vmatprep.subr.mxu0 0.0
    %3171 = vmatpush1.msra.mxu0 0.0
    %3172 = vmatprep.subr.mxu0 0.0
    %3173 = vmatpush1.msra.mxu0 0.0
    %3174 = vmatprep.subr.mxu0 0.0
    %3175 = vmatpush1.msra.mxu0 0.0
    %3176 = vmatprep.subr.mxu0 0.0
    %3177 = vmatpush1.msra.mxu0 0.0
    %3178 = vmatprep.mubr.f32.mxu0 0.0
    %v3179 = vand.u32 %v2926, 4294901760
    %3180 = vmatmul.mubr.f32.gmra.mrb[0].mxu0 %v3179
    %v3181 = vpop.f32.mrb[0].mxu0
    %v3182 = vadd.f32 %v3021, %v3181
    %v3183 = vpop.f32.mrb[0].mxu0
    %3184 = vmatprep.mubr.f32.mxu0 0.0
    %v3185 = vand.u32 %v2929, 4294901760
    %3186 = vmatmul.mubr.f32.gmra.mrb[0].mxu0 %v3185
    %v3187 = vpop.f32.mrb[0].mxu0
    %v3188 = vadd.f32 %v3031, %v3187
    %v3189 = vpop.f32.mrb[0].mxu0
    %3190 = vmatprep.mubr.f32.mxu0 0.0
    %v3191 = vand.u32 %v2932, 4294901760
    %3192 = vmatmul.mubr.f32.gmra.mrb[0].mxu0 %v3191
    %v3193 = vpop.f32.mrb[0].mxu0
    %v3194 = vadd.f32 %v3041, %v3193
    %v3195 = vpop.f32.mrb[0].mxu0
    %3196 = vmatprep.mubr.f32.mxu0 0.0
    %v3197 = vand.u32 %v2935, 4294901760
    %3198 = vmatmul.mubr.f32.gmra.mrb[0].mxu0 %v3197
    %v3199 = vpop.f32.mrb[0].mxu0
    %v3200 = vadd.f32 %v3051, %v3199
    %v3201 = vpop.f32.mrb[0].mxu0
    %3202 = vdwg.mxu0
    %3203 = vmatprep.subr.mxu0 0.0
    %v3204 = vand.u32 %v2286, 4294901760
    %v3205 = vsub.f32 %v2286, %v3204
    %3206 = vmatpush1.msra.mxu0 %v3205
    %3207 = vmatprep.subr.mxu0 0.0
    %v3208 = vand.u32 %v2287, 4294901760
    %v3209 = vsub.f32 %v2287, %v3208
    %3210 = vmatpush1.msra.mxu0 %v3209
    %3211 = vmatprep.subr.mxu0 0.0
    %v3212 = vand.u32 %v2288, 4294901760
    %v3213 = vsub.f32 %v2288, %v3212
    %3214 = vmatpush1.msra.mxu0 %v3213
    %3215 = vmatprep.subr.mxu0 0.0
    %v3216 = vand.u32 %v2289, 4294901760
    %v3217 = vsub.f32 %v2289, %v3216
    %3218 = vmatpush1.msra.mxu0 %v3217
    %3219 = vmatprep.subr.mxu0 0.0
    %v3220 = vand.u32 %v2290, 4294901760
    %v3221 = vsub.f32 %v2290, %v3220
    %3222 = vmatpush1.msra.mxu0 %v3221
    %3223 = vmatprep.subr.mxu0 0.0
    %v3224 = vand.u32 %v2291, 4294901760
    %v3225 = vsub.f32 %v2291, %v3224
    %3226 = vmatpush1.msra.mxu0 %v3225
    %3227 = vmatprep.subr.mxu0 0.0
    %v3228 = vand.u32 %v2292, 4294901760
    %v3229 = vsub.f32 %v2292, %v3228
    %3230 = vmatpush1.msra.mxu0 %v3229
    %3231 = vmatprep.subr.mxu0 0.0
    %v3232 = vand.u32 %v2293, 4294901760
    %v3233 = vsub.f32 %v2293, %v3232
    %3234 = vmatpush1.msra.mxu0 %v3233
    %3235 = vmatprep.subr.mxu0 0.0
    %v3236 = vand.u32 %v2294, 4294901760
    %v3237 = vsub.f32 %v2294, %v3236
    %3238 = vmatpush1.msra.mxu0 %v3237
    %3239 = vmatprep.subr.mxu0 0.0
    %v3240 = vand.u32 %v2295, 4294901760
    %v3241 = vsub.f32 %v2295, %v3240
    %3242 = vmatpush1.msra.mxu0 %v3241
    %3243 = vmatprep.subr.mxu0 0.0
    %v3244 = vand.u32 %v2296, 4294901760
    %v3245 = vsub.f32 %v2296, %v3244
    %3246 = vmatpush1.msra.mxu0 %v3245
    %3247 = vmatprep.subr.mxu0 0.0
    %v3248 = vand.u32 %v2297, 4294901760
    %v3249 = vsub.f32 %v2297, %v3248
    %3250 = vmatpush1.msra.mxu0 %v3249
    %3251 = vmatprep.subr.mxu0 0.0
    %3252 = vmatpush1.msra.mxu0 0.0
    %3253 = vmatprep.subr.mxu0 0.0
    %3254 = vmatpush1.msra.mxu0 0.0
    %3255 = vmatprep.subr.mxu0 0.0
    %3256 = vmatpush1.msra.mxu0 0.0
    %3257 = vmatprep.subr.mxu0 0.0
    %3258 = vmatpush1.msra.mxu0 0.0
    %3259 = vmatprep.subr.mxu0 0.0
    %3260 = vmatpush1.msra.mxu0 0.0
    %3261 = vmatprep.subr.mxu0 0.0
    %3262 = vmatpush1.msra.mxu0 0.0
    %3263 = vmatprep.subr.mxu0 0.0
    %3264 = vmatpush1.msra.mxu0 0.0
    %3265 = vmatprep.subr.mxu0 0.0
    %3266 = vmatpush1.msra.mxu0 0.0
    %3267 = vmatprep.subr.mxu0 0.0
    %3268 = vmatpush1.msra.mxu0 0.0
    %3269 = vmatprep.subr.mxu0 0.0
    %3270 = vmatpush1.msra.mxu0 0.0
    %3271 = vmatprep.subr.mxu0 0.0
    %3272 = vmatpush1.msra.mxu0 0.0
    %3273 = vmatprep.subr.mxu0 0.0
    %3274 = vmatpush1.msra.mxu0 0.0
    %3275 = vmatprep.subr.mxu0 0.0
    %3276 = vmatpush1.msra.mxu0 0.0
    %3277 = vmatprep.subr.mxu0 0.0
    %3278 = vmatpush1.msra.mxu0 0.0
    %3279 = vmatprep.subr.mxu0 0.0
    %3280 = vmatpush1.msra.mxu0 0.0
    %3281 = vmatprep.subr.mxu0 0.0
    %3282 = vmatpush1.msra.mxu0 0.0
    %3283 = vmatprep.subr.mxu0 0.0
    %3284 = vmatpush1.msra.mxu0 0.0
    %3285 = vmatprep.subr.mxu0 0.0
    %3286 = vmatpush1.msra.mxu0 0.0
    %3287 = vmatprep.subr.mxu0 0.0
    %3288 = vmatpush1.msra.mxu0 0.0
    %3289 = vmatprep.subr.mxu0 0.0
    %3290 = vmatpush1.msra.mxu0 0.0
    %3291 = vmatprep.mubr.f32.mxu0 0.0
    %v3292 = vand.u32 %v2926, 4294901760
    %v3293 = vsub.f32 %v2926, %v3292
    %3294 = vmatmul.mubr.f32.gmra.mrb[0].mxu0 %v3293
    %v3295 = vpop.f32.mrb[0].mxu0
    %v3296 = vadd.f32 %v3182, %v3295
    %v3297 = vpop.f32.mrb[0].mxu0
    %3298 = vmatprep.mubr.f32.mxu0 0.0
    %v3299 = vand.u32 %v2929, 4294901760
    %v3300 = vsub.f32 %v2929, %v3299
    %3301 = vmatmul.mubr.f32.gmra.mrb[0].mxu0 %v3300
    %v3302 = vpop.f32.mrb[0].mxu0
    %v3303 = vadd.f32 %v3188, %v3302
    %v3304 = vpop.f32.mrb[0].mxu0
    %3305 = vmatprep.mubr.f32.mxu0 0.0
    %v3306 = vand.u32 %v2932, 4294901760
    %v3307 = vsub.f32 %v2932, %v3306
    %3308 = vmatmul.mubr.f32.gmra.mrb[0].mxu0 %v3307
    %v3309 = vpop.f32.mrb[0].mxu0
    %v3310 = vadd.f32 %v3194, %v3309
    %v3311 = vpop.f32.mrb[0].mxu0
    %3312 = vmatprep.mubr.f32.mxu0 0.0
    %v3313 = vand.u32 %v2935, 4294901760
    %v3314 = vsub.f32 %v2935, %v3313
    %3315 = vmatmul.mubr.f32.gmra.mrb[0].mxu0 %v3314
    %v3316 = vpop.f32.mrb[0].mxu0
    %v3317 = vadd.f32 %v3200, %v3316
    %v3318 = vpop.f32.mrb[0].mxu0
    %3319 = vdwg.mxu0
    %3320 = vmatprep.subr.mxu0 0.0
    %v3321 = vand.u32 %v2286, 4294901760
    %3322 = vmatpush1.msra.mxu0 %v3321
    %3323 = vmatprep.subr.mxu0 0.0
    %v3324 = vand.u32 %v2287, 4294901760
    %3325 = vmatpush1.msra.mxu0 %v3324
    %3326 = vmatprep.subr.mxu0 0.0
    %v3327 = vand.u32 %v2288, 4294901760
    %3328 = vmatpush1.msra.mxu0 %v3327
    %3329 = vmatprep.subr.mxu0 0.0
    %v3330 = vand.u32 %v2289, 4294901760
    %3331 = vmatpush1.msra.mxu0 %v3330
    %3332 = vmatprep.subr.mxu0 0.0
    %v3333 = vand.u32 %v2290, 4294901760
    %3334 = vmatpush1.msra.mxu0 %v3333
    %3335 = vmatprep.subr.mxu0 0.0
    %v3336 = vand.u32 %v2291, 4294901760
    %3337 = vmatpush1.msra.mxu0 %v3336
    %3338 = vmatprep.subr.mxu0 0.0
    %v3339 = vand.u32 %v2292, 4294901760
    %3340 = vmatpush1.msra.mxu0 %v3339
    %3341 = vmatprep.subr.mxu0 0.0
    %v3342 = vand.u32 %v2293, 4294901760
    %3343 = vmatpush1.msra.mxu0 %v3342
    %3344 = vmatprep.subr.mxu0 0.0
    %v3345 = vand.u32 %v2294, 4294901760
    %3346 = vmatpush1.msra.mxu0 %v3345
    %3347 = vmatprep.subr.mxu0 0.0
    %v3348 = vand.u32 %v2295, 4294901760
    %3349 = vmatpush1.msra.mxu0 %v3348
    %3350 = vmatprep.subr.mxu0 0.0
    %v3351 = vand.u32 %v2296, 4294901760
    %3352 = vmatpush1.msra.mxu0 %v3351
    %3353 = vmatprep.subr.mxu0 0.0
    %v3354 = vand.u32 %v2297, 4294901760
    %3355 = vmatpush1.msra.mxu0 %v3354
    %3356 = vmatprep.subr.mxu0 0.0
    %3357 = vmatpush1.msra.mxu0 0.0
    %3358 = vmatprep.subr.mxu0 0.0
    %3359 = vmatpush1.msra.mxu0 0.0
    %3360 = vmatprep.subr.mxu0 0.0
    %3361 = vmatpush1.msra.mxu0 0.0
    %3362 = vmatprep.subr.mxu0 0.0
    %3363 = vmatpush1.msra.mxu0 0.0
    %3364 = vmatprep.subr.mxu0 0.0
    %3365 = vmatpush1.msra.mxu0 0.0
    %3366 = vmatprep.subr.mxu0 0.0
    %3367 = vmatpush1.msra.mxu0 0.0
    %3368 = vmatprep.subr.mxu0 0.0
    %3369 = vmatpush1.msra.mxu0 0.0
    %3370 = vmatprep.subr.mxu0 0.0
    %3371 = vmatpush1.msra.mxu0 0.0
    %3372 = vmatprep.subr.mxu0 0.0
    %3373 = vmatpush1.msra.mxu0 0.0
    %3374 = vmatprep.subr.mxu0 0.0
    %3375 = vmatpush1.msra.mxu0 0.0
    %3376 = vmatprep.subr.mxu0 0.0
    %3377 = vmatpush1.msra.mxu0 0.0
    %3378 = vmatprep.subr.mxu0 0.0
    %3379 = vmatpush1.msra.mxu0 0.0
    %3380 = vmatprep.subr.mxu0 0.0
    %3381 = vmatpush1.msra.mxu0 0.0
    %3382 = vmatprep.subr.mxu0 0.0
    %3383 = vmatpush1.msra.mxu0 0.0
    %3384 = vmatprep.subr.mxu0 0.0
    %3385 = vmatpush1.msra.mxu0 0.0
    %3386 = vmatprep.subr.mxu0 0.0
    %3387 = vmatpush1.msra.mxu0 0.0
    %3388 = vmatprep.subr.mxu0 0.0
    %3389 = vmatpush1.msra.mxu0 0.0
    %3390 = vmatprep.subr.mxu0 0.0
    %3391 = vmatpush1.msra.mxu0 0.0
    %3392 = vmatprep.subr.mxu0 0.0
    %3393 = vmatpush1.msra.mxu0 0.0
    %3394 = vmatprep.subr.mxu0 0.0
    %3395 = vmatpush1.msra.mxu0 0.0
    %3396 = vmatprep.mubr.f32.mxu0 0.0
    %v3397 = vand.u32 %v2926, 4294901760
    %v3398 = vsub.f32 %v2926, %v3397
    %v3399 = vand.u32 %v3398, 4294901760
    %3400 = vmatmul.mubr.f32.gmra.mrb[0].mxu0 %v3399
    %v3401 = vpop.f32.mrb[0].mxu0
    %v3402 = vadd.f32 %v3296, %v3401
    %v3403 = vpop.f32.mrb[0].mxu0
    %3404 = vmatprep.mubr.f32.mxu0 0.0
    %v3405 = vand.u32 %v2929, 4294901760
    %v3406 = vsub.f32 %v2929, %v3405
    %v3407 = vand.u32 %v3406, 4294901760
    %3408 = vmatmul.mubr.f32.gmra.mrb[0].mxu0 %v3407
    %v3409 = vpop.f32.mrb[0].mxu0
    %v3410 = vadd.f32 %v3303, %v3409
    %v3411 = vpop.f32.mrb[0].mxu0
    %3412 = vmatprep.mubr.f32.mxu0 0.0
    %v3413 = vand.u32 %v2932, 4294901760
    %v3414 = vsub.f32 %v2932, %v3413
    %v3415 = vand.u32 %v3414, 4294901760
    %3416 = vmatmul.mubr.f32.gmra.mrb[0].mxu0 %v3415
    %v3417 = vpop.f32.mrb[0].mxu0
    %v3418 = vadd.f32 %v3310, %v3417
    %v3419 = vpop.f32.mrb[0].mxu0
    %3420 = vmatprep.mubr.f32.mxu0 0.0
    %v3421 = vand.u32 %v2935, 4294901760
    %v3422 = vsub.f32 %v2935, %v3421
    %v3423 = vand.u32 %v3422, 4294901760
    %3424 = vmatmul.mubr.f32.gmra.mrb[0].mxu0 %v3423
    %v3425 = vpop.f32.mrb[0].mxu0
    %v3426 = vadd.f32 %v3317, %v3425
    %v3427 = vpop.f32.mrb[0].mxu0
    %3428 = vdwg.mxu0
    %3429 = vmatprep.subr.mxu0 0.0
    %v3430 = vand.u32 %v2286, 4294901760
    %v3431 = vsub.f32 %v2286, %v3430
    %v3432 = vand.u32 %v3431, 4294901760
    %3433 = vmatpush1.msra.mxu0 %v3432
    %3434 = vmatprep.subr.mxu0 0.0
    %v3435 = vand.u32 %v2287, 4294901760
    %v3436 = vsub.f32 %v2287, %v3435
    %v3437 = vand.u32 %v3436, 4294901760
    %3438 = vmatpush1.msra.mxu0 %v3437
    %3439 = vmatprep.subr.mxu0 0.0
    %v3440 = vand.u32 %v2288, 4294901760
    %v3441 = vsub.f32 %v2288, %v3440
    %v3442 = vand.u32 %v3441, 4294901760
    %3443 = vmatpush1.msra.mxu0 %v3442
    %3444 = vmatprep.subr.mxu0 0.0
    %v3445 = vand.u32 %v2289, 4294901760
    %v3446 = vsub.f32 %v2289, %v3445
    %v3447 = vand.u32 %v3446, 4294901760
    %3448 = vmatpush1.msra.mxu0 %v3447
    %3449 = vmatprep.subr.mxu0 0.0
    %v3450 = vand.u32 %v2290, 4294901760
    %v3451 = vsub.f32 %v2290, %v3450
    %v3452 = vand.u32 %v3451, 4294901760
    %3453 = vmatpush1.msra.mxu0 %v3452
    %3454 = vmatprep.subr.mxu0 0.0
    %v3455 = vand.u32 %v2291, 4294901760
    %v3456 = vsub.f32 %v2291, %v3455
    %v3457 = vand.u32 %v3456, 4294901760
    %3458 = vmatpush1.msra.mxu0 %v3457
    %3459 = vmatprep.subr.mxu0 0.0
    %v3460 = vand.u32 %v2292, 4294901760
    %v3461 = vsub.f32 %v2292, %v3460
    %v3462 = vand.u32 %v3461, 4294901760
    %3463 = vmatpush1.msra.mxu0 %v3462
    %3464 = vmatprep.subr.mxu0 0.0
    %v3465 = vand.u32 %v2293, 4294901760
    %v3466 = vsub.f32 %v2293, %v3465
    %v3467 = vand.u32 %v3466, 4294901760
    %3468 = vmatpush1.msra.mxu0 %v3467
    %3469 = vmatprep.subr.mxu0 0.0
    %v3470 = vand.u32 %v2294, 4294901760
    %v3471 = vsub.f32 %v2294, %v3470
    %v3472 = vand.u32 %v3471, 4294901760
    %3473 = vmatpush1.msra.mxu0 %v3472
    %3474 = vmatprep.subr.mxu0 0.0
    %v3475 = vand.u32 %v2295, 4294901760
    %v3476 = vsub.f32 %v2295, %v3475
    %v3477 = vand.u32 %v3476, 4294901760
    %3478 = vmatpush1.msra.mxu0 %v3477
    %3479 = vmatprep.subr.mxu0 0.0
    %v3480 = vand.u32 %v2296, 4294901760
    %v3481 = vsub.f32 %v2296, %v3480
    %v3482 = vand.u32 %v3481, 4294901760
    %3483 = vmatpush1.msra.mxu0 %v3482
    %3484 = vmatprep.subr.mxu0 0.0
    %v3485 = vand.u32 %v2297, 4294901760
    %v3486 = vsub.f32 %v2297, %v3485
    %v3487 = vand.u32 %v3486, 4294901760
    %3488 = vmatpush1.msra.mxu0 %v3487
    %3489 = vmatprep.subr.mxu0 0.0
    %3490 = vmatpush1.msra.mxu0 0.0
    %3491 = vmatprep.subr.mxu0 0.0
    %3492 = vmatpush1.msra.mxu0 0.0
    %3493 = vmatprep.subr.mxu0 0.0
    %3494 = vmatpush1.msra.mxu0 0.0
    %3495 = vmatprep.subr.mxu0 0.0
    %3496 = vmatpush1.msra.mxu0 0.0
    %3497 = vmatprep.subr.mxu0 0.0
    %3498 = vmatpush1.msra.mxu0 0.0
    %3499 = vmatprep.subr.mxu0 0.0
    %3500 = vmatpush1.msra.mxu0 0.0
    %3501 = vmatprep.subr.mxu0 0.0
    %3502 = vmatpush1.msra.mxu0 0.0
    %3503 = vmatprep.subr.mxu0 0.0
    %3504 = vmatpush1.msra.mxu0 0.0
    %3505 = vmatprep.subr.mxu0 0.0
    %3506 = vmatpush1.msra.mxu0 0.0
    %3507 = vmatprep.subr.mxu0 0.0
    %3508 = vmatpush1.msra.mxu0 0.0
    %3509 = vmatprep.subr.mxu0 0.0
    %3510 = vmatpush1.msra.mxu0 0.0
    %3511 = vmatprep.subr.mxu0 0.0
    %3512 = vmatpush1.msra.mxu0 0.0
    %3513 = vmatprep.subr.mxu0 0.0
    %3514 = vmatpush1.msra.mxu0 0.0
    %3515 = vmatprep.subr.mxu0 0.0
    %3516 = vmatpush1.msra.mxu0 0.0
    %3517 = vmatprep.subr.mxu0 0.0
    %3518 = vmatpush1.msra.mxu0 0.0
    %3519 = vmatprep.subr.mxu0 0.0
    %3520 = vmatpush1.msra.mxu0 0.0
    %3521 = vmatprep.subr.mxu0 0.0
    %3522 = vmatpush1.msra.mxu0 0.0
    %3523 = vmatprep.subr.mxu0 0.0
    %3524 = vmatpush1.msra.mxu0 0.0
    %3525 = vmatprep.subr.mxu0 0.0
    %3526 = vmatpush1.msra.mxu0 0.0
    %3527 = vmatprep.subr.mxu0 0.0
    %3528 = vmatpush1.msra.mxu0 0.0
    %3529 = vmatprep.mubr.f32.mxu0 0.0
    %v3530 = vand.u32 %v2926, 4294901760
    %3531 = vmatmul.mubr.f32.gmra.mrb[0].mxu0 %v3530
    %v3532 = vpop.f32.mrb[0].mxu0
    %v3533 = vadd.f32 %v3402, %v3532
    %v3534 = vpop.f32.mrb[0].mxu0
    %3535 = vmatprep.mubr.f32.mxu0 0.0
    %v3536 = vand.u32 %v2929, 4294901760
    %3537 = vmatmul.mubr.f32.gmra.mrb[0].mxu0 %v3536
    %v3538 = vpop.f32.mrb[0].mxu0
    %v3539 = vadd.f32 %v3410, %v3538
    %v3540 = vpop.f32.mrb[0].mxu0
    %3541 = vmatprep.mubr.f32.mxu0 0.0
    %v3542 = vand.u32 %v2932, 4294901760
    %3543 = vmatmul.mubr.f32.gmra.mrb[0].mxu0 %v3542
    %v3544 = vpop.f32.mrb[0].mxu0
    %v3545 = vadd.f32 %v3418, %v3544
    %v3546 = vpop.f32.mrb[0].mxu0
    %3547 = vmatprep.mubr.f32.mxu0 0.0
    %v3548 = vand.u32 %v2935, 4294901760
    %3549 = vmatmul.mubr.f32.gmra.mrb[0].mxu0 %v3548
    %v3550 = vpop.f32.mrb[0].mxu0
    %v3551 = vadd.f32 %v3426, %v3550
    %v3552 = vpop.f32.mrb[0].mxu0
    %3553 = vdwg.mxu0
    %3554 = vmatprep.subr.mxu0 0.0
    %v3555 = vand.u32 %v2286, 4294901760
    %3556 = vmatpush1.msra.mxu0 %v3555
    %3557 = vmatprep.subr.mxu0 0.0
    %v3558 = vand.u32 %v2287, 4294901760
    %3559 = vmatpush1.msra.mxu0 %v3558
    %3560 = vmatprep.subr.mxu0 0.0
    %v3561 = vand.u32 %v2288, 4294901760
    %3562 = vmatpush1.msra.mxu0 %v3561
    %3563 = vmatprep.subr.mxu0 0.0
    %v3564 = vand.u32 %v2289, 4294901760
    %3565 = vmatpush1.msra.mxu0 %v3564
    %3566 = vmatprep.subr.mxu0 0.0
    %v3567 = vand.u32 %v2290, 4294901760
    %3568 = vmatpush1.msra.mxu0 %v3567
    %3569 = vmatprep.subr.mxu0 0.0
    %v3570 = vand.u32 %v2291, 4294901760
    %3571 = vmatpush1.msra.mxu0 %v3570
    %3572 = vmatprep.subr.mxu0 0.0
    %v3573 = vand.u32 %v2292, 4294901760
    %3574 = vmatpush1.msra.mxu0 %v3573
    %3575 = vmatprep.subr.mxu0 0.0
    %v3576 = vand.u32 %v2293, 4294901760
    %3577 = vmatpush1.msra.mxu0 %v3576
    %3578 = vmatprep.subr.mxu0 0.0
    %v3579 = vand.u32 %v2294, 4294901760
    %3580 = vmatpush1.msra.mxu0 %v3579
    %3581 = vmatprep.subr.mxu0 0.0
    %v3582 = vand.u32 %v2295, 4294901760
    %3583 = vmatpush1.msra.mxu0 %v3582
    %3584 = vmatprep.subr.mxu0 0.0
    %v3585 = vand.u32 %v2296, 4294901760
    %3586 = vmatpush1.msra.mxu0 %v3585
    %3587 = vmatprep.subr.mxu0 0.0
    %v3588 = vand.u32 %v2297, 4294901760
    %3589 = vmatpush1.msra.mxu0 %v3588
    %3590 = vmatprep.subr.mxu0 0.0
    %3591 = vmatpush1.msra.mxu0 0.0
    %3592 = vmatprep.subr.mxu0 0.0
    %3593 = vmatpush1.msra.mxu0 0.0
    %3594 = vmatprep.subr.mxu0 0.0
    %3595 = vmatpush1.msra.mxu0 0.0
    %3596 = vmatprep.subr.mxu0 0.0
    %3597 = vmatpush1.msra.mxu0 0.0
    %3598 = vmatprep.subr.mxu0 0.0
    %3599 = vmatpush1.msra.mxu0 0.0
    %3600 = vmatprep.subr.mxu0 0.0
    %3601 = vmatpush1.msra.mxu0 0.0
    %3602 = vmatprep.subr.mxu0 0.0
    %3603 = vmatpush1.msra.mxu0 0.0
    %3604 = vmatprep.subr.mxu0 0.0
    %3605 = vmatpush1.msra.mxu0 0.0
    %3606 = vmatprep.subr.mxu0 0.0
    %3607 = vmatpush1.msra.mxu0 0.0
    %3608 = vmatprep.subr.mxu0 0.0
    %3609 = vmatpush1.msra.mxu0 0.0
    %3610 = vmatprep.subr.mxu0 0.0
    %3611 = vmatpush1.msra.mxu0 0.0
    %3612 = vmatprep.subr.mxu0 0.0
    %3613 = vmatpush1.msra.mxu0 0.0
    %3614 = vmatprep.subr.mxu0 0.0
    %3615 = vmatpush1.msra.mxu0 0.0
    %3616 = vmatprep.subr.mxu0 0.0
    %3617 = vmatpush1.msra.mxu0 0.0
    %3618 = vmatprep.subr.mxu0 0.0
    %3619 = vmatpush1.msra.mxu0 0.0
    %3620 = vmatprep.subr.mxu0 0.0
    %3621 = vmatpush1.msra.mxu0 0.0
    %3622 = vmatprep.subr.mxu0 0.0
    %3623 = vmatpush1.msra.mxu0 0.0
    %3624 = vmatprep.subr.mxu0 0.0
    %3625 = vmatpush1.msra.mxu0 0.0
    %3626 = vmatprep.subr.mxu0 0.0
    %3627 = vmatpush1.msra.mxu0 0.0
    %3628 = vmatprep.subr.mxu0 0.0
    %3629 = vmatpush1.msra.mxu0 0.0
    %3630 = vmatprep.mubr.f32.mxu0 0.0
    %v3631 = vand.u32 %v2926, 4294901760
    %3632 = vmatmul.mubr.f32.gmra.mrb[0].mxu0 %v3631
    %v3633 = vpop.f32.mrb[0].mxu0
    %v3634 = vadd.f32 %v3533, %v3633
    %v3635 = vpop.f32.mrb[0].mxu0
    %3636 = vmatprep.mubr.f32.mxu0 0.0
    %v3637 = vand.u32 %v2929, 4294901760
    %3638 = vmatmul.mubr.f32.gmra.mrb[0].mxu0 %v3637
    %v3639 = vpop.f32.mrb[0].mxu0
    %v3640 = vadd.f32 %v3539, %v3639
    %v3641 = vpop.f32.mrb[0].mxu0
    %3642 = vmatprep.mubr.f32.mxu0 0.0
    %v3643 = vand.u32 %v2932, 4294901760
    %3644 = vmatmul.mubr.f32.gmra.mrb[0].mxu0 %v3643
    %v3645 = vpop.f32.mrb[0].mxu0
    %v3646 = vadd.f32 %v3545, %v3645
    %v3647 = vpop.f32.mrb[0].mxu0
    %3648 = vmatprep.mubr.f32.mxu0 0.0
    %v3649 = vand.u32 %v2935, 4294901760
    %3650 = vmatmul.mubr.f32.gmra.mrb[0].mxu0 %v3649
    %v3651 = vpop.f32.mrb[0].mxu0
    %v3652 = vadd.f32 %v3551, %v3651
    %v3653 = vpop.f32.mrb[0].mxu0
    %3654 = vdwg.mxu0
    %v3655 = vmax.f32 %v3634, 0.0
    %v3656 = vmax.f32 %v3640, 0.0
    %v3657 = vmax.f32 %v3646, 0.0
    %v3658 = vmax.f32 %v3652, 0.0
    %v3659 = vld [vmem:[%s9] sm:$0xff]
    %v3660 = vld [vmem:[%s9 + $0x8] sm:$0xff]
    %v3661 = vld [vmem:[%s9 + $0x10] sm:$0xff]
    %v3662 = vld [vmem:[%s9 + $0x18] sm:$0xff]
    %v3663 = vld [vmem:[%s10] sm:$0xff]
    %v3664 = vld [vmem:[%s10 + $0x8] sm:$0xff]
    %v3665 = vld [vmem:[%s10 + $0x10] sm:$0xff]
    %v3666 = vld [vmem:[%s10 + $0x18] sm:$0xff]
    %3668 = vset.pattern.permute.xlu0 0
    %3669 = vperm.xlu0 %3668, %v3663
    %v3670 = vpop.permute.xlu0 %3669
    %3673 = vset.pattern.permute.xlu0 0
    %3674 = vperm.xlu0 %3673, %v3664
    %v3675 = vpop.permute.xlu0 %3674
    %3678 = vset.pattern.permute.xlu0 0
    %3679 = vperm.xlu0 %3678, %v3665
    %v3680 = vpop.permute.xlu0 %3679
    %3683 = vset.pattern.permute.xlu0 0
    %3684 = vperm.xlu0 %3683, %v3666
    %v3685 = vpop.permute.xlu0 %3684
    %vm3687 = vcmask 261120
    %v3689 = vsel %vm3687, %v3659, 0
    %v3692 = vsel %vm3687, %v3660, 0
    %v3695 = vsel %vm3687, %v3661, 0
    %v3698 = vsel %vm3687, %v3662, 0
    %3700 = vmatprep.subr.mxu0 0.0
    %v3701 = vand.u32 %v3655, 4294901760
    %3702 = vmatpush1.msra.mxu0 %v3701
    %3703 = vmatprep.subr.mxu0 0.0
    %v3704 = vand.u32 %v3656, 4294901760
    %3705 = vmatpush1.msra.mxu0 %v3704
    %3706 = vmatprep.subr.mxu0 0.0
    %v3707 = vand.u32 %v3657, 4294901760
    %3708 = vmatpush1.msra.mxu0 %v3707
    %3709 = vmatprep.subr.mxu0 0.0
    %v3710 = vand.u32 %v3658, 4294901760
    %3711 = vmatpush1.msra.mxu0 %v3710
    %3712 = vmatprep.subr.mxu0 0.0
    %3713 = vmatpush1.msra.mxu0 0.0
    %3714 = vmatprep.subr.mxu0 0.0
    %3715 = vmatpush1.msra.mxu0 0.0
    %3716 = vmatprep.subr.mxu0 0.0
    %3717 = vmatpush1.msra.mxu0 0.0
    %3718 = vmatprep.subr.mxu0 0.0
    %3719 = vmatpush1.msra.mxu0 0.0
    %3720 = vmatprep.subr.mxu0 0.0
    %3721 = vmatpush1.msra.mxu0 0.0
    %3722 = vmatprep.subr.mxu0 0.0
    %3723 = vmatpush1.msra.mxu0 0.0
    %3724 = vmatprep.subr.mxu0 0.0
    %3725 = vmatpush1.msra.mxu0 0.0
    %3726 = vmatprep.subr.mxu0 0.0
    %3727 = vmatpush1.msra.mxu0 0.0
    %3728 = vmatprep.subr.mxu0 0.0
    %3729 = vmatpush1.msra.mxu0 0.0
    %3730 = vmatprep.subr.mxu0 0.0
    %3731 = vmatpush1.msra.mxu0 0.0
    %3732 = vmatprep.subr.mxu0 0.0
    %3733 = vmatpush1.msra.mxu0 0.0
    %3734 = vmatprep.subr.mxu0 0.0
    %3735 = vmatpush1.msra.mxu0 0.0
    %3736 = vmatprep.subr.mxu0 0.0
    %3737 = vmatpush1.msra.mxu0 0.0
    %3738 = vmatprep.subr.mxu0 0.0
    %3739 = vmatpush1.msra.mxu0 0.0
    %3740 = vmatprep.subr.mxu0 0.0
    %3741 = vmatpush1.msra.mxu0 0.0
    %3742 = vmatprep.subr.mxu0 0.0
    %3743 = vmatpush1.msra.mxu0 0.0
    %3744 = vmatprep.subr.mxu0 0.0
    %3745 = vmatpush1.msra.mxu0 0.0
    %3746 = vmatprep.subr.mxu0 0.0
    %3747 = vmatpush1.msra.mxu0 0.0
    %3748 = vmatprep.subr.mxu0 0.0
    %3749 = vmatpush1.msra.mxu0 0.0
    %3750 = vmatprep.subr.mxu0 0.0
    %3751 = vmatpush1.msra.mxu0 0.0
    %3752 = vmatprep.subr.mxu0 0.0
    %3753 = vmatpush1.msra.mxu0 0.0
    %3754 = vmatprep.subr.mxu0 0.0
    %3755 = vmatpush1.msra.mxu0 0.0
    %3756 = vmatprep.subr.mxu0 0.0
    %3757 = vmatpush1.msra.mxu0 0.0
    %3758 = vmatprep.subr.mxu0 0.0
    %3759 = vmatpush1.msra.mxu0 0.0
    %3760 = vmatprep.subr.mxu0 0.0
    %3761 = vmatpush1.msra.mxu0 0.0
    %3762 = vmatprep.subr.mxu0 0.0
    %3763 = vmatpush1.msra.mxu0 0.0
    %3764 = vmatprep.subr.mxu0 0.0
    %3765 = vmatpush1.msra.mxu0 0.0
    %3766 = vmatprep.subr.mxu0 0.0
    %3767 = vmatpush1.msra.mxu0 0.0
    %3768 = vmatprep.mubr.f32.mxu0 0.0
    %v3769 = vand.u32 %v3689, 4294901760
    %v3770 = vsub.f32 %v3689, %v3769
    %v3771 = vand.u32 %v3770, 4294901760
    %v3772 = vsub.f32 %v3770, %v3771
    %v3773 = vand.u32 %v3772, 4294901760
    %3774 = vmatmul.mubr.f32.gmra.mrb[0].mxu0 %v3773
    %v3775 = vpop.f32.mrb[0].mxu0
    %v3776 = vadd.f32 %v3670, %v3775
    %v3777 = vpop.f32.mrb[0].mxu0
    %3778 = vmatprep.mubr.f32.mxu0 0.0
    %v3779 = vand.u32 %v3692, 4294901760
    %v3780 = vsub.f32 %v3692, %v3779
    %v3781 = vand.u32 %v3780, 4294901760
    %v3782 = vsub.f32 %v3780, %v3781
    %v3783 = vand.u32 %v3782, 4294901760
    %3784 = vmatmul.mubr.f32.gmra.mrb[0].mxu0 %v3783
    %v3785 = vpop.f32.mrb[0].mxu0
    %v3786 = vadd.f32 %v3675, %v3785
    %v3787 = vpop.f32.mrb[0].mxu0
    %3788 = vmatprep.mubr.f32.mxu0 0.0
    %v3789 = vand.u32 %v3695, 4294901760
    %v3790 = vsub.f32 %v3695, %v3789
    %v3791 = vand.u32 %v3790, 4294901760
    %v3792 = vsub.f32 %v3790, %v3791
    %v3793 = vand.u32 %v3792, 4294901760
    %3794 = vmatmul.mubr.f32.gmra.mrb[0].mxu0 %v3793
    %v3795 = vpop.f32.mrb[0].mxu0
    %v3796 = vadd.f32 %v3680, %v3795
    %v3797 = vpop.f32.mrb[0].mxu0
    %3798 = vmatprep.mubr.f32.mxu0 0.0
    %v3799 = vand.u32 %v3698, 4294901760
    %v3800 = vsub.f32 %v3698, %v3799
    %v3801 = vand.u32 %v3800, 4294901760
    %v3802 = vsub.f32 %v3800, %v3801
    %v3803 = vand.u32 %v3802, 4294901760
    %3804 = vmatmul.mubr.f32.gmra.mrb[0].mxu0 %v3803
    %v3805 = vpop.f32.mrb[0].mxu0
    %v3806 = vadd.f32 %v3685, %v3805
    %v3807 = vpop.f32.mrb[0].mxu0
    %3808 = vdwg.mxu0
    %3809 = vmatprep.subr.mxu0 0.0
    %v3810 = vand.u32 %v3655, 4294901760
    %v3811 = vsub.f32 %v3655, %v3810
    %v3812 = vand.u32 %v3811, 4294901760
    %v3813 = vsub.f32 %v3811, %v3812
    %v3814 = vand.u32 %v3813, 4294901760
    %3815 = vmatpush1.msra.mxu0 %v3814
    %3816 = vmatprep.subr.mxu0 0.0
    %v3817 = vand.u32 %v3656, 4294901760
    %v3818 = vsub.f32 %v3656, %v3817
    %v3819 = vand.u32 %v3818, 4294901760
    %v3820 = vsub.f32 %v3818, %v3819
    %v3821 = vand.u32 %v3820, 4294901760
    %3822 = vmatpush1.msra.mxu0 %v3821
    %3823 = vmatprep.subr.mxu0 0.0
    %v3824 = vand.u32 %v3657, 4294901760
    %v3825 = vsub.f32 %v3657, %v3824
    %v3826 = vand.u32 %v3825, 4294901760
    %v3827 = vsub.f32 %v3825, %v3826
    %v3828 = vand.u32 %v3827, 4294901760
    %3829 = vmatpush1.msra.mxu0 %v3828
    %3830 = vmatprep.subr.mxu0 0.0
    %v3831 = vand.u32 %v3658, 4294901760
    %v3832 = vsub.f32 %v3658, %v3831
    %v3833 = vand.u32 %v3832, 4294901760
    %v3834 = vsub.f32 %v3832, %v3833
    %v3835 = vand.u32 %v3834, 4294901760
    %3836 = vmatpush1.msra.mxu0 %v3835
    %3837 = vmatprep.subr.mxu0 0.0
    %3838 = vmatpush1.msra.mxu0 0.0
    %3839 = vmatprep.subr.mxu0 0.0
    %3840 = vmatpush1.msra.mxu0 0.0
    %3841 = vmatprep.subr.mxu0 0.0
    %3842 = vmatpush1.msra.mxu0 0.0
    %3843 = vmatprep.subr.mxu0 0.0
    %3844 = vmatpush1.msra.mxu0 0.0
    %3845 = vmatprep.subr.mxu0 0.0
    %3846 = vmatpush1.msra.mxu0 0.0
    %3847 = vmatprep.subr.mxu0 0.0
    %3848 = vmatpush1.msra.mxu0 0.0
    %3849 = vmatprep.subr.mxu0 0.0
    %3850 = vmatpush1.msra.mxu0 0.0
    %3851 = vmatprep.subr.mxu0 0.0
    %3852 = vmatpush1.msra.mxu0 0.0
    %3853 = vmatprep.subr.mxu0 0.0
    %3854 = vmatpush1.msra.mxu0 0.0
    %3855 = vmatprep.subr.mxu0 0.0
    %3856 = vmatpush1.msra.mxu0 0.0
    %3857 = vmatprep.subr.mxu0 0.0
    %3858 = vmatpush1.msra.mxu0 0.0
    %3859 = vmatprep.subr.mxu0 0.0
    %3860 = vmatpush1.msra.mxu0 0.0
    %3861 = vmatprep.subr.mxu0 0.0
    %3862 = vmatpush1.msra.mxu0 0.0
    %3863 = vmatprep.subr.mxu0 0.0
    %3864 = vmatpush1.msra.mxu0 0.0
    %3865 = vmatprep.subr.mxu0 0.0
    %3866 = vmatpush1.msra.mxu0 0.0
    %3867 = vmatprep.subr.mxu0 0.0
    %3868 = vmatpush1.msra.mxu0 0.0
    %3869 = vmatprep.subr.mxu0 0.0
    %3870 = vmatpush1.msra.mxu0 0.0
    %3871 = vmatprep.subr.mxu0 0.0
    %3872 = vmatpush1.msra.mxu0 0.0
    %3873 = vmatprep.subr.mxu0 0.0
    %3874 = vmatpush1.msra.mxu0 0.0
    %3875 = vmatprep.subr.mxu0 0.0
    %3876 = vmatpush1.msra.mxu0 0.0
    %3877 = vmatprep.subr.mxu0 0.0
    %3878 = vmatpush1.msra.mxu0 0.0
    %3879 = vmatprep.subr.mxu0 0.0
    %3880 = vmatpush1.msra.mxu0 0.0
    %3881 = vmatprep.subr.mxu0 0.0
    %3882 = vmatpush1.msra.mxu0 0.0
    %3883 = vmatprep.subr.mxu0 0.0
    %3884 = vmatpush1.msra.mxu0 0.0
    %3885 = vmatprep.subr.mxu0 0.0
    %3886 = vmatpush1.msra.mxu0 0.0
    %3887 = vmatprep.subr.mxu0 0.0
    %3888 = vmatpush1.msra.mxu0 0.0
    %3889 = vmatprep.subr.mxu0 0.0
    %3890 = vmatpush1.msra.mxu0 0.0
    %3891 = vmatprep.subr.mxu0 0.0
    %3892 = vmatpush1.msra.mxu0 0.0
    %3893 = vmatprep.mubr.f32.mxu0 0.0
    %v3894 = vand.u32 %v3689, 4294901760
    %3895 = vmatmul.mubr.f32.gmra.mrb[0].mxu0 %v3894
    %v3896 = vpop.f32.mrb[0].mxu0
    %v3897 = vadd.f32 %v3776, %v3896
    %v3898 = vpop.f32.mrb[0].mxu0
    %3899 = vmatprep.mubr.f32.mxu0 0.0
    %v3900 = vand.u32 %v3692, 4294901760
    %3901 = vmatmul.mubr.f32.gmra.mrb[0].mxu0 %v3900
    %v3902 = vpop.f32.mrb[0].mxu0
    %v3903 = vadd.f32 %v3786, %v3902
    %v3904 = vpop.f32.mrb[0].mxu0
    %3905 = vmatprep.mubr.f32.mxu0 0.0
    %v3906 = vand.u32 %v3695, 4294901760
    %3907 = vmatmul.mubr.f32.gmra.mrb[0].mxu0 %v3906
    %v3908 = vpop.f32.mrb[0].mxu0
    %v3909 = vadd.f32 %v3796, %v3908
    %v3910 = vpop.f32.mrb[0].mxu0
    %3911 = vmatprep.mubr.f32.mxu0 0.0
    %v3912 = vand.u32 %v3698, 4294901760
    %3913 = vmatmul.mubr.f32.gmra.mrb[0].mxu0 %v3912
    %v3914 = vpop.f32.mrb[0].mxu0
    %v3915 = vadd.f32 %v3806, %v3914
    %v3916 = vpop.f32.mrb[0].mxu0
    %3917 = vdwg.mxu0
    %3918 = vmatprep.subr.mxu0 0.0
    %v3919 = vand.u32 %v3655, 4294901760
    %v3920 = vsub.f32 %v3655, %v3919
    %3921 = vmatpush1.msra.mxu0 %v3920
    %3922 = vmatprep.subr.mxu0 0.0
    %v3923 = vand.u32 %v3656, 4294901760
    %v3924 = vsub.f32 %v3656, %v3923
    %3925 = vmatpush1.msra.mxu0 %v3924
    %3926 = vmatprep.subr.mxu0 0.0
    %v3927 = vand.u32 %v3657, 4294901760
    %v3928 = vsub.f32 %v3657, %v3927
    %3929 = vmatpush1.msra.mxu0 %v3928
    %3930 = vmatprep.subr.mxu0 0.0
    %v3931 = vand.u32 %v3658, 4294901760
    %v3932 = vsub.f32 %v3658, %v3931
    %3933 = vmatpush1.msra.mxu0 %v3932
    %3934 = vmatprep.subr.mxu0 0.0
    %3935 = vmatpush1.msra.mxu0 0.0
    %3936 = vmatprep.subr.mxu0 0.0
    %3937 = vmatpush1.msra.mxu0 0.0
    %3938 = vmatprep.subr.mxu0 0.0
    %3939 = vmatpush1.msra.mxu0 0.0
    %3940 = vmatprep.subr.mxu0 0.0
    %3941 = vmatpush1.msra.mxu0 0.0
    %3942 = vmatprep.subr.mxu0 0.0
    %3943 = vmatpush1.msra.mxu0 0.0
    %3944 = vmatprep.subr.mxu0 0.0
    %3945 = vmatpush1.msra.mxu0 0.0
    %3946 = vmatprep.subr.mxu0 0.0
    %3947 = vmatpush1.msra.mxu0 0.0
    %3948 = vmatprep.subr.mxu0 0.0
    %3949 = vmatpush1.msra.mxu0 0.0
    %3950 = vmatprep.subr.mxu0 0.0
    %3951 = vmatpush1.msra.mxu0 0.0
    %3952 = vmatprep.subr.mxu0 0.0
    %3953 = vmatpush1.msra.mxu0 0.0
    %3954 = vmatprep.subr.mxu0 0.0
    %3955 = vmatpush1.msra.mxu0 0.0
    %3956 = vmatprep.subr.mxu0 0.0
    %3957 = vmatpush1.msra.mxu0 0.0
    %3958 = vmatprep.subr.mxu0 0.0
    %3959 = vmatpush1.msra.mxu0 0.0
    %3960 = vmatprep.subr.mxu0 0.0
    %3961 = vmatpush1.msra.mxu0 0.0
    %3962 = vmatprep.subr.mxu0 0.0
    %3963 = vmatpush1.msra.mxu0 0.0
    %3964 = vmatprep.subr.mxu0 0.0
    %3965 = vmatpush1.msra.mxu0 0.0
    %3966 = vmatprep.subr.mxu0 0.0
    %3967 = vmatpush1.msra.mxu0 0.0
    %3968 = vmatprep.subr.mxu0 0.0
    %3969 = vmatpush1.msra.mxu0 0.0
    %3970 = vmatprep.subr.mxu0 0.0
    %3971 = vmatpush1.msra.mxu0 0.0
    %3972 = vmatprep.subr.mxu0 0.0
    %3973 = vmatpush1.msra.mxu0 0.0
    %3974 = vmatprep.subr.mxu0 0.0
    %3975 = vmatpush1.msra.mxu0 0.0
    %3976 = vmatprep.subr.mxu0 0.0
    %3977 = vmatpush1.msra.mxu0 0.0
    %3978 = vmatprep.subr.mxu0 0.0
    %3979 = vmatpush1.msra.mxu0 0.0
    %3980 = vmatprep.subr.mxu0 0.0
    %3981 = vmatpush1.msra.mxu0 0.0
    %3982 = vmatprep.subr.mxu0 0.0
    %3983 = vmatpush1.msra.mxu0 0.0
    %3984 = vmatprep.subr.mxu0 0.0
    %3985 = vmatpush1.msra.mxu0 0.0
    %3986 = vmatprep.subr.mxu0 0.0
    %3987 = vmatpush1.msra.mxu0 0.0
    %3988 = vmatprep.subr.mxu0 0.0
    %3989 = vmatpush1.msra.mxu0 0.0
    %3990 = vmatprep.mubr.f32.mxu0 0.0
    %v3991 = vand.u32 %v3689, 4294901760
    %v3992 = vsub.f32 %v3689, %v3991
    %3993 = vmatmul.mubr.f32.gmra.mrb[0].mxu0 %v3992
    %v3994 = vpop.f32.mrb[0].mxu0
    %v3995 = vadd.f32 %v3897, %v3994
    %v3996 = vpop.f32.mrb[0].mxu0
    %3997 = vmatprep.mubr.f32.mxu0 0.0
    %v3998 = vand.u32 %v3692, 4294901760
    %v3999 = vsub.f32 %v3692, %v3998
    %4000 = vmatmul.mubr.f32.gmra.mrb[0].mxu0 %v3999
    %v4001 = vpop.f32.mrb[0].mxu0
    %v4002 = vadd.f32 %v3903, %v4001
    %v4003 = vpop.f32.mrb[0].mxu0
    %4004 = vmatprep.mubr.f32.mxu0 0.0
    %v4005 = vand.u32 %v3695, 4294901760
    %v4006 = vsub.f32 %v3695, %v4005
    %4007 = vmatmul.mubr.f32.gmra.mrb[0].mxu0 %v4006
    %v4008 = vpop.f32.mrb[0].mxu0
    %v4009 = vadd.f32 %v3909, %v4008
    %v4010 = vpop.f32.mrb[0].mxu0
    %4011 = vmatprep.mubr.f32.mxu0 0.0
    %v4012 = vand.u32 %v3698, 4294901760
    %v4013 = vsub.f32 %v3698, %v4012
    %4014 = vmatmul.mubr.f32.gmra.mrb[0].mxu0 %v4013
    %v4015 = vpop.f32.mrb[0].mxu0
    %v4016 = vadd.f32 %v3915, %v4015
    %v4017 = vpop.f32.mrb[0].mxu0
    %4018 = vdwg.mxu0
    %4019 = vmatprep.subr.mxu0 0.0
    %v4020 = vand.u32 %v3655, 4294901760
    %4021 = vmatpush1.msra.mxu0 %v4020
    %4022 = vmatprep.subr.mxu0 0.0
    %v4023 = vand.u32 %v3656, 4294901760
    %4024 = vmatpush1.msra.mxu0 %v4023
    %4025 = vmatprep.subr.mxu0 0.0
    %v4026 = vand.u32 %v3657, 4294901760
    %4027 = vmatpush1.msra.mxu0 %v4026
    %4028 = vmatprep.subr.mxu0 0.0
    %v4029 = vand.u32 %v3658, 4294901760
    %4030 = vmatpush1.msra.mxu0 %v4029
    %4031 = vmatprep.subr.mxu0 0.0
    %4032 = vmatpush1.msra.mxu0 0.0
    %4033 = vmatprep.subr.mxu0 0.0
    %4034 = vmatpush1.msra.mxu0 0.0
    %4035 = vmatprep.subr.mxu0 0.0
    %4036 = vmatpush1.msra.mxu0 0.0
    %4037 = vmatprep.subr.mxu0 0.0
    %4038 = vmatpush1.msra.mxu0 0.0
    %4039 = vmatprep.subr.mxu0 0.0
    %4040 = vmatpush1.msra.mxu0 0.0
    %4041 = vmatprep.subr.mxu0 0.0
    %4042 = vmatpush1.msra.mxu0 0.0
    %4043 = vmatprep.subr.mxu0 0.0
    %4044 = vmatpush1.msra.mxu0 0.0
    %4045 = vmatprep.subr.mxu0 0.0
    %4046 = vmatpush1.msra.mxu0 0.0
    %4047 = vmatprep.subr.mxu0 0.0
    %4048 = vmatpush1.msra.mxu0 0.0
    %4049 = vmatprep.subr.mxu0 0.0
    %4050 = vmatpush1.msra.mxu0 0.0
    %4051 = vmatprep.subr.mxu0 0.0
    %4052 = vmatpush1.msra.mxu0 0.0
    %4053 = vmatprep.subr.mxu0 0.0
    %4054 = vmatpush1.msra.mxu0 0.0
    %4055 = vmatprep.subr.mxu0 0.0
    %4056 = vmatpush1.msra.mxu0 0.0
    %4057 = vmatprep.subr.mxu0 0.0
    %4058 = vmatpush1.msra.mxu0 0.0
    %4059 = vmatprep.subr.mxu0 0.0
    %4060 = vmatpush1.msra.mxu0 0.0
    %4061 = vmatprep.subr.mxu0 0.0
    %4062 = vmatpush1.msra.mxu0 0.0
    %4063 = vmatprep.subr.mxu0 0.0
    %4064 = vmatpush1.msra.mxu0 0.0
    %4065 = vmatprep.subr.mxu0 0.0
    %4066 = vmatpush1.msra.mxu0 0.0
    %4067 = vmatprep.subr.mxu0 0.0
    %4068 = vmatpush1.msra.mxu0 0.0
    %4069 = vmatprep.subr.mxu0 0.0
    %4070 = vmatpush1.msra.mxu0 0.0
    %4071 = vmatprep.subr.mxu0 0.0
    %4072 = vmatpush1.msra.mxu0 0.0
    %4073 = vmatprep.subr.mxu0 0.0
    %4074 = vmatpush1.msra.mxu0 0.0
    %4075 = vmatprep.subr.mxu0 0.0
    %4076 = vmatpush1.msra.mxu0 0.0
    %4077 = vmatprep.subr.mxu0 0.0
    %4078 = vmatpush1.msra.mxu0 0.0
    %4079 = vmatprep.subr.mxu0 0.0
    %4080 = vmatpush1.msra.mxu0 0.0
    %4081 = vmatprep.subr.mxu0 0.0
    %4082 = vmatpush1.msra.mxu0 0.0
    %4083 = vmatprep.subr.mxu0 0.0
    %4084 = vmatpush1.msra.mxu0 0.0
    %4085 = vmatprep.subr.mxu0 0.0
    %4086 = vmatpush1.msra.mxu0 0.0
    %4087 = vmatprep.mubr.f32.mxu0 0.0
    %v4088 = vand.u32 %v3689, 4294901760
    %v4089 = vsub.f32 %v3689, %v4088
    %v4090 = vand.u32 %v4089, 4294901760
    %4091 = vmatmul.mubr.f32.gmra.mrb[0].mxu0 %v4090
    %v4092 = vpop.f32.mrb[0].mxu0
    %v4093 = vadd.f32 %v3995, %v4092
    %v4094 = vpop.f32.mrb[0].mxu0
    %4095 = vmatprep.mubr.f32.mxu0 0.0
    %v4096 = vand.u32 %v3692, 4294901760
    %v4097 = vsub.f32 %v3692, %v4096
    %v4098 = vand.u32 %v4097, 4294901760
    %4099 = vmatmul.mubr.f32.gmra.mrb[0].mxu0 %v4098
    %v4100 = vpop.f32.mrb[0].mxu0
    %v4101 = vadd.f32 %v4002, %v4100
    %v4102 = vpop.f32.mrb[0].mxu0
    %4103 = vmatprep.mubr.f32.mxu0 0.0
    %v4104 = vand.u32 %v3695, 4294901760
    %v4105 = vsub.f32 %v3695, %v4104
    %v4106 = vand.u32 %v4105, 4294901760
    %4107 = vmatmul.mubr.f32.gmra.mrb[0].mxu0 %v4106
    %v4108 = vpop.f32.mrb[0].mxu0
    %v4109 = vadd.f32 %v4009, %v4108
    %v4110 = vpop.f32.mrb[0].mxu0
    %4111 = vmatprep.mubr.f32.mxu0 0.0
    %v4112 = vand.u32 %v3698, 4294901760
    %v4113 = vsub.f32 %v3698, %v4112
    %v4114 = vand.u32 %v4113, 4294901760
    %4115 = vmatmul.mubr.f32.gmra.mrb[0].mxu0 %v4114
    %v4116 = vpop.f32.mrb[0].mxu0
    %v4117 = vadd.f32 %v4016, %v4116
    %v4118 = vpop.f32.mrb[0].mxu0
    %4119 = vdwg.mxu0
    %4120 = vmatprep.subr.mxu0 0.0
    %v4121 = vand.u32 %v3655, 4294901760
    %v4122 = vsub.f32 %v3655, %v4121
    %v4123 = vand.u32 %v4122, 4294901760
    %4124 = vmatpush1.msra.mxu0 %v4123
    %4125 = vmatprep.subr.mxu0 0.0
    %v4126 = vand.u32 %v3656, 4294901760
    %v4127 = vsub.f32 %v3656, %v4126
    %v4128 = vand.u32 %v4127, 4294901760
    %4129 = vmatpush1.msra.mxu0 %v4128
    %4130 = vmatprep.subr.mxu0 0.0
    %v4131 = vand.u32 %v3657, 4294901760
    %v4132 = vsub.f32 %v3657, %v4131
    %v4133 = vand.u32 %v4132, 4294901760
    %4134 = vmatpush1.msra.mxu0 %v4133
    %4135 = vmatprep.subr.mxu0 0.0
    %v4136 = vand.u32 %v3658, 4294901760
    %v4137 = vsub.f32 %v3658, %v4136
    %v4138 = vand.u32 %v4137, 4294901760
    %4139 = vmatpush1.msra.mxu0 %v4138
    %4140 = vmatprep.subr.mxu0 0.0
    %4141 = vmatpush1.msra.mxu0 0.0
    %4142 = vmatprep.subr.mxu0 0.0
    %4143 = vmatpush1.msra.mxu0 0.0
    %4144 = vmatprep.subr.mxu0 0.0
    %4145 = vmatpush1.msra.mxu0 0.0
    %4146 = vmatprep.subr.mxu0 0.0
    %4147 = vmatpush1.msra.mxu0 0.0
    %4148 = vmatprep.subr.mxu0 0.0
    %4149 = vmatpush1.msra.mxu0 0.0
    %4150 = vmatprep.subr.mxu0 0.0
    %4151 = vmatpush1.msra.mxu0 0.0
    %4152 = vmatprep.subr.mxu0 0.0
    %4153 = vmatpush1.msra.mxu0 0.0
    %4154 = vmatprep.subr.mxu0 0.0
    %4155 = vmatpush1.msra.mxu0 0.0
    %4156 = vmatprep.subr.mxu0 0.0
    %4157 = vmatpush1.msra.mxu0 0.0
    %4158 = vmatprep.subr.mxu0 0.0
    %4159 = vmatpush1.msra.mxu0 0.0
    %4160 = vmatprep.subr.mxu0 0.0
    %4161 = vmatpush1.msra.mxu0 0.0
    %4162 = vmatprep.subr.mxu0 0.0
    %4163 = vmatpush1.msra.mxu0 0.0
    %4164 = vmatprep.subr.mxu0 0.0
    %4165 = vmatpush1.msra.mxu0 0.0
    %4166 = vmatprep.subr.mxu0 0.0
    %4167 = vmatpush1.msra.mxu0 0.0
    %4168 = vmatprep.subr.mxu0 0.0
    %4169 = vmatpush1.msra.mxu0 0.0
    %4170 = vmatprep.subr.mxu0 0.0
    %4171 = vmatpush1.msra.mxu0 0.0
    %4172 = vmatprep.subr.mxu0 0.0
    %4173 = vmatpush1.msra.mxu0 0.0
    %4174 = vmatprep.subr.mxu0 0.0
    %4175 = vmatpush1.msra.mxu0 0.0
    %4176 = vmatprep.subr.mxu0 0.0
    %4177 = vmatpush1.msra.mxu0 0.0
    %4178 = vmatprep.subr.mxu0 0.0
    %4179 = vmatpush1.msra.mxu0 0.0
    %4180 = vmatprep.subr.mxu0 0.0
    %4181 = vmatpush1.msra.mxu0 0.0
    %4182 = vmatprep.subr.mxu0 0.0
    %4183 = vmatpush1.msra.mxu0 0.0
    %4184 = vmatprep.subr.mxu0 0.0
    %4185 = vmatpush1.msra.mxu0 0.0
    %4186 = vmatprep.subr.mxu0 0.0
    %4187 = vmatpush1.msra.mxu0 0.0
    %4188 = vmatprep.subr.mxu0 0.0
    %4189 = vmatpush1.msra.mxu0 0.0
    %4190 = vmatprep.subr.mxu0 0.0
    %4191 = vmatpush1.msra.mxu0 0.0
    %4192 = vmatprep.subr.mxu0 0.0
    %4193 = vmatpush1.msra.mxu0 0.0
    %4194 = vmatprep.subr.mxu0 0.0
    %4195 = vmatpush1.msra.mxu0 0.0
    %4196 = vmatprep.mubr.f32.mxu0 0.0
    %v4197 = vand.u32 %v3689, 4294901760
    %4198 = vmatmul.mubr.f32.gmra.mrb[0].mxu0 %v4197
    %v4199 = vpop.f32.mrb[0].mxu0
    %v4200 = vadd.f32 %v4093, %v4199
    %v4201 = vpop.f32.mrb[0].mxu0
    %4202 = vmatprep.mubr.f32.mxu0 0.0
    %v4203 = vand.u32 %v3692, 4294901760
    %4204 = vmatmul.mubr.f32.gmra.mrb[0].mxu0 %v4203
    %v4205 = vpop.f32.mrb[0].mxu0
    %v4206 = vadd.f32 %v4101, %v4205
    %v4207 = vpop.f32.mrb[0].mxu0
    %4208 = vmatprep.mubr.f32.mxu0 0.0
    %v4209 = vand.u32 %v3695, 4294901760
    %4210 = vmatmul.mubr.f32.gmra.mrb[0].mxu0 %v4209
    %v4211 = vpop.f32.mrb[0].mxu0
    %v4212 = vadd.f32 %v4109, %v4211
    %v4213 = vpop.f32.mrb[0].mxu0
    %4214 = vmatprep.mubr.f32.mxu0 0.0
    %v4215 = vand.u32 %v3698, 4294901760
    %4216 = vmatmul.mubr.f32.gmra.mrb[0].mxu0 %v4215
    %v4217 = vpop.f32.mrb[0].mxu0
    %v4218 = vadd.f32 %v4117, %v4217
    %v4219 = vpop.f32.mrb[0].mxu0
    %4220 = vdwg.mxu0
    %4221 = vmatprep.subr.mxu0 0.0
    %v4222 = vand.u32 %v3655, 4294901760
    %4223 = vmatpush1.msra.mxu0 %v4222
    %4224 = vmatprep.subr.mxu0 0.0
    %v4225 = vand.u32 %v3656, 4294901760
    %4226 = vmatpush1.msra.mxu0 %v4225
    %4227 = vmatprep.subr.mxu0 0.0
    %v4228 = vand.u32 %v3657, 4294901760
    %4229 = vmatpush1.msra.mxu0 %v4228
    %4230 = vmatprep.subr.mxu0 0.0
    %v4231 = vand.u32 %v3658, 4294901760
    %4232 = vmatpush1.msra.mxu0 %v4231
    %4233 = vmatprep.subr.mxu0 0.0
    %4234 = vmatpush1.msra.mxu0 0.0
    %4235 = vmatprep.subr.mxu0 0.0
    %4236 = vmatpush1.msra.mxu0 0.0
    %4237 = vmatprep.subr.mxu0 0.0
    %4238 = vmatpush1.msra.mxu0 0.0
    %4239 = vmatprep.subr.mxu0 0.0
    %4240 = vmatpush1.msra.mxu0 0.0
    %4241 = vmatprep.subr.mxu0 0.0
    %4242 = vmatpush1.msra.mxu0 0.0
    %4243 = vmatprep.subr.mxu0 0.0
    %4244 = vmatpush1.msra.mxu0 0.0
    %4245 = vmatprep.subr.mxu0 0.0
    %4246 = vmatpush1.msra.mxu0 0.0
    %4247 = vmatprep.subr.mxu0 0.0
    %4248 = vmatpush1.msra.mxu0 0.0
    %4249 = vmatprep.subr.mxu0 0.0
    %4250 = vmatpush1.msra.mxu0 0.0
    %4251 = vmatprep.subr.mxu0 0.0
    %4252 = vmatpush1.msra.mxu0 0.0
    %4253 = vmatprep.subr.mxu0 0.0
    %4254 = vmatpush1.msra.mxu0 0.0
    %4255 = vmatprep.subr.mxu0 0.0
    %4256 = vmatpush1.msra.mxu0 0.0
    %4257 = vmatprep.subr.mxu0 0.0
    %4258 = vmatpush1.msra.mxu0 0.0
    %4259 = vmatprep.subr.mxu0 0.0
    %4260 = vmatpush1.msra.mxu0 0.0
    %4261 = vmatprep.subr.mxu0 0.0
    %4262 = vmatpush1.msra.mxu0 0.0
    %4263 = vmatprep.subr.mxu0 0.0
    %4264 = vmatpush1.msra.mxu0 0.0
    %4265 = vmatprep.subr.mxu0 0.0
    %4266 = vmatpush1.msra.mxu0 0.0
    %4267 = vmatprep.subr.mxu0 0.0
    %4268 = vmatpush1.msra.mxu0 0.0
    %4269 = vmatprep.subr.mxu0 0.0
    %4270 = vmatpush1.msra.mxu0 0.0
    %4271 = vmatprep.subr.mxu0 0.0
    %4272 = vmatpush1.msra.mxu0 0.0
    %4273 = vmatprep.subr.mxu0 0.0
    %4274 = vmatpush1.msra.mxu0 0.0
    %4275 = vmatprep.subr.mxu0 0.0
    %4276 = vmatpush1.msra.mxu0 0.0
    %4277 = vmatprep.subr.mxu0 0.0
    %4278 = vmatpush1.msra.mxu0 0.0
    %4279 = vmatprep.subr.mxu0 0.0
    %4280 = vmatpush1.msra.mxu0 0.0
    %4281 = vmatprep.subr.mxu0 0.0
    %4282 = vmatpush1.msra.mxu0 0.0
    %4283 = vmatprep.subr.mxu0 0.0
    %4284 = vmatpush1.msra.mxu0 0.0
    %4285 = vmatprep.subr.mxu0 0.0
    %4286 = vmatpush1.msra.mxu0 0.0
    %4287 = vmatprep.subr.mxu0 0.0
    %4288 = vmatpush1.msra.mxu0 0.0
    %4289 = vmatprep.mubr.f32.mxu0 0.0
    %v4290 = vand.u32 %v3689, 4294901760
    %4291 = vmatmul.mubr.f32.gmra.mrb[0].mxu0 %v4290
    %v4292 = vpop.f32.mrb[0].mxu0
    %v4293 = vadd.f32 %v4200, %v4292
    %v4294 = vpop.f32.mrb[0].mxu0
    %4295 = vmatprep.mubr.f32.mxu0 0.0
    %v4296 = vand.u32 %v3692, 4294901760
    %4297 = vmatmul.mubr.f32.gmra.mrb[0].mxu0 %v4296
    %v4298 = vpop.f32.mrb[0].mxu0
    %v4299 = vadd.f32 %v4206, %v4298
    %v4300 = vpop.f32.mrb[0].mxu0
    %4301 = vmatprep.mubr.f32.mxu0 0.0
    %v4302 = vand.u32 %v3695, 4294901760
    %4303 = vmatmul.mubr.f32.gmra.mrb[0].mxu0 %v4302
    %v4304 = vpop.f32.mrb[0].mxu0
    %v4305 = vadd.f32 %v4212, %v4304
    %v4306 = vpop.f32.mrb[0].mxu0
    %4307 = vmatprep.mubr.f32.mxu0 0.0
    %v4308 = vand.u32 %v3698, 4294901760
    %4309 = vmatmul.mubr.f32.gmra.mrb[0].mxu0 %v4308
    %v4310 = vpop.f32.mrb[0].mxu0
    %v4311 = vadd.f32 %v4218, %v4310
    %v4312 = vpop.f32.mrb[0].mxu0
    %4313 = vdwg.mxu0
    %v4314 = vmax.f32 %v4293, 0.0
    %v4315 = vmax.f32 %v4299, 0.0
    %v4316 = vmax.f32 %v4305, 0.0
    %v4317 = vmax.f32 %v4311, 0.0
    %v4318 = vld [vmem:[%s11] sm:$0x1]
    %v4319 = vld [vmem:[#allocation2] sm:$0x1]
    %4321 = vset.pattern.permute.xlu0 0
    %4322 = vperm.xlu0 %4321, %v4319
    %v4323 = vpop.permute.xlu0 %4322
    %v4325 = vlaneseq
    %v4326 = vshrl.u32 %v4325, 7
    %v4327 = vsub.s32 0, %v4326
    %v4328 = vrot.slane %v4323, %v4327
    %v4330 = vsel %vm3687, %v4318, 0
    %4332 = vmatprep.subr.mxu0 0.0
    %v4333 = vand.u32 %v4314, 4294901760
    %4334 = vmatpush1.msra.mxu0 %v4333
    %4335 = vmatprep.subr.mxu0 0.0
    %v4336 = vand.u32 %v4315, 4294901760
    %4337 = vmatpush1.msra.mxu0 %v4336
    %4338 = vmatprep.subr.mxu0 0.0
    %v4339 = vand.u32 %v4316, 4294901760
    %4340 = vmatpush1.msra.mxu0 %v4339
    %4341 = vmatprep.subr.mxu0 0.0
    %v4342 = vand.u32 %v4317, 4294901760
    %4343 = vmatpush1.msra.mxu0 %v4342
    %4344 = vmatprep.subr.mxu0 0.0
    %4345 = vmatpush1.msra.mxu0 0.0
    %4346 = vmatprep.subr.mxu0 0.0
    %4347 = vmatpush1.msra.mxu0 0.0
    %4348 = vmatprep.subr.mxu0 0.0
    %4349 = vmatpush1.msra.mxu0 0.0
    %4350 = vmatprep.subr.mxu0 0.0
    %4351 = vmatpush1.msra.mxu0 0.0
    %4352 = vmatprep.subr.mxu0 0.0
    %4353 = vmatpush1.msra.mxu0 0.0
    %4354 = vmatprep.subr.mxu0 0.0
    %4355 = vmatpush1.msra.mxu0 0.0
    %4356 = vmatprep.subr.mxu0 0.0
    %4357 = vmatpush1.msra.mxu0 0.0
    %4358 = vmatprep.subr.mxu0 0.0
    %4359 = vmatpush1.msra.mxu0 0.0
    %4360 = vmatprep.subr.mxu0 0.0
    %4361 = vmatpush1.msra.mxu0 0.0
    %4362 = vmatprep.subr.mxu0 0.0
    %4363 = vmatpush1.msra.mxu0 0.0
    %4364 = vmatprep.subr.mxu0 0.0
    %4365 = vmatpush1.msra.mxu0 0.0
    %4366 = vmatprep.subr.mxu0 0.0
    %4367 = vmatpush1.msra.mxu0 0.0
    %4368 = vmatprep.subr.mxu0 0.0
    %4369 = vmatpush1.msra.mxu0 0.0
    %4370 = vmatprep.subr.mxu0 0.0
    %4371 = vmatpush1.msra.mxu0 0.0
    %4372 = vmatprep.subr.mxu0 0.0
    %4373 = vmatpush1.msra.mxu0 0.0
    %4374 = vmatprep.subr.mxu0 0.0
    %4375 = vmatpush1.msra.mxu0 0.0
    %4376 = vmatprep.subr.mxu0 0.0
    %4377 = vmatpush1.msra.mxu0 0.0
    %4378 = vmatprep.subr.mxu0 0.0
    %4379 = vmatpush1.msra.mxu0 0.0
    %4380 = vmatprep.subr.mxu0 0.0
    %4381 = vmatpush1.msra.mxu0 0.0
    %4382 = vmatprep.subr.mxu0 0.0
    %4383 = vmatpush1.msra.mxu0 0.0
    %4384 = vmatprep.subr.mxu0 0.0
    %4385 = vmatpush1.msra.mxu0 0.0
    %4386 = vmatprep.subr.mxu0 0.0
    %4387 = vmatpush1.msra.mxu0 0.0
    %4388 = vmatprep.subr.mxu0 0.0
    %4389 = vmatpush1.msra.mxu0 0.0
    %4390 = vmatprep.subr.mxu0 0.0
    %4391 = vmatpush1.msra.mxu0 0.0
    %4392 = vmatprep.subr.mxu0 0.0
    %4393 = vmatpush1.msra.mxu0 0.0
    %4394 = vmatprep.subr.mxu0 0.0
    %4395 = vmatpush1.msra.mxu0 0.0
    %4396 = vmatprep.subr.mxu0 0.0
    %4397 = vmatpush1.msra.mxu0 0.0
    %4398 = vmatprep.subr.mxu0 0.0
    %4399 = vmatpush1.msra.mxu0 0.0
    %4400 = vmatprep.mubr.f32.mxu0 0.0
    %v4401 = vand.u32 %v4330, 4294901760
    %v4402 = vsub.f32 %v4330, %v4401
    %v4403 = vand.u32 %v4402, 4294901760
    %v4404 = vsub.f32 %v4402, %v4403
    %v4405 = vand.u32 %v4404, 4294901760
    %4406 = vmatmul.mubr.f32.gmra.mrb[0].mxu0 %v4405
    %v4407 = vpop.f32.mrb[0].mxu0
    %v4408 = vadd.f32 %v4328, %v4407
    %v4409 = vpop.f32.mrb[0].mxu0
    %4410 = vdwg.mxu0
    %4411 = vmatprep.subr.mxu0 0.0
    %v4412 = vand.u32 %v4314, 4294901760
    %v4413 = vsub.f32 %v4314, %v4412
    %v4414 = vand.u32 %v4413, 4294901760
    %v4415 = vsub.f32 %v4413, %v4414
    %v4416 = vand.u32 %v4415, 4294901760
    %4417 = vmatpush1.msra.mxu0 %v4416
    %4418 = vmatprep.subr.mxu0 0.0
    %v4419 = vand.u32 %v4315, 4294901760
    %v4420 = vsub.f32 %v4315, %v4419
    %v4421 = vand.u32 %v4420, 4294901760
    %v4422 = vsub.f32 %v4420, %v4421
    %v4423 = vand.u32 %v4422, 4294901760
    %4424 = vmatpush1.msra.mxu0 %v4423
    %4425 = vmatprep.subr.mxu0 0.0
    %v4426 = vand.u32 %v4316, 4294901760
    %v4427 = vsub.f32 %v4316, %v4426
    %v4428 = vand.u32 %v4427, 4294901760
    %v4429 = vsub.f32 %v4427, %v4428
    %v4430 = vand.u32 %v4429, 4294901760
    %4431 = vmatpush1.msra.mxu0 %v4430
    %4432 = vmatprep.subr.mxu0 0.0
    %v4433 = vand.u32 %v4317, 4294901760
    %v4434 = vsub.f32 %v4317, %v4433
    %v4435 = vand.u32 %v4434, 4294901760
    %v4436 = vsub.f32 %v4434, %v4435
    %v4437 = vand.u32 %v4436, 4294901760
    %4438 = vmatpush1.msra.mxu0 %v4437
    %4439 = vmatprep.subr.mxu0 0.0
    %4440 = vmatpush1.msra.mxu0 0.0
    %4441 = vmatprep.subr.mxu0 0.0
    %4442 = vmatpush1.msra.mxu0 0.0
    %4443 = vmatprep.subr.mxu0 0.0
    %4444 = vmatpush1.msra.mxu0 0.0
    %4445 = vmatprep.subr.mxu0 0.0
    %4446 = vmatpush1.msra.mxu0 0.0
    %4447 = vmatprep.subr.mxu0 0.0
    %4448 = vmatpush1.msra.mxu0 0.0
    %4449 = vmatprep.subr.mxu0 0.0
    %4450 = vmatpush1.msra.mxu0 0.0
    %4451 = vmatprep.subr.mxu0 0.0
    %4452 = vmatpush1.msra.mxu0 0.0
    %4453 = vmatprep.subr.mxu0 0.0
    %4454 = vmatpush1.msra.mxu0 0.0
    %4455 = vmatprep.subr.mxu0 0.0
    %4456 = vmatpush1.msra.mxu0 0.0
    %4457 = vmatprep.subr.mxu0 0.0
    %4458 = vmatpush1.msra.mxu0 0.0
    %4459 = vmatprep.subr.mxu0 0.0
    %4460 = vmatpush1.msra.mxu0 0.0
    %4461 = vmatprep.subr.mxu0 0.0
    %4462 = vmatpush1.msra.mxu0 0.0
    %4463 = vmatprep.subr.mxu0 0.0
    %4464 = vmatpush1.msra.mxu0 0.0
    %4465 = vmatprep.subr.mxu0 0.0
    %4466 = vmatpush1.msra.mxu0 0.0
    %4467 = vmatprep.subr.mxu0 0.0
    %4468 = vmatpush1.msra.mxu0 0.0
    %4469 = vmatprep.subr.mxu0 0.0
    %4470 = vmatpush1.msra.mxu0 0.0
    %4471 = vmatprep.subr.mxu0 0.0
    %4472 = vmatpush1.msra.mxu0 0.0
    %4473 = vmatprep.subr.mxu0 0.0
    %4474 = vmatpush1.msra.mxu0 0.0
    %4475 = vmatprep.subr.mxu0 0.0
    %4476 = vmatpush1.msra.mxu0 0.0
    %4477 = vmatprep.subr.mxu0 0.0
    %4478 = vmatpush1.msra.mxu0 0.0
    %4479 = vmatprep.subr.mxu0 0.0
    %4480 = vmatpush1.msra.mxu0 0.0
    %4481 = vmatprep.subr.mxu0 0.0
    %4482 = vmatpush1.msra.mxu0 0.0
    %4483 = vmatprep.subr.mxu0 0.0
    %4484 = vmatpush1.msra.mxu0 0.0
    %4485 = vmatprep.subr.mxu0 0.0
    %4486 = vmatpush1.msra.mxu0 0.0
    %4487 = vmatprep.subr.mxu0 0.0
    %4488 = vmatpush1.msra.mxu0 0.0
    %4489 = vmatprep.subr.mxu0 0.0
    %4490 = vmatpush1.msra.mxu0 0.0
    %4491 = vmatprep.subr.mxu0 0.0
    %4492 = vmatpush1.msra.mxu0 0.0
    %4493 = vmatprep.subr.mxu0 0.0
    %4494 = vmatpush1.msra.mxu0 0.0
    %4495 = vmatprep.mubr.f32.mxu0 0.0
    %v4496 = vand.u32 %v4330, 4294901760
    %4497 = vmatmul.mubr.f32.gmra.mrb[0].mxu0 %v4496
    %v4498 = vpop.f32.mrb[0].mxu0
    %v4499 = vadd.f32 %v4408, %v4498
    %v4500 = vpop.f32.mrb[0].mxu0
    %4501 = vdwg.mxu0
    %4502 = vmatprep.subr.mxu0 0.0
    %v4503 = vand.u32 %v4314, 4294901760
    %v4504 = vsub.f32 %v4314, %v4503
    %4505 = vmatpush1.msra.mxu0 %v4504
    %4506 = vmatprep.subr.mxu0 0.0
    %v4507 = vand.u32 %v4315, 4294901760
    %v4508 = vsub.f32 %v4315, %v4507
    %4509 = vmatpush1.msra.mxu0 %v4508
    %4510 = vmatprep.subr.mxu0 0.0
    %v4511 = vand.u32 %v4316, 4294901760
    %v4512 = vsub.f32 %v4316, %v4511
    %4513 = vmatpush1.msra.mxu0 %v4512
    %4514 = vmatprep.subr.mxu0 0.0
    %v4515 = vand.u32 %v4317, 4294901760
    %v4516 = vsub.f32 %v4317, %v4515
    %4517 = vmatpush1.msra.mxu0 %v4516
    %4518 = vmatprep.subr.mxu0 0.0
    %4519 = vmatpush1.msra.mxu0 0.0
    %4520 = vmatprep.subr.mxu0 0.0
    %4521 = vmatpush1.msra.mxu0 0.0
    %4522 = vmatprep.subr.mxu0 0.0
    %4523 = vmatpush1.msra.mxu0 0.0
    %4524 = vmatprep.subr.mxu0 0.0
    %4525 = vmatpush1.msra.mxu0 0.0
    %4526 = vmatprep.subr.mxu0 0.0
    %4527 = vmatpush1.msra.mxu0 0.0
    %4528 = vmatprep.subr.mxu0 0.0
    %4529 = vmatpush1.msra.mxu0 0.0
    %4530 = vmatprep.subr.mxu0 0.0
    %4531 = vmatpush1.msra.mxu0 0.0
    %4532 = vmatprep.subr.mxu0 0.0
    %4533 = vmatpush1.msra.mxu0 0.0
    %4534 = vmatprep.subr.mxu0 0.0
    %4535 = vmatpush1.msra.mxu0 0.0
    %4536 = vmatprep.subr.mxu0 0.0
    %4537 = vmatpush1.msra.mxu0 0.0
    %4538 = vmatprep.subr.mxu0 0.0
    %4539 = vmatpush1.msra.mxu0 0.0
    %4540 = vmatprep.subr.mxu0 0.0
    %4541 = vmatpush1.msra.mxu0 0.0
    %4542 = vmatprep.subr.mxu0 0.0
    %4543 = vmatpush1.msra.mxu0 0.0
    %4544 = vmatprep.subr.mxu0 0.0
    %4545 = vmatpush1.msra.mxu0 0.0
    %4546 = vmatprep.subr.mxu0 0.0
    %4547 = vmatpush1.msra.mxu0 0.0
    %4548 = vmatprep.subr.mxu0 0.0
    %4549 = vmatpush1.msra.mxu0 0.0
    %4550 = vmatprep.subr.mxu0 0.0
    %4551 = vmatpush1.msra.mxu0 0.0
    %4552 = vmatprep.subr.mxu0 0.0
    %4553 = vmatpush1.msra.mxu0 0.0
    %4554 = vmatprep.subr.mxu0 0.0
    %4555 = vmatpush1.msra.mxu0 0.0
    %4556 = vmatprep.subr.mxu0 0.0
    %4557 = vmatpush1.msra.mxu0 0.0
    %4558 = vmatprep.subr.mxu0 0.0
    %4559 = vmatpush1.msra.mxu0 0.0
    %4560 = vmatprep.subr.mxu0 0.0
    %4561 = vmatpush1.msra.mxu0 0.0
    %4562 = vmatprep.subr.mxu0 0.0
    %4563 = vmatpush1.msra.mxu0 0.0
    %4564 = vmatprep.subr.mxu0 0.0
    %4565 = vmatpush1.msra.mxu0 0.0
    %4566 = vmatprep.subr.mxu0 0.0
    %4567 = vmatpush1.msra.mxu0 0.0
    %4568 = vmatprep.subr.mxu0 0.0
    %4569 = vmatpush1.msra.mxu0 0.0
    %4570 = vmatprep.subr.mxu0 0.0
    %4571 = vmatpush1.msra.mxu0 0.0
    %4572 = vmatprep.subr.mxu0 0.0
    %4573 = vmatpush1.msra.mxu0 0.0
    %4574 = vmatprep.mubr.f32.mxu0 0.0
    %v4575 = vand.u32 %v4330, 4294901760
    %v4576 = vsub.f32 %v4330, %v4575
    %4577 = vmatmul.mubr.f32.gmra.mrb[0].mxu0 %v4576
    %v4578 = vpop.f32.mrb[0].mxu0
    %v4579 = vadd.f32 %v4499, %v4578
    %v4580 = vpop.f32.mrb[0].mxu0
    %4581 = vdwg.mxu0
    %4582 = vmatprep.subr.mxu0 0.0
    %v4583 = vand.u32 %v4314, 4294901760
    %4584 = vmatpush1.msra.mxu0 %v4583
    %4585 = vmatprep.subr.mxu0 0.0
    %v4586 = vand.u32 %v4315, 4294901760
    %4587 = vmatpush1.msra.mxu0 %v4586
    %4588 = vmatprep.subr.mxu0 0.0
    %v4589 = vand.u32 %v4316, 4294901760
    %4590 = vmatpush1.msra.mxu0 %v4589
    %4591 = vmatprep.subr.mxu0 0.0
    %v4592 = vand.u32 %v4317, 4294901760
    %4593 = vmatpush1.msra.mxu0 %v4592
    %4594 = vmatprep.subr.mxu0 0.0
    %4595 = vmatpush1.msra.mxu0 0.0
    %4596 = vmatprep.subr.mxu0 0.0
    %4597 = vmatpush1.msra.mxu0 0.0
    %4598 = vmatprep.subr.mxu0 0.0
    %4599 = vmatpush1.msra.mxu0 0.0
    %4600 = vmatprep.subr.mxu0 0.0
    %4601 = vmatpush1.msra.mxu0 0.0
    %4602 = vmatprep.subr.mxu0 0.0
    %4603 = vmatpush1.msra.mxu0 0.0
    %4604 = vmatprep.subr.mxu0 0.0
    %4605 = vmatpush1.msra.mxu0 0.0
    %4606 = vmatprep.subr.mxu0 0.0
    %4607 = vmatpush1.msra.mxu0 0.0
    %4608 = vmatprep.subr.mxu0 0.0
    %4609 = vmatpush1.msra.mxu0 0.0
    %4610 = vmatprep.subr.mxu0 0.0
    %4611 = vmatpush1.msra.mxu0 0.0
    %4612 = vmatprep.subr.mxu0 0.0
    %4613 = vmatpush1.msra.mxu0 0.0
    %4614 = vmatprep.subr.mxu0 0.0
    %4615 = vmatpush1.msra.mxu0 0.0
    %4616 = vmatprep.subr.mxu0 0.0
    %4617 = vmatpush1.msra.mxu0 0.0
    %4618 = vmatprep.subr.mxu0 0.0
    %4619 = vmatpush1.msra.mxu0 0.0
    %4620 = vmatprep.subr.mxu0 0.0
    %4621 = vmatpush1.msra.mxu0 0.0
    %4622 = vmatprep.subr.mxu0 0.0
    %4623 = vmatpush1.msra.mxu0 0.0
    %4624 = vmatprep.subr.mxu0 0.0
    %4625 = vmatpush1.msra.mxu0 0.0
    %4626 = vmatprep.subr.mxu0 0.0
    %4627 = vmatpush1.msra.mxu0 0.0
    %4628 = vmatprep.subr.mxu0 0.0
    %4629 = vmatpush1.msra.mxu0 0.0
    %4630 = vmatprep.subr.mxu0 0.0
    %4631 = vmatpush1.msra.mxu0 0.0
    %4632 = vmatprep.subr.mxu0 0.0
    %4633 = vmatpush1.msra.mxu0 0.0
    %4634 = vmatprep.subr.mxu0 0.0
    %4635 = vmatpush1.msra.mxu0 0.0
    %4636 = vmatprep.subr.mxu0 0.0
    %4637 = vmatpush1.msra.mxu0 0.0
    %4638 = vmatprep.subr.mxu0 0.0
    %4639 = vmatpush1.msra.mxu0 0.0
    %4640 = vmatprep.subr.mxu0 0.0
    %4641 = vmatpush1.msra.mxu0 0.0
    %4642 = vmatprep.subr.mxu0 0.0
    %4643 = vmatpush1.msra.mxu0 0.0
    %4644 = vmatprep.subr.mxu0 0.0
    %4645 = vmatpush1.msra.mxu0 0.0
    %4646 = vmatprep.subr.mxu0 0.0
    %4647 = vmatpush1.msra.mxu0 0.0
    %4648 = vmatprep.subr.mxu0 0.0
    %4649 = vmatpush1.msra.mxu0 0.0
    %4650 = vmatprep.mubr.f32.mxu0 0.0
    %v4651 = vand.u32 %v4330, 4294901760
    %v4652 = vsub.f32 %v4330, %v4651
    %v4653 = vand.u32 %v4652, 4294901760
    %4654 = vmatmul.mubr.f32.gmra.mrb[0].mxu0 %v4653
    %v4655 = vpop.f32.mrb[0].mxu0
    %v4656 = vadd.f32 %v4579, %v4655
    %v4657 = vpop.f32.mrb[0].mxu0
    %4658 = vdwg.mxu0
    %4659 = vmatprep.subr.mxu0 0.0
    %v4660 = vand.u32 %v4314, 4294901760
    %v4661 = vsub.f32 %v4314, %v4660
    %v4662 = vand.u32 %v4661, 4294901760
    %4663 = vmatpush1.msra.mxu0 %v4662
    %4664 = vmatprep.subr.mxu0 0.0
    %v4665 = vand.u32 %v4315, 4294901760
    %v4666 = vsub.f32 %v4315, %v4665
    %v4667 = vand.u32 %v4666, 4294901760
    %4668 = vmatpush1.msra.mxu0 %v4667
    %4669 = vmatprep.subr.mxu0 0.0
    %v4670 = vand.u32 %v4316, 4294901760
    %v4671 = vsub.f32 %v4316, %v4670
    %v4672 = vand.u32 %v4671, 4294901760
    %4673 = vmatpush1.msra.mxu0 %v4672
    %4674 = vmatprep.subr.mxu0 0.0
    %v4675 = vand.u32 %v4317, 4294901760
    %v4676 = vsub.f32 %v4317, %v4675
    %v4677 = vand.u32 %v4676, 4294901760
    %4678 = vmatpush1.msra.mxu0 %v4677
    %4679 = vmatprep.subr.mxu0 0.0
    %4680 = vmatpush1.msra.mxu0 0.0
    %4681 = vmatprep.subr.mxu0 0.0
    %4682 = vmatpush1.msra.mxu0 0.0
    %4683 = vmatprep.subr.mxu0 0.0
    %4684 = vmatpush1.msra.mxu0 0.0
    %4685 = vmatprep.subr.mxu0 0.0
    %4686 = vmatpush1.msra.mxu0 0.0
    %4687 = vmatprep.subr.mxu0 0.0
    %4688 = vmatpush1.msra.mxu0 0.0
    %4689 = vmatprep.subr.mxu0 0.0
    %4690 = vmatpush1.msra.mxu0 0.0
    %4691 = vmatprep.subr.mxu0 0.0
    %4692 = vmatpush1.msra.mxu0 0.0
    %4693 = vmatprep.subr.mxu0 0.0
    %4694 = vmatpush1.msra.mxu0 0.0
    %4695 = vmatprep.subr.mxu0 0.0
    %4696 = vmatpush1.msra.mxu0 0.0
    %4697 = vmatprep.subr.mxu0 0.0
    %4698 = vmatpush1.msra.mxu0 0.0
    %4699 = vmatprep.subr.mxu0 0.0
    %4700 = vmatpush1.msra.mxu0 0.0
    %4701 = vmatprep.subr.mxu0 0.0
    %4702 = vmatpush1.msra.mxu0 0.0
    %4703 = vmatprep.subr.mxu0 0.0
    %4704 = vmatpush1.msra.mxu0 0.0
    %4705 = vmatprep.subr.mxu0 0.0
    %4706 = vmatpush1.msra.mxu0 0.0
    %4707 = vmatprep.subr.mxu0 0.0
    %4708 = vmatpush1.msra.mxu0 0.0
    %4709 = vmatprep.subr.mxu0 0.0
    %4710 = vmatpush1.msra.mxu0 0.0
    %4711 = vmatprep.subr.mxu0 0.0
    %4712 = vmatpush1.msra.mxu0 0.0
    %4713 = vmatprep.subr.mxu0 0.0
    %4714 = vmatpush1.msra.mxu0 0.0
    %4715 = vmatprep.subr.mxu0 0.0
    %4716 = vmatpush1.msra.mxu0 0.0
    %4717 = vmatprep.subr.mxu0 0.0
    %4718 = vmatpush1.msra.mxu0 0.0
    %4719 = vmatprep.subr.mxu0 0.0
    %4720 = vmatpush1.msra.mxu0 0.0
    %4721 = vmatprep.subr.mxu0 0.0
    %4722 = vmatpush1.msra.mxu0 0.0
    %4723 = vmatprep.subr.mxu0 0.0
    %4724 = vmatpush1.msra.mxu0 0.0
    %4725 = vmatprep.subr.mxu0 0.0
    %4726 = vmatpush1.msra.mxu0 0.0
    %4727 = vmatprep.subr.mxu0 0.0
    %4728 = vmatpush1.msra.mxu0 0.0
    %4729 = vmatprep.subr.mxu0 0.0
    %4730 = vmatpush1.msra.mxu0 0.0
    %4731 = vmatprep.subr.mxu0 0.0
    %4732 = vmatpush1.msra.mxu0 0.0
    %4733 = vmatprep.subr.mxu0 0.0
    %4734 = vmatpush1.msra.mxu0 0.0
    %4735 = vmatprep.mubr.f32.mxu0 0.0
    %v4736 = vand.u32 %v4330, 4294901760
    %4737 = vmatmul.mubr.f32.gmra.mrb[0].mxu0 %v4736
    %v4738 = vpop.f32.mrb[0].mxu0
    %v4739 = vadd.f32 %v4656, %v4738
    %v4740 = vpop.f32.mrb[0].mxu0
    %4741 = vdwg.mxu0
    %4742 = vmatprep.subr.mxu0 0.0
    %v4743 = vand.u32 %v4314, 4294901760
    %4744 = vmatpush1.msra.mxu0 %v4743
    %4745 = vmatprep.subr.mxu0 0.0
    %v4746 = vand.u32 %v4315, 4294901760
    %4747 = vmatpush1.msra.mxu0 %v4746
    %4748 = vmatprep.subr.mxu0 0.0
    %v4749 = vand.u32 %v4316, 4294901760
    %4750 = vmatpush1.msra.mxu0 %v4749
    %4751 = vmatprep.subr.mxu0 0.0
    %v4752 = vand.u32 %v4317, 4294901760
    %4753 = vmatpush1.msra.mxu0 %v4752
    %4754 = vmatprep.subr.mxu0 0.0
    %4755 = vmatpush1.msra.mxu0 0.0
    %4756 = vmatprep.subr.mxu0 0.0
    %4757 = vmatpush1.msra.mxu0 0.0
    %4758 = vmatprep.subr.mxu0 0.0
    %4759 = vmatpush1.msra.mxu0 0.0
    %4760 = vmatprep.subr.mxu0 0.0
    %4761 = vmatpush1.msra.mxu0 0.0
    %4762 = vmatprep.subr.mxu0 0.0
    %4763 = vmatpush1.msra.mxu0 0.0
    %4764 = vmatprep.subr.mxu0 0.0
    %4765 = vmatpush1.msra.mxu0 0.0
    %4766 = vmatprep.subr.mxu0 0.0
    %4767 = vmatpush1.msra.mxu0 0.0
    %4768 = vmatprep.subr.mxu0 0.0
    %4769 = vmatpush1.msra.mxu0 0.0
    %4770 = vmatprep.subr.mxu0 0.0
    %4771 = vmatpush1.msra.mxu0 0.0
    %4772 = vmatprep.subr.mxu0 0.0
    %4773 = vmatpush1.msra.mxu0 0.0
    %4774 = vmatprep.subr.mxu0 0.0
    %4775 = vmatpush1.msra.mxu0 0.0
    %4776 = vmatprep.subr.mxu0 0.0
    %4777 = vmatpush1.msra.mxu0 0.0
    %4778 = vmatprep.subr.mxu0 0.0
    %4779 = vmatpush1.msra.mxu0 0.0
    %4780 = vmatprep.subr.mxu0 0.0
    %4781 = vmatpush1.msra.mxu0 0.0
    %4782 = vmatprep.subr.mxu0 0.0
    %4783 = vmatpush1.msra.mxu0 0.0
    %4784 = vmatprep.subr.mxu0 0.0
    %4785 = vmatpush1.msra.mxu0 0.0
    %4786 = vmatprep.subr.mxu0 0.0
    %4787 = vmatpush1.msra.mxu0 0.0
    %4788 = vmatprep.subr.mxu0 0.0
    %4789 = vmatpush1.msra.mxu0 0.0
    %4790 = vmatprep.subr.mxu0 0.0
    %4791 = vmatpush1.msra.mxu0 0.0
    %4792 = vmatprep.subr.mxu0 0.0
    %4793 = vmatpush1.msra.mxu0 0.0
    %4794 = vmatprep.subr.mxu0 0.0
    %4795 = vmatpush1.msra.mxu0 0.0
    %4796 = vmatprep.subr.mxu0 0.0
    %4797 = vmatpush1.msra.mxu0 0.0
    %4798 = vmatprep.subr.mxu0 0.0
    %4799 = vmatpush1.msra.mxu0 0.0
    %4800 = vmatprep.subr.mxu0 0.0
    %4801 = vmatpush1.msra.mxu0 0.0
    %4802 = vmatprep.subr.mxu0 0.0
    %4803 = vmatpush1.msra.mxu0 0.0
    %4804 = vmatprep.subr.mxu0 0.0
    %4805 = vmatpush1.msra.mxu0 0.0
    %4806 = vmatprep.subr.mxu0 0.0
    %4807 = vmatpush1.msra.mxu0 0.0
    %4808 = vmatprep.subr.mxu0 0.0
    %4809 = vmatpush1.msra.mxu0 0.0
    %4810 = vmatprep.mubr.f32.mxu0 0.0
    %v4811 = vand.u32 %v4330, 4294901760
    %4812 = vmatmul.mubr.f32.gmra.mrb[0].mxu0 %v4811
    %v4813 = vpop.f32.mrb[0].mxu0
    %v4814 = vadd.f32 %v4739, %v4813
    %v4815 = vpop.f32.mrb[0].mxu0
    %4816 = vdwg.mxu0
    %v4817 = vmax.f32 %v4814, 0.0
    %vm4818 = vcmask 62464
    %4819 = vst.msk [vmem:[#allocation3] sm:$0x3f] %vm4818, %v2894
    %vm4820 = vcmask 57344
    %4821 = vst.msk [vmem:[#allocation3 + $0x6] sm:$0x1] %vm4820, %v4817
    // Predicated region
    $region54: #{tpu_custom_call.1} parent=1 // pred_check
      _
    $region55: #{tpu_custom_call.1} parent=1 // pred_check_branch
      %4823 = sbr.rel (0) target = $region57
    $region56: #{tpu_custom_call.1} parent=1 // pred_region
      %s4825 = ssub.s32 128, 128
      %4826 = vsyncadd [#allocation4], %s4825
      %s4828 = sshll.u32 [#allocation3], 4
      %s4829 = int_to_ptr.vmem [resolvable:$true] %s4828
      %4831 = dma.vmem_to_hbm [thread:$0]  %s4829, 128, %s13, [#allocation4]
    $region57: #{tpu_custom_call.1} parent=1 // pred_fallthru
      _
    // Predicated region
    $region58: #{tpu_custom_call.1} parent=1 // pred_check
      _
    $region59: #{tpu_custom_call.1} parent=1 // pred_check_branch
      %4833 = sbr.rel (0) target = $region61
    $region60: #{tpu_custom_call.1} parent=1 // pred_region
      %4834 = dma.done [#allocation4], 128
    $region61: #{tpu_custom_call.1} parent=1 // pred_fallthru
      _
    %4835 = vsyncpa [#allocation4], 1

</llo_original>
